<compile_context>
chip_gen: v7x
topology: tpu7x:2x2x1
jax: 0.10.0
libtpu: 0.0.40
codegen_flags: <defaults>
</compile_context>

<pallas_src>
import functools
import math

import jax
import jax.numpy as jnp
from jax.experimental import pallas as pl
from jax.experimental.pallas import tpu as pltpu

INPUT_SIZE = 100
OUTPUT_SIZE = 784
HIDDEN = (256, 512, 1024)
BN_EPS = 1e-5
LRELU_SLOPE = 0.2


def _round_up(x, m):
    return (x + m - 1) // m * m


# Padded (lane-aligned) feature dims.
D0 = _round_up(INPUT_SIZE, 128)    # 128
D1, D2, D3 = HIDDEN                # 256, 512, 1024 (already aligned)
D4 = _round_up(OUTPUT_SIZE, 128)   # 896


# ---------------------------------------------------------------------------
# Shared math helpers (used by both kernels and by the pure-JAX reference)
# ---------------------------------------------------------------------------
def _leaky_relu(z):
    # max(z, 0.2*z) == LeakyReLU(0.2) since slope < 1: 2 VPU ops vs 3.
    return jnp.maximum(z, LRELU_SLOPE * z)


def _bn_scale_shift(s, ss, gamma, beta, inv_b):
    """Training-mode BatchNorm1d folded into a per-feature affine.

    s / ss are (1, D) raw sum and sum-of-squares over the batch.
    Returns (scale, shift) so that normalized = a * scale + shift.
    NOTE: single-pass variance (E[x^2]-mean^2) can lose precision when
    |mean| >> std; fine for this network + tolerance, Welford would be safer
    if reused during training.
    """
    mean = s * inv_b
    var = jnp.maximum(ss * inv_b - mean * mean, 0.0)   # biased variance
    inv = jax.lax.rsqrt(var + BN_EPS)                  # EUP slot (free-ish)
    scale = inv * gamma
    shift = beta - mean * scale
    return scale, shift


# ---------------------------------------------------------------------------
# Path 1: grid-less fused kernel (small batches; whole batch VMEM-resident)
# ---------------------------------------------------------------------------
def _fused_kernel(x_ref,
                  w1_ref, v1_ref,
                  w2_ref, v2_ref,
                  w3_ref, v3_ref,
                  w4_ref, b4_ref,
                  out_ref):
    # v*_ref are (3, D): row 0 = bias, row 1 = BN gamma, row 2 = BN beta.
    inv_b = 1.0 / x_ref.shape[0]   # static

    def layer(h, w_ref, v_ref):
        z = jnp.dot(h.astype(jnp.bfloat16), w_ref[...],
                    preferred_element_type=jnp.float32) + v_ref[0:1, :]
        a = _leaky_relu(z)
        s = jnp.sum(a, axis=0, keepdims=True)
        ss = jnp.sum(a * a, axis=0, keepdims=True)
        scale, shift = _bn_scale_shift(s, ss, v_ref[1:2, :], v_ref[2:3, :], inv_b)
        return a * scale + shift

    h = layer(x_ref[...], w1_ref, v1_ref)
    h = layer(h, w2_ref, v2_ref)
    h = layer(h, w3_ref, v3_ref)
    z = jnp.dot(h.astype(jnp.bfloat16), w4_ref[...],
                preferred_element_type=jnp.float32) + b4_ref[...]
    out_ref[...] = jnp.tanh(z)


# ---------------------------------------------------------------------------
# Path 2: B-tiled grid kernels (large batches; weights resident per call)
# ---------------------------------------------------------------------------
def _make_hidden_kernel(inv_b, first):
    """Per-B-tile: [BN(prev stats) ->] Linear -> LeakyReLU; emit activation
    tile + accumulate per-feature sum/sumsq into a resident (2, D) output."""

    def _accumulate_stats(st_ref, a):
        @pl.when(pl.program_id(0) == 0)
        def _():
            st_ref[...] = jnp.zeros_like(st_ref)
        st_ref[...] += jnp.concatenate(
            [jnp.sum(a, axis=0, keepdims=True),
             jnp.sum(a * a, axis=0, keepdims=True)], axis=0)

    if first:
        def kernel(x_ref, w_ref, v_ref, a_ref, st_ref):
            z = jnp.dot(x_ref[...].astype(jnp.bfloat16), w_ref[...],
                        preferred_element_type=jnp.float32) + v_ref[0:1, :]
            a = _leaky_relu(z)
            a_ref[...] = a
            _accumulate_stats(st_ref, a)
    else:
        def kernel(h_ref, stp_ref, vp_ref, w_ref, v_ref, a_ref, st_ref):
            # Normalize the previous layer's (raw) activations using its
            # full-batch stats, folded into a 2-op affine.
            scale, shift = _bn_scale_shift(stp_ref[0:1, :], stp_ref[1:2, :],
                                           vp_ref[1:2, :], vp_ref[2:3, :], inv_b)
            hn = h_ref[...] * scale + shift
            z = jnp.dot(hn.astype(jnp.bfloat16), w_ref[...],
                        preferred_element_type=jnp.float32) + v_ref[0:1, :]
            a = _leaky_relu(z)
            a_ref[...] = a
            _accumulate_stats(st_ref, a)
    return kernel


def _make_output_kernel(inv_b):
    def kernel(h_ref, stp_ref, vp_ref, w_ref, b_ref, o_ref):
        scale, shift = _bn_scale_shift(stp_ref[0:1, :], stp_ref[1:2, :],
                                       vp_ref[1:2, :], vp_ref[2:3, :], inv_b)
        hn = h_ref[...] * scale + shift
        z = jnp.dot(hn.astype(jnp.bfloat16), w_ref[...],
                    preferred_element_type=jnp.float32) + b_ref[...]
        o_ref[...] = jnp.tanh(z)
    return kernel


# ---------------------------------------------------------------------------
# Parameters
# ---------------------------------------------------------------------------
def init_params(key):
    """Deterministic parameter init (shapes per the PyTorch module), f32."""
    ks = jax.random.split(key, 8)
    p = {}
    dims = [(INPUT_SIZE, HIDDEN[0]), (HIDDEN[0], HIDDEN[1]),
            (HIDDEN[1], HIDDEN[2]), (HIDDEN[2], OUTPUT_SIZE)]
    for i, (din, dout) in enumerate(dims):
        scale = 1.0 / jnp.sqrt(jnp.float32(din))
        p[f"w{i+1}"] = jax.random.normal(ks[2 * i], (din, dout), jnp.float32) * scale
        p[f"b{i+1}"] = jax.random.normal(ks[2 * i + 1], (dout,), jnp.float32) * 0.01
    for i, d in enumerate(HIDDEN):
        p[f"g{i+1}"] = jnp.ones((d,), jnp.float32)      # BN gamma
        p[f"be{i+1}"] = jnp.zeros((d,), jnp.float32)    # BN beta
    return p


def _pad_to(a, shape):
    return jnp.pad(a, [(0, s - d) for d, s in zip(a.shape, shape)])


def prepare_params(params):
    """One-time preprocessing (hoisted out of the forward hot path):
    zero-pad weights to lane-aligned shapes, cast them to bf16, and pack each
    hidden layer's (bias, gamma, beta) into a single (3, D) f32 array."""
    prep = {
        "w1": _pad_to(params["w1"], (D0, D1)).astype(jnp.bfloat16),
        "w2": params["w2"].astype(jnp.bfloat16),
        "w3": params["w3"].astype(jnp.bfloat16),
        "w4": _pad_to(params["w4"], (D3, D4)).astype(jnp.bfloat16),
        "b4": _pad_to(params["b4"].reshape(1, -1), (1, D4)),
    }
    for i in (1, 2, 3):
        prep[f"v{i}"] = jnp.stack(
            [params[f"b{i}"], params[f"g{i}"], params[f"be{i}"]], axis=0)
    return jax.device_put(prep)


# ---------------------------------------------------------------------------
# Forward wrappers
# ---------------------------------------------------------------------------
def _vmem_limit(blocks):
    """blocks: [(shape, itemsize), ...]. Double-buffer everything + margin."""
    need = 2 * sum(math.prod(s) * isz for s, isz in blocks) + (4 << 20)
    return int(min(max(need, 8 << 20), 64 << 20))


def _forward_fused(xp, prep):
    B = xp.shape[0]
    vmem = pl.BlockSpec(memory_space=pltpu.MemorySpace.VMEM)
    blocks = [((D0, D1), 2), ((D1, D2), 2), ((D2, D3), 2), ((D3, D4), 2),
              ((B, D0), 4), ((B, D1), 4), ((B, D2), 4), ((B, D3), 4),
              ((B, D4), 4), ((3, D1), 4), ((3, D2), 4), ((3, D3), 4),
              ((1, D4), 4)]
    return pl.pallas_call(
        _fused_kernel,
        out_shape=jax.ShapeDtypeStruct((B, D4), jnp.float32),
        in_specs=[vmem] * 9,
        out_specs=vmem,
        compiler_params=pltpu.CompilerParams(
            vmem_limit_bytes=_vmem_limit(blocks)),
    )(xp,
      prep["w1"], prep["v1"],
      prep["w2"], prep["v2"],
      prep["w3"], prep["v3"],
      prep["w4"], prep["b4"])


def _forward_tiled(xp, prep, tile_b):
    """Large-batch path: per-layer pallas_calls on a B-tiled grid.

    Weights/bias/BN vectors use constant index_maps (loaded once per call,
    VMEM-resident); activation tiles stream.  Each hidden-layer call also
    emits the raw (sum, sumsq) accumulator used by the next call's folded BN."""
    B = xp.shape[0]
    nt = B // tile_b
    inv_b = 1.0 / B

    def tiled(d):
        return pl.BlockSpec((tile_b, d), lambda t: (t, 0))

    def const(shape):
        return pl.BlockSpec(shape, lambda t: (0, 0))

    dims = (D0, D1, D2, D3)
    h, stp = xp, None
    for i in (1, 2, 3):
        din, dout = dims[i - 1], dims[i]
        w, v = prep[f"w{i}"], prep[f"v{i}"]
        first = (i == 1)
        if first:
            args = (h, w, v)
            in_specs = [tiled(din), const((din, dout)), const((3, dout))]
        else:
            args = (h, stp, prep[f"v{i-1}"], w, v)
            in_specs = [tiled(din), const((2, din)), const((3, din)),
                        const((din, dout)), const((3, dout))]
        vmem = _vmem_limit([((tile_b, din), 4), ((din, dout), 2),
                            ((tile_b, dout), 4), ((2, dout), 4),
                            ((3, dout), 4), ((3, din), 4), ((2, din), 4)])
        h, stp = pl.pallas_call(
            _make_hidden_kernel(inv_b, first),
            grid=(nt,),
            in_specs=in_specs,
            out_specs=(tiled(dout), const((2, dout))),
            out_shape=(jax.ShapeDtypeStruct((B, dout), jnp.float32),
                       jax.ShapeDtypeStruct((2, dout), jnp.float32)),
            compiler_params=pltpu.CompilerParams(
                # stats accumulator block is revisited across the grid
                dimension_semantics=("arbitrary",),
                vmem_limit_bytes=vmem),
        )(*args)

    # Output layer: BN(prev) -> Linear -> Tanh. No accumulator, so the batch
    # axis is fully parallel (lets v7x use both TensorCores).
    vmem = _vmem_limit([((tile_b, D3), 4), ((D3, D4), 2), ((tile_b, D4), 4),
                        ((2, D3), 4), ((3, D3), 4), ((1, D4), 4)])
    return pl.pallas_call(
        _make_output_kernel(inv_b),
        grid=(nt,),
        in_specs=[tiled(D3), const((2, D3)), const((3, D3)),
                  const((D3, D4)), const((1, D4))],
        out_specs=tiled(D4),
        out_shape=jax.ShapeDtypeStruct((B, D4), jnp.float32),
        compiler_params=pltpu.CompilerParams(
            dimension_semantics=("parallel",),
            vmem_limit_bytes=vmem),
    )(h, stp, prep["v3"], prep["w4"], prep["b4"])


@functools.partial(jax.jit, static_argnames=("tile_b",))
def generator_forward(x, prep, tile_b=None):
    """x: (B, 100) f32; prep: output of prepare_params(). Returns (B, 784).

    tile_b=None auto-selects: grid-less fused kernel for small B, B-tiled
    per-layer kernels for large B (set tile_b explicitly to force tiling)."""
    B = x.shape[0]
    assert B >= 16 and B % 16 == 0, \
        "batch must be a multiple of 16 (bf16 sublane packing; BN needs B>1)"

    # Only the (small) input needs per-call padding; weights are pre-padded.
    xp = _pad_to(x.astype(jnp.float32), (B, D0))

    if tile_b is None:
        if B <= 128:
            tile_b = 0   # fused path
        else:
            tile_b = next((t for t in (256, 128, 64, 32, 16) if B % t == 0), 0)

    if tile_b:
        assert B % tile_b == 0 and tile_b % 16 == 0
        out = _forward_tiled(xp, prep, tile_b)
    else:
        out = _forward_fused(xp, prep)

    # Kernel output stays lane-dense (7x128). Padded cols 784..895 are exactly
    # 0; consumers that accept the 896-wide slab can skip this slice (it is an
    # extra full-output HBM pass in XLA).
    return out[:, :OUTPUT_SIZE]


# ---------------------------------------------------------------------------
# Pure-JAX reference (matching precision: bf16 matmul inputs, f32 elsewhere)
# ---------------------------------------------------------------------------
def _reference_forward(x, params):
    def lin(h, w, b):
        return jnp.dot(h.astype(jnp.bfloat16), w.astype(jnp.bfloat16),
                       preferred_element_type=jnp.float32) + b

    def bn(h, g, be):
        m = h.mean(0)
        v = ((h - m) ** 2).mean(0)
        return (h - m) * jax.lax.rsqrt(v + BN_EPS) * g + be

    h = bn(_leaky_relu(lin(x, params["w1"], params["b1"])), params["g1"], params["be1"])
    h = bn(_leaky_relu(lin(h, params["w2"], params["b2"])), params["g2"], params["be2"])
    h = bn(_leaky_relu(lin(h, params["w3"], params["b3"])), params["g3"], params["be3"])
    return jnp.tanh(lin(h, params["w4"], params["b4"]))


if __name__ == "__main__":
    key = jax.random.PRNGKey(0)
    pkey, xkey1, xkey2 = jax.random.split(key, 3)
    params = init_params(pkey)
    prep = prepare_params(params)   # one-time pad/pack/bf16 cast

    # --- Small batch: grid-less fused kernel -------------------------------
    B1 = 16
    x1 = jax.random.normal(xkey1, (B1, INPUT_SIZE), jnp.float32)
    y1 = jax.block_until_ready(generator_forward(x1, prep))
    assert y1.shape == (B1, OUTPUT_SIZE), y1.shape
    err1 = float(jnp.max(jnp.abs(y1 - _reference_forward(x1, params))))
    assert err1 < 2e-2, err1

    # --- Larger batch: B-tiled grid path (resident weights, two-pass BN) ---
    B2, TILE_B = 128, 64
    x2 = jax.random.normal(xkey2, (B2, INPUT_SIZE), jnp.float32)
    y2 = jax.block_until_ready(generator_forward(x2, prep, tile_b=TILE_B))
    assert y2.shape == (B2, OUTPUT_SIZE), y2.shape
    err2 = float(jnp.max(jnp.abs(y2 - _reference_forward(x2, params))))
    assert err2 < 2e-2, err2

    print("KERNEL_OK")
</pallas_src>

<mosaic_0001>
module attributes {stable_mosaic.version = 11 : i64} {
  func.func @_fused_kernel(%arg0: memref<16x128xf32, #tpu.memory_space<vmem>>, %arg1: memref<128x256xbf16, #tpu.memory_space<vmem>>, %arg2: memref<3x256xf32, #tpu.memory_space<vmem>>, %arg3: memref<256x512xbf16, #tpu.memory_space<vmem>>, %arg4: memref<3x512xf32, #tpu.memory_space<vmem>>, %arg5: memref<512x1024xbf16, #tpu.memory_space<vmem>>, %arg6: memref<3x1024xf32, #tpu.memory_space<vmem>>, %arg7: memref<1024x896xbf16, #tpu.memory_space<vmem>>, %arg8: memref<1x896xf32, #tpu.memory_space<vmem>>, %arg9: memref<16x896xf32, #tpu.memory_space<vmem>>) attributes {dimension_semantics = [], scalar_prefetch = 0 : i64, scratch_operands = 0 : i64, tpu.core_type = #tpu.core_type<tc>} {
    %c0 = arith.constant 0 : index
    %c0_0 = arith.constant 0 : index
    %0 = vector.load %arg0[%c0, %c0_0] : memref<16x128xf32, #tpu.memory_space<vmem>>, vector<16x128xf32>
    %1 = arith.truncf %0 : vector<16x128xf32> to vector<16x128xbf16>
    %c0_1 = arith.constant 0 : index
    %c0_2 = arith.constant 0 : index
    %2 = vector.load %arg1[%c0_1, %c0_2] : memref<128x256xbf16, #tpu.memory_space<vmem>>, vector<128x256xbf16>
    %cst = arith.constant dense<0.000000e+00> : vector<16x256xf32>
    %3 = tpu.matmul %1, %2, %cst {dimension_numbers = #tpu.dot_dimension_numbers<[1], [0], [0], [1], [0, 0, 1, 1], [], []>} : vector<16x128xbf16>, vector<128x256xbf16>, vector<16x256xf32> -> vector<16x256xf32>
    %c0_3 = arith.constant 0 : index
    %c0_4 = arith.constant 0 : index
    %4 = vector.load %arg2[%c0_3, %c0_4] : memref<3x256xf32, #tpu.memory_space<vmem>>, vector<1x256xf32>
    %5 = vector.broadcast %4 : vector<1x256xf32> to vector<16x256xf32>
    %6 = arith.addf %3, %5 : vector<16x256xf32>
    %cst_5 = arith.constant 2.000000e-01 : f32
    %7 = vector.broadcast %cst_5 : f32 to vector<16x256xf32>
    %8 = arith.mulf %7, %6 : vector<16x256xf32>
    %9 = arith.maximumf %6, %8 : vector<16x256xf32>
    %cst_6 = arith.constant dense<0.000000e+00> : vector<256xf32>
    %10 = vector.multi_reduction <add>, %9, %cst_6 [0] : vector<16x256xf32> to vector<256xf32>
    %11 = vector.shape_cast %10 : vector<256xf32> to vector<1x256xf32>
    %12 = arith.mulf %9, %9 : vector<16x256xf32>
    %cst_7 = arith.constant dense<0.000000e+00> : vector<256xf32>
    %13 = vector.multi_reduction <add>, %12, %cst_7 [0] : vector<16x256xf32> to vector<256xf32>
    %14 = vector.shape_cast %13 : vector<256xf32> to vector<1x256xf32>
    %c1 = arith.constant 1 : index
    %c0_8 = arith.constant 0 : index
    %15 = vector.load %arg2[%c1, %c0_8] : memref<3x256xf32, #tpu.memory_space<vmem>>, vector<1x256xf32>
    %c2 = arith.constant 2 : index
    %c0_9 = arith.constant 0 : index
    %16 = vector.load %arg2[%c2, %c0_9] : memref<3x256xf32, #tpu.memory_space<vmem>>, vector<1x256xf32>
    %cst_10 = arith.constant 6.250000e-02 : f32
    %17 = vector.broadcast %cst_10 : f32 to vector<1x256xf32>
    %18 = arith.mulf %11, %17 : vector<1x256xf32>
    %cst_11 = arith.constant 6.250000e-02 : f32
    %19 = vector.broadcast %cst_11 : f32 to vector<1x256xf32>
    %20 = arith.mulf %14, %19 : vector<1x256xf32>
    %21 = arith.mulf %18, %18 : vector<1x256xf32>
    %22 = arith.subf %20, %21 : vector<1x256xf32>
    %cst_12 = arith.constant 0.000000e+00 : f32
    %23 = vector.broadcast %cst_12 : f32 to vector<1x256xf32>
    %24 = arith.maximumf %22, %23 : vector<1x256xf32>
    %cst_13 = arith.constant 9.99999974E-6 : f32
    %25 = vector.broadcast %cst_13 : f32 to vector<1x256xf32>
    %26 = arith.addf %24, %25 : vector<1x256xf32>
    %27 = math.rsqrt %26 : vector<1x256xf32>
    %28 = arith.mulf %27, %15 : vector<1x256xf32>
    %29 = arith.mulf %18, %28 : vector<1x256xf32>
    %30 = arith.subf %16, %29 : vector<1x256xf32>
    %31 = vector.broadcast %28 : vector<1x256xf32> to vector<16x256xf32>
    %32 = arith.mulf %9, %31 : vector<16x256xf32>
    %33 = vector.broadcast %30 : vector<1x256xf32> to vector<16x256xf32>
    %34 = arith.addf %32, %33 : vector<16x256xf32>
    %35 = arith.truncf %34 : vector<16x256xf32> to vector<16x256xbf16>
    %c0_14 = arith.constant 0 : index
    %c0_15 = arith.constant 0 : index
    %36 = vector.load %arg3[%c0_14, %c0_15] : memref<256x512xbf16, #tpu.memory_space<vmem>>, vector<256x512xbf16>
    %cst_16 = arith.constant dense<0.000000e+00> : vector<16x512xf32>
    %37 = tpu.matmul %35, %36, %cst_16 {dimension_numbers = #tpu.dot_dimension_numbers<[1], [0], [0], [1], [0, 0, 1, 1], [], []>} : vector<16x256xbf16>, vector<256x512xbf16>, vector<16x512xf32> -> vector<16x512xf32>
    %c0_17 = arith.constant 0 : index
    %c0_18 = arith.constant 0 : index
    %38 = vector.load %arg4[%c0_17, %c0_18] : memref<3x512xf32, #tpu.memory_space<vmem>>, vector<1x512xf32>
    %39 = vector.broadcast %38 : vector<1x512xf32> to vector<16x512xf32>
    %40 = arith.addf %37, %39 : vector<16x512xf32>
    %cst_19 = arith.constant 2.000000e-01 : f32
    %41 = vector.broadcast %cst_19 : f32 to vector<16x512xf32>
    %42 = arith.mulf %41, %40 : vector<16x512xf32>
    %43 = arith.maximumf %40, %42 : vector<16x512xf32>
    %cst_20 = arith.constant dense<0.000000e+00> : vector<512xf32>
    %44 = vector.multi_reduction <add>, %43, %cst_20 [0] : vector<16x512xf32> to vector<512xf32>
    %45 = vector.shape_cast %44 : vector<512xf32> to vector<1x512xf32>
    %46 = arith.mulf %43, %43 : vector<16x512xf32>
    %cst_21 = arith.constant dense<0.000000e+00> : vector<512xf32>
    %47 = vector.multi_reduction <add>, %46, %cst_21 [0] : vector<16x512xf32> to vector<512xf32>
    %48 = vector.shape_cast %47 : vector<512xf32> to vector<1x512xf32>
    %c1_22 = arith.constant 1 : index
    %c0_23 = arith.constant 0 : index
    %49 = vector.load %arg4[%c1_22, %c0_23] : memref<3x512xf32, #tpu.memory_space<vmem>>, vector<1x512xf32>
    %c2_24 = arith.constant 2 : index
    %c0_25 = arith.constant 0 : index
    %50 = vector.load %arg4[%c2_24, %c0_25] : memref<3x512xf32, #tpu.memory_space<vmem>>, vector<1x512xf32>
    %cst_26 = arith.constant 6.250000e-02 : f32
    %51 = vector.broadcast %cst_26 : f32 to vector<1x512xf32>
    %52 = arith.mulf %45, %51 : vector<1x512xf32>
    %cst_27 = arith.constant 6.250000e-02 : f32
    %53 = vector.broadcast %cst_27 : f32 to vector<1x512xf32>
    %54 = arith.mulf %48, %53 : vector<1x512xf32>
    %55 = arith.mulf %52, %52 : vector<1x512xf32>
    %56 = arith.subf %54, %55 : vector<1x512xf32>
    %cst_28 = arith.constant 0.000000e+00 : f32
    %57 = vector.broadcast %cst_28 : f32 to vector<1x512xf32>
    %58 = arith.maximumf %56, %57 : vector<1x512xf32>
    %cst_29 = arith.constant 9.99999974E-6 : f32
    %59 = vector.broadcast %cst_29 : f32 to vector<1x512xf32>
    %60 = arith.addf %58, %59 : vector<1x512xf32>
    %61 = math.rsqrt %60 : vector<1x512xf32>
    %62 = arith.mulf %61, %49 : vector<1x512xf32>
    %63 = arith.mulf %52, %62 : vector<1x512xf32>
    %64 = arith.subf %50, %63 : vector<1x512xf32>
    %65 = vector.broadcast %62 : vector<1x512xf32> to vector<16x512xf32>
    %66 = arith.mulf %43, %65 : vector<16x512xf32>
    %67 = vector.broadcast %64 : vector<1x512xf32> to vector<16x512xf32>
    %68 = arith.addf %66, %67 : vector<16x512xf32>
    %69 = arith.truncf %68 : vector<16x512xf32> to vector<16x512xbf16>
    %c0_30 = arith.constant 0 : index
    %c0_31 = arith.constant 0 : index
    %70 = vector.load %arg5[%c0_30, %c0_31] : memref<512x1024xbf16, #tpu.memory_space<vmem>>, vector<512x1024xbf16>
    %cst_32 = arith.constant dense<0.000000e+00> : vector<16x1024xf32>
    %71 = tpu.matmul %69, %70, %cst_32 {dimension_numbers = #tpu.dot_dimension_numbers<[1], [0], [0], [1], [0, 0, 1, 1], [], []>} : vector<16x512xbf16>, vector<512x1024xbf16>, vector<16x1024xf32> -> vector<16x1024xf32>
    %c0_33 = arith.constant 0 : index
    %c0_34 = arith.constant 0 : index
    %72 = vector.load %arg6[%c0_33, %c0_34] : memref<3x1024xf32, #tpu.memory_space<vmem>>, vector<1x1024xf32>
    %73 = vector.broadcast %72 : vector<1x1024xf32> to vector<16x1024xf32>
    %74 = arith.addf %71, %73 : vector<16x1024xf32>
    %cst_35 = arith.constant 2.000000e-01 : f32
    %75 = vector.broadcast %cst_35 : f32 to vector<16x1024xf32>
    %76 = arith.mulf %75, %74 : vector<16x1024xf32>
    %77 = arith.maximumf %74, %76 : vector<16x1024xf32>
    %cst_36 = arith.constant dense<0.000000e+00> : vector<1024xf32>
    %78 = vector.multi_reduction <add>, %77, %cst_36 [0] : vector<16x1024xf32> to vector<1024xf32>
    %79 = vector.shape_cast %78 : vector<1024xf32> to vector<1x1024xf32>
    %80 = arith.mulf %77, %77 : vector<16x1024xf32>
    %cst_37 = arith.constant dense<0.000000e+00> : vector<1024xf32>
    %81 = vector.multi_reduction <add>, %80, %cst_37 [0] : vector<16x1024xf32> to vector<1024xf32>
    %82 = vector.shape_cast %81 : vector<1024xf32> to vector<1x1024xf32>
    %c1_38 = arith.constant 1 : index
    %c0_39 = arith.constant 0 : index
    %83 = vector.load %arg6[%c1_38, %c0_39] : memref<3x1024xf32, #tpu.memory_space<vmem>>, vector<1x1024xf32>
    %c2_40 = arith.constant 2 : index
    %c0_41 = arith.constant 0 : index
    %84 = vector.load %arg6[%c2_40, %c0_41] : memref<3x1024xf32, #tpu.memory_space<vmem>>, vector<1x1024xf32>
    %cst_42 = arith.constant 6.250000e-02 : f32
    %85 = vector.broadcast %cst_42 : f32 to vector<1x1024xf32>
    %86 = arith.mulf %79, %85 : vector<1x1024xf32>
    %cst_43 = arith.constant 6.250000e-02 : f32
    %87 = vector.broadcast %cst_43 : f32 to vector<1x1024xf32>
    %88 = arith.mulf %82, %87 : vector<1x1024xf32>
    %89 = arith.mulf %86, %86 : vector<1x1024xf32>
    %90 = arith.subf %88, %89 : vector<1x1024xf32>
    %cst_44 = arith.constant 0.000000e+00 : f32
    %91 = vector.broadcast %cst_44 : f32 to vector<1x1024xf32>
    %92 = arith.maximumf %90, %91 : vector<1x1024xf32>
    %cst_45 = arith.constant 9.99999974E-6 : f32
    %93 = vector.broadcast %cst_45 : f32 to vector<1x1024xf32>
    %94 = arith.addf %92, %93 : vector<1x1024xf32>
    %95 = math.rsqrt %94 : vector<1x1024xf32>
    %96 = arith.mulf %95, %83 : vector<1x1024xf32>
    %97 = arith.mulf %86, %96 : vector<1x1024xf32>
    %98 = arith.subf %84, %97 : vector<1x1024xf32>
    %99 = vector.broadcast %96 : vector<1x1024xf32> to vector<16x1024xf32>
    %100 = arith.mulf %77, %99 : vector<16x1024xf32>
    %101 = vector.broadcast %98 : vector<1x1024xf32> to vector<16x1024xf32>
    %102 = arith.addf %100, %101 : vector<16x1024xf32>
    %103 = arith.truncf %102 : vector<16x1024xf32> to vector<16x1024xbf16>
    %c0_46 = arith.constant 0 : index
    %c0_47 = arith.constant 0 : index
    %104 = vector.load %arg7[%c0_46, %c0_47] : memref<1024x896xbf16, #tpu.memory_space<vmem>>, vector<1024x896xbf16>
    %cst_48 = arith.constant dense<0.000000e+00> : vector<16x896xf32>
    %105 = tpu.matmul %103, %104, %cst_48 {dimension_numbers = #tpu.dot_dimension_numbers<[1], [0], [0], [1], [0, 0, 1, 1], [], []>} : vector<16x1024xbf16>, vector<1024x896xbf16>, vector<16x896xf32> -> vector<16x896xf32>
    %c0_49 = arith.constant 0 : index
    %c0_50 = arith.constant 0 : index
    %106 = vector.load %arg8[%c0_49, %c0_50] : memref<1x896xf32, #tpu.memory_space<vmem>>, vector<1x896xf32>
    %107 = vector.broadcast %106 : vector<1x896xf32> to vector<16x896xf32>
    %108 = arith.addf %105, %107 : vector<16x896xf32>
    %109 = math.tanh %108 : vector<16x896xf32>
    %c0_51 = arith.constant 0 : index
    %c0_52 = arith.constant 0 : index
    %110 = vector.load %arg9[%c0_51, %c0_52] : memref<16x896xf32, #tpu.memory_space<vmem>>, vector<16x896xf32>
    tpu.vector_store %arg9[%c0_51, %c0_52], %109 {strides = array<i32>} : memref<16x896xf32, #tpu.memory_space<vmem>>, vector<16x896xf32>,
    return
  }
}

</mosaic_0001>

<llo_original>
// kernel: generator_forward.1
$region0: #{generator_forward.1}
  #allocation0 [shape = 'u32[]', space=smem, size = 0x4, offset = 0x4, fixed_abs, tag = 'smem constant byte address 0x4 - core index']
  #allocation1 [shape = 'u32[144,128]{1,0:T(1,128)}', space=vmem, size = 0x12000, scoped, tag = 'internal scratch']
  %s0 = inlined_call_operand.vmem [shape: f32[16,128], index: 0, kind: input, shape index: {}]
  %s1 = inlined_call_operand.hbm [shape: bf16[128,256], index: 1, kind: input, shape index: {}]
  %s2 = inlined_call_operand.hbm [shape: f32[3,256], index: 2, kind: input, shape index: {}]
  %s3 = inlined_call_operand.hbm [shape: bf16[256,512], index: 3, kind: input, shape index: {}]
  %s4 = inlined_call_operand.hbm [shape: f32[3,512], index: 4, kind: input, shape index: {}]
  %s5 = inlined_call_operand.hbm [shape: bf16[512,1024], index: 5, kind: input, shape index: {}]
  %s6 = inlined_call_operand.hbm [shape: f32[3,1024], index: 6, kind: input, shape index: {}]
  %s7 = inlined_call_operand.hbm [shape: bf16[1024,896], index: 7, kind: input, shape index: {}]
  %s8 = inlined_call_operand.hbm [shape: f32[1,896], index: 8, kind: input, shape index: {}]
  %s9 = inlined_call_operand.hbm [shape: f32[16,896], index: 9, kind: output, shape index: {}]
  %s10 = sld [smem:[#allocation0]]
  $region78: #{generator_forward.1} parent=0
    _
  %s12 = ssub.s32 1, %s10
  %s13 = scalar_select 0, %s12, %s10
  $region1: #{generator_forward.1} parent=0
    #allocation2 [shape = 'u8[65536]{0}', space=vmem, size = 0x10000, scoped, tag = 'input window, operand 1, single buffered']
    #allocation3 [shape = 's32[1]{0}', space=sflag, size = 0x4, scoped, tag = 'scoped memory for generator_forward.1']
    #allocation4 [shape = 's32[1]{0}', space=sflag, size = 0x4, scoped, tag = 'scoped memory for generator_forward.1']
    #allocation5 [shape = 'u8[4096]{0}', space=vmem, size = 0x1000, scoped, tag = 'input window, operand 2, single buffered']
    #allocation6 [shape = 's32[1]{0}', space=sflag, size = 0x4, scoped, tag = 'scoped memory for generator_forward.1']
    #allocation7 [shape = 'u8[262144]{0}', space=vmem, size = 0x40000, scoped, tag = 'input window, operand 3, single buffered']
    #allocation8 [shape = 'u8[8192]{0}', space=vmem, size = 0x2000, scoped, tag = 'input window, operand 4, single buffered']
    #allocation9 [shape = 's32[1]{0}', space=sflag, size = 0x4, scoped, tag = 'scoped memory for generator_forward.1']
    #allocation10 [shape = 'u8[1048576]{0}', space=vmem, size = 0x100000, scoped, tag = 'input window, operand 5, single buffered']
    #allocation11 [shape = 'u8[16384]{0}', space=vmem, size = 0x4000, scoped, tag = 'input window, operand 6, single buffered']
    #allocation12 [shape = 's32[1]{0}', space=sflag, size = 0x4, scoped, tag = 'scoped memory for generator_forward.1']
    #allocation13 [shape = 'u8[1835008]{0}', space=vmem, size = 0x1c0000, scoped, tag = 'input window, operand 7, single buffered']
    #allocation14 [shape = 'u8[3584]{0}', space=vmem, size = 0x1000, scoped, tag = 'input window, operand 8, single buffered']
    #allocation15 [shape = 's32[1]{0}', space=sflag, size = 0x4, scoped, tag = 'scoped memory for generator_forward.1']
    #allocation16 [shape = 'u8[57344]{0}', space=vmem, size = 0xe000, scoped, tag = 'output window, operand 0, single buffered']
    %14 = vsyncpa [#allocation3], 0
    %15 = vsyncpa [#allocation6], 0
    %16 = vsyncpa [#allocation9], 0
    %17 = vsyncpa [#allocation12], 0
    %18 = vsyncpa [#allocation15], 0
    %19 = vsyncpa [#allocation4], 0
    // Predicated region
    $region2: #{generator_forward.1} parent=1 // pred_check
      _
    $region3: #{generator_forward.1} parent=1 // pred_check_branch
      %21 = sbr.rel (0) target = $region5
    $region4: #{generator_forward.1} parent=1 // pred_region
      _
    $region5: #{generator_forward.1} parent=1 // pred_fallthru
      _
    // Predicated region
    $region6: #{generator_forward.1} parent=1 // pred_check
      _
    $region7: #{generator_forward.1} parent=1 // pred_check_branch
      %23 = sbr.rel (0) target = $region9
    $region8: #{generator_forward.1} parent=1 // pred_region
      %s25 = ssub.s32 2048, 2048
      %26 = vsyncadd [#allocation3], %s25
      %s27 = sshll.u32 [#allocation2], 4
      %s28 = int_to_ptr.vmem [resolvable:$true] %s27
      %33 = dma.hbm_to_vmem [thread:$0]  %s1, 2048, %s28, [#allocation3], 128, 128, 8
    $region9: #{generator_forward.1} parent=1 // pred_fallthru
      _
    // Predicated region
    $region10: #{generator_forward.1} parent=1 // pred_check
      _
    $region11: #{generator_forward.1} parent=1 // pred_check_branch
      %35 = sbr.rel (0) target = $region13
    $region12: #{generator_forward.1} parent=1 // pred_region
      %s37 = ssub.s32 128, 128
      %38 = vsyncadd [#allocation6], %s37
      %s40 = sshll.u32 [#allocation5], 4
      %s41 = int_to_ptr.vmem [resolvable:$true] %s40
      %43 = dma.hbm_to_vmem [thread:$0]  %s2, 128, %s41, [#allocation6]
    $region13: #{generator_forward.1} parent=1 // pred_fallthru
      _
    // Predicated region
    $region14: #{generator_forward.1} parent=1 // pred_check
      _
    $region15: #{generator_forward.1} parent=1 // pred_check_branch
      %45 = sbr.rel (0) target = $region17
    $region16: #{generator_forward.1} parent=1 // pred_region
      %s47 = ssub.s32 8192, 8192
      %48 = vsyncadd [#allocation6], %s47
      %s49 = sshll.u32 [#allocation7], 4
      %s50 = int_to_ptr.vmem [resolvable:$true] %s49
      %55 = dma.hbm_to_vmem [thread:$0]  %s3, 8192, %s50, [#allocation6], 256, 256, 16
    $region17: #{generator_forward.1} parent=1 // pred_fallthru
      _
    // Predicated region
    $region18: #{generator_forward.1} parent=1 // pred_check
      _
    $region19: #{generator_forward.1} parent=1 // pred_check_branch
      %57 = sbr.rel (0) target = $region21
    $region20: #{generator_forward.1} parent=1 // pred_region
      %s59 = ssub.s32 256, 256
      %60 = vsyncadd [#allocation9], %s59
      %s62 = sshll.u32 [#allocation8], 4
      %s63 = int_to_ptr.vmem [resolvable:$true] %s62
      %65 = dma.hbm_to_vmem [thread:$0]  %s4, 256, %s63, [#allocation9]
    $region21: #{generator_forward.1} parent=1 // pred_fallthru
      _
    // Predicated region
    $region22: #{generator_forward.1} parent=1 // pred_check
      _
    $region23: #{generator_forward.1} parent=1 // pred_check_branch
      %67 = sbr.rel (0) target = $region25
    $region24: #{generator_forward.1} parent=1 // pred_region
      %s69 = ssub.s32 32768, 32768
      %70 = vsyncadd [#allocation9], %s69
      %s71 = sshll.u32 [#allocation10], 4
      %s72 = int_to_ptr.vmem [resolvable:$true] %s71
      %77 = dma.hbm_to_vmem [thread:$0]  %s5, 32768, %s72, [#allocation9], 512, 512, 32
    $region25: #{generator_forward.1} parent=1 // pred_fallthru
      _
    // Predicated region
    $region26: #{generator_forward.1} parent=1 // pred_check
      _
    $region27: #{generator_forward.1} parent=1 // pred_check_branch
      %79 = sbr.rel (0) target = $region29
    $region28: #{generator_forward.1} parent=1 // pred_region
      %s81 = ssub.s32 512, 512
      %82 = vsyncadd [#allocation12], %s81
      %s84 = sshll.u32 [#allocation11], 4
      %s85 = int_to_ptr.vmem [resolvable:$true] %s84
      %87 = dma.hbm_to_vmem [thread:$0]  %s6, 512, %s85, [#allocation12]
    $region29: #{generator_forward.1} parent=1 // pred_fallthru
      _
    // Predicated region
    $region30: #{generator_forward.1} parent=1 // pred_check
      _
    $region31: #{generator_forward.1} parent=1 // pred_check_branch
      %89 = sbr.rel (0) target = $region33
    $region32: #{generator_forward.1} parent=1 // pred_region
      %s91 = ssub.s32 57344, 57344
      %92 = vsyncadd [#allocation12], %s91
      %s93 = sshll.u32 [#allocation13], 4
      %s94 = int_to_ptr.vmem [resolvable:$true] %s93
      %99 = dma.hbm_to_vmem [thread:$0]  %s7, 57344, %s94, [#allocation12], 448, 448, 28
    $region33: #{generator_forward.1} parent=1 // pred_fallthru
      _
    // Predicated region
    $region34: #{generator_forward.1} parent=1 // pred_check
      _
    $region35: #{generator_forward.1} parent=1 // pred_check_branch
      %101 = sbr.rel (0) target = $region37
    $region36: #{generator_forward.1} parent=1 // pred_region
      %s103 = ssub.s32 112, 112
      %104 = vsyncadd [#allocation15], %s103
      %s106 = sshll.u32 [#allocation14], 4
      %s107 = int_to_ptr.vmem [resolvable:$true] %s106
      %109 = dma.hbm_to_vmem [thread:$0]  %s8, 112, %s107, [#allocation15]
    $region37: #{generator_forward.1} parent=1 // pred_fallthru
      _
    // Predicated region
    $region38: #{generator_forward.1} parent=1 // pred_check
      _
    $region39: #{generator_forward.1} parent=1 // pred_check_branch
      %111 = sbr.rel (0) target = $region41
    $region40: #{generator_forward.1} parent=1 // pred_region
      %112 = dma.done [#allocation3], 2048
    $region41: #{generator_forward.1} parent=1 // pred_fallthru
      _
    // Predicated region
    $region42: #{generator_forward.1} parent=1 // pred_check
      _
    $region43: #{generator_forward.1} parent=1 // pred_check_branch
      %114 = sbr.rel (0) target = $region45
    $region44: #{generator_forward.1} parent=1 // pred_region
      %115 = dma.done [#allocation6], 128
    $region45: #{generator_forward.1} parent=1 // pred_fallthru
      _
    // Predicated region
    $region46: #{generator_forward.1} parent=1 // pred_check
      _
    $region47: #{generator_forward.1} parent=1 // pred_check_branch
      %117 = sbr.rel (0) target = $region49
    $region48: #{generator_forward.1} parent=1 // pred_region
      %118 = dma.done [#allocation6], 8192
    $region49: #{generator_forward.1} parent=1 // pred_fallthru
      _
    // Predicated region
    $region50: #{generator_forward.1} parent=1 // pred_check
      _
    $region51: #{generator_forward.1} parent=1 // pred_check_branch
      %120 = sbr.rel (0) target = $region53
    $region52: #{generator_forward.1} parent=1 // pred_region
      %121 = dma.done [#allocation9], 256
    $region53: #{generator_forward.1} parent=1 // pred_fallthru
      _
    // Predicated region
    $region54: #{generator_forward.1} parent=1 // pred_check
      _
    $region55: #{generator_forward.1} parent=1 // pred_check_branch
      %123 = sbr.rel (0) target = $region57
    $region56: #{generator_forward.1} parent=1 // pred_region
      %124 = dma.done [#allocation9], 32768
    $region57: #{generator_forward.1} parent=1 // pred_fallthru
      _
    // Predicated region
    $region58: #{generator_forward.1} parent=1 // pred_check
      _
    $region59: #{generator_forward.1} parent=1 // pred_check_branch
      %126 = sbr.rel (0) target = $region61
    $region60: #{generator_forward.1} parent=1 // pred_region
      %127 = dma.done [#allocation12], 512
    $region61: #{generator_forward.1} parent=1 // pred_fallthru
      _
    // Predicated region
    $region62: #{generator_forward.1} parent=1 // pred_check
      _
    $region63: #{generator_forward.1} parent=1 // pred_check_branch
      %129 = sbr.rel (0) target = $region65
    $region64: #{generator_forward.1} parent=1 // pred_region
      %130 = dma.done [#allocation12], 57344
    $region65: #{generator_forward.1} parent=1 // pred_fallthru
      _
    // Predicated region
    $region66: #{generator_forward.1} parent=1 // pred_check
      _
    $region67: #{generator_forward.1} parent=1 // pred_check_branch
      %132 = sbr.rel (0) target = $region69
    $region68: #{generator_forward.1} parent=1 // pred_region
      %133 = dma.done [#allocation15], 112
    $region69: #{generator_forward.1} parent=1 // pred_fallthru
      _
    %v135 = vld [vmem:[%s0] sm:$0xff]
    %v136 = vld [vmem:[%s0 + $0x8] sm:$0xff]
    %v137 = vpack.c.bf16 %v136, %v135
    %v138 = vld [vmem:[#allocation2] sm:$0xff]
    %v139 = vld [vmem:[#allocation2 + $0x8] sm:$0xff]
    %v140 = vld [vmem:[#allocation2 + $0x10] sm:$0xff]
    %v141 = vld [vmem:[#allocation2 + $0x18] sm:$0xff]
    %v142 = vld [vmem:[#allocation2 + $0x20] sm:$0xff]
    %v143 = vld [vmem:[#allocation2 + $0x28] sm:$0xff]
    %v144 = vld [vmem:[#allocation2 + $0x30] sm:$0xff]
    %v145 = vld [vmem:[#allocation2 + $0x38] sm:$0xff]
    %v146 = vld [vmem:[#allocation2 + $0x40] sm:$0xff]
    %v147 = vld [vmem:[#allocation2 + $0x48] sm:$0xff]
    %v148 = vld [vmem:[#allocation2 + $0x50] sm:$0xff]
    %v149 = vld [vmem:[#allocation2 + $0x58] sm:$0xff]
    %v150 = vld [vmem:[#allocation2 + $0x60] sm:$0xff]
    %v151 = vld [vmem:[#allocation2 + $0x68] sm:$0xff]
    %v152 = vld [vmem:[#allocation2 + $0x70] sm:$0xff]
    %v153 = vld [vmem:[#allocation2 + $0x78] sm:$0xff]
    %v154 = vld [vmem:[#allocation5] ss:$4 sm:$0x3]
    %v156 = vlaneseq
    %v157 = vshrl.u32 %v156, 7
    %v158 = vsub.s32 0, %v157
    %v159 = vrot.slane %v154, %v158
    %v160 = vlaneseq
    %v161 = vshrl.u32 %v160, 7
    %v162 = vsub.s32 1, %v161
    %v163 = vrot.slane %v154, %v162
    %v182 = vunpack.c.l.b16 %v138
    %v183 = vunpack.c.h.b16 %v138
    %v184 = vunpack.c.l.b16 %v139
    %v185 = vunpack.c.h.b16 %v139
    %v186 = vunpack.c.l.b16 %v140
    %v187 = vunpack.c.h.b16 %v140
    %v188 = vunpack.c.l.b16 %v141
    %v189 = vunpack.c.h.b16 %v141
    %v190 = vunpack.c.l.b16 %v142
    %v191 = vunpack.c.h.b16 %v142
    %v192 = vunpack.c.l.b16 %v143
    %v193 = vunpack.c.h.b16 %v143
    %v194 = vunpack.c.l.b16 %v144
    %v195 = vunpack.c.h.b16 %v144
    %v196 = vunpack.c.l.b16 %v145
    %v197 = vunpack.c.h.b16 %v145
    %v198 = vunpack.c.l.b16 %v146
    %v199 = vunpack.c.h.b16 %v146
    %v200 = vunpack.c.l.b16 %v147
    %v201 = vunpack.c.h.b16 %v147
    %v202 = vunpack.c.l.b16 %v148
    %v203 = vunpack.c.h.b16 %v148
    %v204 = vunpack.c.l.b16 %v149
    %v205 = vunpack.c.h.b16 %v149
    %v206 = vunpack.c.l.b16 %v150
    %v207 = vunpack.c.h.b16 %v150
    %v208 = vunpack.c.l.b16 %v151
    %v209 = vunpack.c.h.b16 %v151
    %v210 = vunpack.c.l.b16 %v152
    %v211 = vunpack.c.h.b16 %v152
    %v212 = vunpack.c.l.b16 %v153
    %v213 = vunpack.c.h.b16 %v153
    %v214 = vpack.c.b16 %v184, %v182
    %v215 = vpack.c.b16 %v185, %v183
    %v216 = vpack.c.b16 %v188, %v186
    %v217 = vpack.c.b16 %v189, %v187
    %v218 = vpack.c.b16 %v192, %v190
    %v219 = vpack.c.b16 %v193, %v191
    %v220 = vpack.c.b16 %v196, %v194
    %v221 = vpack.c.b16 %v197, %v195
    %v222 = vpack.c.b16 %v200, %v198
    %v223 = vpack.c.b16 %v201, %v199
    %v224 = vpack.c.b16 %v204, %v202
    %v225 = vpack.c.b16 %v205, %v203
    %v226 = vpack.c.b16 %v208, %v206
    %v227 = vpack.c.b16 %v209, %v207
    %v228 = vpack.c.b16 %v212, %v210
    %v229 = vpack.c.b16 %v213, %v211
    %246 = vmatprep.subr.bf16.mxu0 %v215
    %247 = vmatpush1.bf16.msra.mxu0 %v214
    %248 = vmatprep.subr.bf16.mxu0 %v217
    %249 = vmatpush1.bf16.msra.mxu0 %v216
    %250 = vmatprep.subr.bf16.mxu0 %v219
    %251 = vmatpush1.bf16.msra.mxu0 %v218
    %252 = vmatprep.subr.bf16.mxu0 %v221
    %253 = vmatpush1.bf16.msra.mxu0 %v220
    %254 = vmatprep.subr.bf16.mxu0 %v223
    %255 = vmatpush1.bf16.msra.mxu0 %v222
    %256 = vmatprep.subr.bf16.mxu0 %v225
    %257 = vmatpush1.bf16.msra.mxu0 %v224
    %258 = vmatprep.subr.bf16.mxu0 %v227
    %259 = vmatpush1.bf16.msra.mxu0 %v226
    %260 = vmatprep.subr.bf16.mxu0 %v229
    %261 = vmatpush1.bf16.msra.mxu0 %v228
    %262 = vmatprep.subr.bf16.mxu0 0
    %263 = vmatpush1.bf16.msra.mxu0 0
    %264 = vmatprep.subr.bf16.mxu0 0
    %265 = vmatpush1.bf16.msra.mxu0 0
    %266 = vmatprep.subr.bf16.mxu0 0
    %267 = vmatpush1.bf16.msra.mxu0 0
    %268 = vmatprep.subr.bf16.mxu0 0
    %269 = vmatpush1.bf16.msra.mxu0 0
    %270 = vmatprep.subr.bf16.mxu0 0
    %271 = vmatpush1.bf16.msra.mxu0 0
    %272 = vmatprep.subr.bf16.mxu0 0
    %273 = vmatpush1.bf16.msra.mxu0 0
    %274 = vmatprep.subr.bf16.mxu0 0
    %275 = vmatpush1.bf16.msra.mxu0 0
    %276 = vmatprep.subr.bf16.mxu0 0
    %277 = vmatpush1.bf16.msra.mxu0 0
    %278 = vmatprep.mubr.bf16.mxu0 0
    %279 = vmatmul.mubr.bf16.gmra.mrb[0].mxu0 %v137
    %v280 = vpop.f32.mrb[0].mxu0
    %v281 = vadd.f32 %v159, %v280
    %v282 = vpop.f32.mrb[0].mxu0
    %v283 = vadd.f32 %v163, %v282
    %v284 = vpop.f32.mrb[0].mxu0
    %v285 = vadd.f32 %v159, %v284
    %v286 = vpop.f32.mrb[0].mxu0
    %v287 = vadd.f32 %v163, %v286
    %288 = vdwg.mxu0
    %v289 = vmul.f32 %v281, 0.2
    %v290 = vmul.f32 %v283, 0.2
    %v291 = vmul.f32 %v285, 0.2
    %v292 = vmul.f32 %v287, 0.2
    %v293 = vmax.f32 %v281, %v289
    %v294 = vmax.f32 %v283, %v290
    %v295 = vmax.f32 %v285, %v291
    %v296 = vmax.f32 %v287, %v292
    %v297 = vadd.f32 %v293, %v295
    %v298 = vrot.slane %v297, 4
    %v299 = vadd.f32 %v297, %v298
    %v300 = vrot.slane %v299, 2
    %v301 = vadd.f32 %v299, %v300
    %v302 = vrot.slane %v301, 1
    %v303 = vadd.f32 %v301, %v302
    %v304 = vadd.f32 %v294, %v296
    %v305 = vrot.slane %v304, 4
    %v306 = vadd.f32 %v304, %v305
    %v307 = vrot.slane %v306, 2
    %v308 = vadd.f32 %v306, %v307
    %v309 = vrot.slane %v308, 1
    %v310 = vadd.f32 %v308, %v309
    %v311 = vmul.f32 %v293, %v293
    %v312 = vmul.f32 %v294, %v294
    %v313 = vmul.f32 %v295, %v295
    %v314 = vmul.f32 %v296, %v296
    %v315 = vadd.f32 %v311, %v313
    %v316 = vrot.slane %v315, 4
    %v317 = vadd.f32 %v315, %v316
    %v318 = vrot.slane %v317, 2
    %v319 = vadd.f32 %v317, %v318
    %v320 = vrot.slane %v319, 1
    %v321 = vadd.f32 %v319, %v320
    %v322 = vadd.f32 %v312, %v314
    %v323 = vrot.slane %v322, 4
    %v324 = vadd.f32 %v322, %v323
    %v325 = vrot.slane %v324, 2
    %v326 = vadd.f32 %v324, %v325
    %v327 = vrot.slane %v326, 1
    %v328 = vadd.f32 %v326, %v327
    %s329 = scalar_lea.vmem [#allocation5], 1
    %v330 = vld [vmem:[%s329] ss:$4 sm:$0x3]
    %s331 = scalar_lea.vmem [#allocation5], 2
    %v332 = vld [vmem:[%s331] ss:$4 sm:$0x3]
    %v333 = vmul.f32 %v303, 0.0625
    %v334 = vmul.f32 %v310, 0.0625
    %v335 = vmul.f32 %v321, 0.0625
    %v336 = vmul.f32 %v328, 0.0625
    %v337 = vmul.f32 %v333, %v333
    %v338 = vmul.f32 %v334, %v334
    %v339 = vsub.f32 %v335, %v337
    %v340 = vsub.f32 %v336, %v338
    %v341 = vmax.f32 %v339, 0.0
    %v342 = vmax.f32 %v340, 0.0
    %v343 = vadd.f32 %v341, 1e-05
    %v344 = vadd.f32 %v342, 1e-05
    %v345 = vrsqrt.pop %v343
    %v346 = vrsqrt.pop %v344
    %v348 = vlaneseq
    %v349 = vshrl.u32 %v348, 7
    %v350 = vsub.s32 0, %v349
    %v351 = vrot.slane %v330, %v350
    %v352 = vlaneseq
    %v353 = vshrl.u32 %v352, 7
    %v354 = vsub.s32 1, %v353
    %v355 = vrot.slane %v330, %v354
    %v358 = vmul.f32 %v345, %v351
    %v359 = vmul.f32 %v346, %v355
    %v360 = vmul.f32 %v333, %v358
    %v361 = vmul.f32 %v334, %v359
    %v364 = vcombine.low %v360, %v361
    %v366 = vunpack.c.l.s4 1966171168
    %v367 = vunpack.c.0.s8 %v366
    %v368 = vlaneseq
    %v369 = vshrl.u32 %v368, 7
    %v370 = vsub.s32 %v367, %v369
    %v371 = vrot.slane %v364, %v370
    %v373 = vunpack.c.l.s4 1966171168
    %v374 = vunpack.c.0.s8 %v373
    %v375 = vlaneseq
    %v376 = vshrl.u32 %v375, 7
    %v377 = vsub.s32 %v374, %v376
    %v378 = vrot.slane %v371, %v377
    %v380 = vsub.f32 %v332, %v378
    %v381 = vlaneseq
    %v382 = vshrl.u32 %v381, 7
    %v383 = vsub.s32 0, %v382
    %v384 = vrot.slane %v358, %v383
    %v385 = vlaneseq
    %v386 = vshrl.u32 %v385, 7
    %v387 = vsub.s32 0, %v386
    %v388 = vrot.slane %v359, %v387
    %v389 = vmul.f32 %v293, %v384
    %v390 = vmul.f32 %v294, %v388
    %v391 = vmul.f32 %v295, %v384
    %v392 = vmul.f32 %v296, %v388
    %v394 = vlaneseq
    %v395 = vshrl.u32 %v394, 7
    %v396 = vsub.s32 0, %v395
    %v397 = vrot.slane %v380, %v396
    %v398 = vlaneseq
    %v399 = vshrl.u32 %v398, 7
    %v400 = vsub.s32 1, %v399
    %v401 = vrot.slane %v380, %v400
    %v404 = vadd.f32 %v389, %v397
    %v405 = vadd.f32 %v390, %v401
    %v406 = vadd.f32 %v391, %v397
    %v407 = vadd.f32 %v392, %v401
    %v408 = vpack.c.bf16 %v406, %v404
    %v409 = vpack.c.bf16 %v407, %v405
    %v410 = vld [vmem:[#allocation7] sm:$0xff]
    %v411 = vld [vmem:[#allocation7 + $0x8] sm:$0xff]
    %v412 = vld [vmem:[#allocation7 + $0x10] sm:$0xff]
    %v413 = vld [vmem:[#allocation7 + $0x18] sm:$0xff]
    %v414 = vld [vmem:[#allocation7 + $0x20] sm:$0xff]
    %v415 = vld [vmem:[#allocation7 + $0x28] sm:$0xff]
    %v416 = vld [vmem:[#allocation7 + $0x30] sm:$0xff]
    %v417 = vld [vmem:[#allocation7 + $0x38] sm:$0xff]
    %v418 = vld [vmem:[#allocation7 + $0x40] sm:$0xff]
    %v419 = vld [vmem:[#allocation7 + $0x48] sm:$0xff]
    %v420 = vld [vmem:[#allocation7 + $0x50] sm:$0xff]
    %v421 = vld [vmem:[#allocation7 + $0x58] sm:$0xff]
    %v422 = vld [vmem:[#allocation7 + $0x60] sm:$0xff]
    %v423 = vld [vmem:[#allocation7 + $0x68] sm:$0xff]
    %v424 = vld [vmem:[#allocation7 + $0x70] sm:$0xff]
    %v425 = vld [vmem:[#allocation7 + $0x78] sm:$0xff]
    %v426 = vld [vmem:[#allocation7 + $0x80] sm:$0xff]
    %v427 = vld [vmem:[#allocation7 + $0x88] sm:$0xff]
    %v428 = vld [vmem:[#allocation7 + $0x90] sm:$0xff]
    %v429 = vld [vmem:[#allocation7 + $0x98] sm:$0xff]
    %v430 = vld [vmem:[#allocation7 + $0xa0] sm:$0xff]
    %v431 = vld [vmem:[#allocation7 + $0xa8] sm:$0xff]
    %v432 = vld [vmem:[#allocation7 + $0xb0] sm:$0xff]
    %v433 = vld [vmem:[#allocation7 + $0xb8] sm:$0xff]
    %v434 = vld [vmem:[#allocation7 + $0xc0] sm:$0xff]
    %v435 = vld [vmem:[#allocation7 + $0xc8] sm:$0xff]
    %v436 = vld [vmem:[#allocation7 + $0xd0] sm:$0xff]
    %v437 = vld [vmem:[#allocation7 + $0xd8] sm:$0xff]
    %v438 = vld [vmem:[#allocation7 + $0xe0] sm:$0xff]
    %v439 = vld [vmem:[#allocation7 + $0xe8] sm:$0xff]
    %v440 = vld [vmem:[#allocation7 + $0xf0] sm:$0xff]
    %v441 = vld [vmem:[#allocation7 + $0xf8] sm:$0xff]
    %v442 = vld [vmem:[#allocation7 + $0x100] sm:$0xff]
    %v443 = vld [vmem:[#allocation7 + $0x108] sm:$0xff]
    %v444 = vld [vmem:[#allocation7 + $0x110] sm:$0xff]
    %v445 = vld [vmem:[#allocation7 + $0x118] sm:$0xff]
    %v446 = vld [vmem:[#allocation7 + $0x120] sm:$0xff]
    %v447 = vld [vmem:[#allocation7 + $0x128] sm:$0xff]
    %v448 = vld [vmem:[#allocation7 + $0x130] sm:$0xff]
    %v449 = vld [vmem:[#allocation7 + $0x138] sm:$0xff]
    %v450 = vld [vmem:[#allocation7 + $0x140] sm:$0xff]
    %v451 = vld [vmem:[#allocation7 + $0x148] sm:$0xff]
    %v452 = vld [vmem:[#allocation7 + $0x150] sm:$0xff]
    %v453 = vld [vmem:[#allocation7 + $0x158] sm:$0xff]
    %v454 = vld [vmem:[#allocation7 + $0x160] sm:$0xff]
    %v455 = vld [vmem:[#allocation7 + $0x168] sm:$0xff]
    %v456 = vld [vmem:[#allocation7 + $0x170] sm:$0xff]
    %v457 = vld [vmem:[#allocation7 + $0x178] sm:$0xff]
    %v458 = vld [vmem:[#allocation7 + $0x180] sm:$0xff]
    %v459 = vld [vmem:[#allocation7 + $0x188] sm:$0xff]
    %v460 = vld [vmem:[#allocation7 + $0x190] sm:$0xff]
    %v461 = vld [vmem:[#allocation7 + $0x198] sm:$0xff]
    %v462 = vld [vmem:[#allocation7 + $0x1a0] sm:$0xff]
    %v463 = vld [vmem:[#allocation7 + $0x1a8] sm:$0xff]
    %v464 = vld [vmem:[#allocation7 + $0x1b0] sm:$0xff]
    %v465 = vld [vmem:[#allocation7 + $0x1b8] sm:$0xff]
    %v466 = vld [vmem:[#allocation7 + $0x1c0] sm:$0xff]
    %v467 = vld [vmem:[#allocation7 + $0x1c8] sm:$0xff]
    %v468 = vld [vmem:[#allocation7 + $0x1d0] sm:$0xff]
    %v469 = vld [vmem:[#allocation7 + $0x1d8] sm:$0xff]
    %v470 = vld [vmem:[#allocation7 + $0x1e0] sm:$0xff]
    %v471 = vld [vmem:[#allocation7 + $0x1e8] sm:$0xff]
    %v472 = vld [vmem:[#allocation7 + $0x1f0] sm:$0xff]
    %v473 = vld [vmem:[#allocation7 + $0x1f8] sm:$0xff]
    %v474 = vld [vmem:[#allocation8] ss:$4 sm:$0xf]
    %v476 = vlaneseq
    %v477 = vshrl.u32 %v476, 7
    %v478 = vsub.s32 0, %v477
    %v479 = vrot.slane %v474, %v478
    %v480 = vlaneseq
    %v481 = vshrl.u32 %v480, 7
    %v482 = vsub.s32 1, %v481
    %v483 = vrot.slane %v474, %v482
    %v484 = vlaneseq
    %v485 = vshrl.u32 %v484, 7
    %v486 = vsub.s32 2, %v485
    %v487 = vrot.slane %v474, %v486
    %v488 = vlaneseq
    %v489 = vshrl.u32 %v488, 7
    %v490 = vsub.s32 3, %v489
    %v491 = vrot.slane %v474, %v490
    %v560 = vunpack.c.l.b16 %v410
    %v561 = vunpack.c.h.b16 %v410
    %v562 = vunpack.c.l.b16 %v411
    %v563 = vunpack.c.h.b16 %v411
    %v564 = vunpack.c.l.b16 %v412
    %v565 = vunpack.c.h.b16 %v412
    %v566 = vunpack.c.l.b16 %v413
    %v567 = vunpack.c.h.b16 %v413
    %v568 = vunpack.c.l.b16 %v414
    %v569 = vunpack.c.h.b16 %v414
    %v570 = vunpack.c.l.b16 %v415
    %v571 = vunpack.c.h.b16 %v415
    %v572 = vunpack.c.l.b16 %v416
    %v573 = vunpack.c.h.b16 %v416
    %v574 = vunpack.c.l.b16 %v417
    %v575 = vunpack.c.h.b16 %v417
    %v576 = vunpack.c.l.b16 %v418
    %v577 = vunpack.c.h.b16 %v418
    %v578 = vunpack.c.l.b16 %v419
    %v579 = vunpack.c.h.b16 %v419
    %v580 = vunpack.c.l.b16 %v420
    %v581 = vunpack.c.h.b16 %v420
    %v582 = vunpack.c.l.b16 %v421
    %v583 = vunpack.c.h.b16 %v421
    %v584 = vunpack.c.l.b16 %v422
    %v585 = vunpack.c.h.b16 %v422
    %v586 = vunpack.c.l.b16 %v423
    %v587 = vunpack.c.h.b16 %v423
    %v588 = vunpack.c.l.b16 %v424
    %v589 = vunpack.c.h.b16 %v424
    %v590 = vunpack.c.l.b16 %v425
    %v591 = vunpack.c.h.b16 %v425
    %v592 = vunpack.c.l.b16 %v426
    %v593 = vunpack.c.h.b16 %v426
    %v594 = vunpack.c.l.b16 %v427
    %v595 = vunpack.c.h.b16 %v427
    %v596 = vunpack.c.l.b16 %v428
    %v597 = vunpack.c.h.b16 %v428
    %v598 = vunpack.c.l.b16 %v429
    %v599 = vunpack.c.h.b16 %v429
    %v600 = vunpack.c.l.b16 %v430
    %v601 = vunpack.c.h.b16 %v430
    %v602 = vunpack.c.l.b16 %v431
    %v603 = vunpack.c.h.b16 %v431
    %v604 = vunpack.c.l.b16 %v432
    %v605 = vunpack.c.h.b16 %v432
    %v606 = vunpack.c.l.b16 %v433
    %v607 = vunpack.c.h.b16 %v433
    %v608 = vunpack.c.l.b16 %v434
    %v609 = vunpack.c.h.b16 %v434
    %v610 = vunpack.c.l.b16 %v435
    %v611 = vunpack.c.h.b16 %v435
    %v612 = vunpack.c.l.b16 %v436
    %v613 = vunpack.c.h.b16 %v436
    %v614 = vunpack.c.l.b16 %v437
    %v615 = vunpack.c.h.b16 %v437
    %v616 = vunpack.c.l.b16 %v438
    %v617 = vunpack.c.h.b16 %v438
    %v618 = vunpack.c.l.b16 %v439
    %v619 = vunpack.c.h.b16 %v439
    %v620 = vunpack.c.l.b16 %v440
    %v621 = vunpack.c.h.b16 %v440
    %v622 = vunpack.c.l.b16 %v441
    %v623 = vunpack.c.h.b16 %v441
    %v624 = vunpack.c.l.b16 %v442
    %v625 = vunpack.c.h.b16 %v442
    %v626 = vunpack.c.l.b16 %v443
    %v627 = vunpack.c.h.b16 %v443
    %v628 = vunpack.c.l.b16 %v444
    %v629 = vunpack.c.h.b16 %v444
    %v630 = vunpack.c.l.b16 %v445
    %v631 = vunpack.c.h.b16 %v445
    %v632 = vunpack.c.l.b16 %v446
    %v633 = vunpack.c.h.b16 %v446
    %v634 = vunpack.c.l.b16 %v447
    %v635 = vunpack.c.h.b16 %v447
    %v636 = vunpack.c.l.b16 %v448
    %v637 = vunpack.c.h.b16 %v448
    %v638 = vunpack.c.l.b16 %v449
    %v639 = vunpack.c.h.b16 %v449
    %v640 = vunpack.c.l.b16 %v450
    %v641 = vunpack.c.h.b16 %v450
    %v642 = vunpack.c.l.b16 %v451
    %v643 = vunpack.c.h.b16 %v451
    %v644 = vunpack.c.l.b16 %v452
    %v645 = vunpack.c.h.b16 %v452
    %v646 = vunpack.c.l.b16 %v453
    %v647 = vunpack.c.h.b16 %v453
    %v648 = vunpack.c.l.b16 %v454
    %v649 = vunpack.c.h.b16 %v454
    %v650 = vunpack.c.l.b16 %v455
    %v651 = vunpack.c.h.b16 %v455
    %v652 = vunpack.c.l.b16 %v456
    %v653 = vunpack.c.h.b16 %v456
    %v654 = vunpack.c.l.b16 %v457
    %v655 = vunpack.c.h.b16 %v457
    %v656 = vunpack.c.l.b16 %v458
    %v657 = vunpack.c.h.b16 %v458
    %v658 = vunpack.c.l.b16 %v459
    %v659 = vunpack.c.h.b16 %v459
    %v660 = vunpack.c.l.b16 %v460
    %v661 = vunpack.c.h.b16 %v460
    %v662 = vunpack.c.l.b16 %v461
    %v663 = vunpack.c.h.b16 %v461
    %v664 = vunpack.c.l.b16 %v462
    %v665 = vunpack.c.h.b16 %v462
    %v666 = vunpack.c.l.b16 %v463
    %v667 = vunpack.c.h.b16 %v463
    %v668 = vunpack.c.l.b16 %v464
    %v669 = vunpack.c.h.b16 %v464
    %v670 = vunpack.c.l.b16 %v465
    %v671 = vunpack.c.h.b16 %v465
    %v672 = vunpack.c.l.b16 %v466
    %v673 = vunpack.c.h.b16 %v466
    %v674 = vunpack.c.l.b16 %v467
    %v675 = vunpack.c.h.b16 %v467
    %v676 = vunpack.c.l.b16 %v468
    %v677 = vunpack.c.h.b16 %v468
    %v678 = vunpack.c.l.b16 %v469
    %v679 = vunpack.c.h.b16 %v469
    %v680 = vunpack.c.l.b16 %v470
    %v681 = vunpack.c.h.b16 %v470
    %v682 = vunpack.c.l.b16 %v471
    %v683 = vunpack.c.h.b16 %v471
    %v684 = vunpack.c.l.b16 %v472
    %v685 = vunpack.c.h.b16 %v472
    %v686 = vunpack.c.l.b16 %v473
    %v687 = vunpack.c.h.b16 %v473
    %v688 = vpack.c.b16 %v564, %v560
    %v689 = vpack.c.b16 %v565, %v561
    %v690 = vpack.c.b16 %v566, %v562
    %v691 = vpack.c.b16 %v567, %v563
    %v692 = vpack.c.b16 %v572, %v568
    %v693 = vpack.c.b16 %v573, %v569
    %v694 = vpack.c.b16 %v574, %v570
    %v695 = vpack.c.b16 %v575, %v571
    %v696 = vpack.c.b16 %v580, %v576
    %v697 = vpack.c.b16 %v581, %v577
    %v698 = vpack.c.b16 %v582, %v578
    %v699 = vpack.c.b16 %v583, %v579
    %v700 = vpack.c.b16 %v588, %v584
    %v701 = vpack.c.b16 %v589, %v585
    %v702 = vpack.c.b16 %v590, %v586
    %v703 = vpack.c.b16 %v591, %v587
    %v704 = vpack.c.b16 %v596, %v592
    %v705 = vpack.c.b16 %v597, %v593
    %v706 = vpack.c.b16 %v598, %v594
    %v707 = vpack.c.b16 %v599, %v595
    %v708 = vpack.c.b16 %v604, %v600
    %v709 = vpack.c.b16 %v605, %v601
    %v710 = vpack.c.b16 %v606, %v602
    %v711 = vpack.c.b16 %v607, %v603
    %v712 = vpack.c.b16 %v612, %v608
    %v713 = vpack.c.b16 %v613, %v609
    %v714 = vpack.c.b16 %v614, %v610
    %v715 = vpack.c.b16 %v615, %v611
    %v716 = vpack.c.b16 %v620, %v616
    %v717 = vpack.c.b16 %v621, %v617
    %v718 = vpack.c.b16 %v622, %v618
    %v719 = vpack.c.b16 %v623, %v619
    %v720 = vpack.c.b16 %v628, %v624
    %v721 = vpack.c.b16 %v629, %v625
    %v722 = vpack.c.b16 %v630, %v626
    %v723 = vpack.c.b16 %v631, %v627
    %v724 = vpack.c.b16 %v636, %v632
    %v725 = vpack.c.b16 %v637, %v633
    %v726 = vpack.c.b16 %v638, %v634
    %v727 = vpack.c.b16 %v639, %v635
    %v728 = vpack.c.b16 %v644, %v640
    %v729 = vpack.c.b16 %v645, %v641
    %v730 = vpack.c.b16 %v646, %v642
    %v731 = vpack.c.b16 %v647, %v643
    %v732 = vpack.c.b16 %v652, %v648
    %v733 = vpack.c.b16 %v653, %v649
    %v734 = vpack.c.b16 %v654, %v650
    %v735 = vpack.c.b16 %v655, %v651
    %v736 = vpack.c.b16 %v660, %v656
    %v737 = vpack.c.b16 %v661, %v657
    %v738 = vpack.c.b16 %v662, %v658
    %v739 = vpack.c.b16 %v663, %v659
    %v740 = vpack.c.b16 %v668, %v664
    %v741 = vpack.c.b16 %v669, %v665
    %v742 = vpack.c.b16 %v670, %v666
    %v743 = vpack.c.b16 %v671, %v667
    %v744 = vpack.c.b16 %v676, %v672
    %v745 = vpack.c.b16 %v677, %v673
    %v746 = vpack.c.b16 %v678, %v674
    %v747 = vpack.c.b16 %v679, %v675
    %v748 = vpack.c.b16 %v684, %v680
    %v749 = vpack.c.b16 %v685, %v681
    %v750 = vpack.c.b16 %v686, %v682
    %v751 = vpack.c.b16 %v687, %v683
    %816 = vmatprep.subr.bf16.mxu0 %v689
    %817 = vmatpush1.bf16.msra.mxu0 %v688
    %818 = vmatprep.subr.bf16.mxu0 %v693
    %819 = vmatpush1.bf16.msra.mxu0 %v692
    %820 = vmatprep.subr.bf16.mxu0 %v697
    %821 = vmatpush1.bf16.msra.mxu0 %v696
    %822 = vmatprep.subr.bf16.mxu0 %v701
    %823 = vmatpush1.bf16.msra.mxu0 %v700
    %824 = vmatprep.subr.bf16.mxu0 %v705
    %825 = vmatpush1.bf16.msra.mxu0 %v704
    %826 = vmatprep.subr.bf16.mxu0 %v709
    %827 = vmatpush1.bf16.msra.mxu0 %v708
    %828 = vmatprep.subr.bf16.mxu0 %v713
    %829 = vmatpush1.bf16.msra.mxu0 %v712
    %830 = vmatprep.subr.bf16.mxu0 %v717
    %831 = vmatpush1.bf16.msra.mxu0 %v716
    %832 = vmatprep.subr.bf16.mxu0 %v721
    %833 = vmatpush1.bf16.msra.mxu0 %v720
    %834 = vmatprep.subr.bf16.mxu0 %v725
    %835 = vmatpush1.bf16.msra.mxu0 %v724
    %836 = vmatprep.subr.bf16.mxu0 %v729
    %837 = vmatpush1.bf16.msra.mxu0 %v728
    %838 = vmatprep.subr.bf16.mxu0 %v733
    %839 = vmatpush1.bf16.msra.mxu0 %v732
    %840 = vmatprep.subr.bf16.mxu0 %v737
    %841 = vmatpush1.bf16.msra.mxu0 %v736
    %842 = vmatprep.subr.bf16.mxu0 %v741
    %843 = vmatpush1.bf16.msra.mxu0 %v740
    %844 = vmatprep.subr.bf16.mxu0 %v745
    %845 = vmatpush1.bf16.msra.mxu0 %v744
    %846 = vmatprep.subr.bf16.mxu0 %v749
    %847 = vmatpush1.bf16.msra.mxu0 %v748
    %848 = vmatprep.mubr.bf16.mxu0 %v409
    %849 = vmatmul.mubr.bf16.gmra.mrb[0].mxu0 %v408
    %v850 = vpop.f32.mrb[0].mxu0
    %v851 = vadd.f32 %v479, %v850
    %v852 = vpop.f32.mrb[0].mxu0
    %v853 = vadd.f32 %v483, %v852
    %v854 = vpop.f32.mrb[0].mxu0
    %v855 = vadd.f32 %v479, %v854
    %v856 = vpop.f32.mrb[0].mxu0
    %v857 = vadd.f32 %v483, %v856
    %858 = vdwg.mxu0
    %859 = vmatprep.subr.bf16.mxu0 %v691
    %860 = vmatpush1.bf16.msra.mxu0 %v690
    %861 = vmatprep.subr.bf16.mxu0 %v695
    %862 = vmatpush1.bf16.msra.mxu0 %v694
    %863 = vmatprep.subr.bf16.mxu0 %v699
    %864 = vmatpush1.bf16.msra.mxu0 %v698
    %865 = vmatprep.subr.bf16.mxu0 %v703
    %866 = vmatpush1.bf16.msra.mxu0 %v702
    %867 = vmatprep.subr.bf16.mxu0 %v707
    %868 = vmatpush1.bf16.msra.mxu0 %v706
    %869 = vmatprep.subr.bf16.mxu0 %v711
    %870 = vmatpush1.bf16.msra.mxu0 %v710
    %871 = vmatprep.subr.bf16.mxu0 %v715
    %872 = vmatpush1.bf16.msra.mxu0 %v714
    %873 = vmatprep.subr.bf16.mxu0 %v719
    %874 = vmatpush1.bf16.msra.mxu0 %v718
    %875 = vmatprep.subr.bf16.mxu0 %v723
    %876 = vmatpush1.bf16.msra.mxu0 %v722
    %877 = vmatprep.subr.bf16.mxu0 %v727
    %878 = vmatpush1.bf16.msra.mxu0 %v726
    %879 = vmatprep.subr.bf16.mxu0 %v731
    %880 = vmatpush1.bf16.msra.mxu0 %v730
    %881 = vmatprep.subr.bf16.mxu0 %v735
    %882 = vmatpush1.bf16.msra.mxu0 %v734
    %883 = vmatprep.subr.bf16.mxu0 %v739
    %884 = vmatpush1.bf16.msra.mxu0 %v738
    %885 = vmatprep.subr.bf16.mxu0 %v743
    %886 = vmatpush1.bf16.msra.mxu0 %v742
    %887 = vmatprep.subr.bf16.mxu0 %v747
    %888 = vmatpush1.bf16.msra.mxu0 %v746
    %889 = vmatprep.subr.bf16.mxu0 %v751
    %890 = vmatpush1.bf16.msra.mxu0 %v750
    %891 = vmatprep.mubr.bf16.mxu0 %v409
    %892 = vmatmul.mubr.bf16.gmra.mrb[0].mxu0 %v408
    %v893 = vpop.f32.mrb[0].mxu0
    %v894 = vadd.f32 %v487, %v893
    %v895 = vpop.f32.mrb[0].mxu0
    %v896 = vadd.f32 %v491, %v895
    %v897 = vpop.f32.mrb[0].mxu0
    %v898 = vadd.f32 %v487, %v897
    %v899 = vpop.f32.mrb[0].mxu0
    %v900 = vadd.f32 %v491, %v899
    %901 = vdwg.mxu0
    %v902 = vmul.f32 %v851, 0.2
    %v903 = vmul.f32 %v853, 0.2
    %v904 = vmul.f32 %v894, 0.2
    %v905 = vmul.f32 %v896, 0.2
    %v906 = vmul.f32 %v855, 0.2
    %v907 = vmul.f32 %v857, 0.2
    %v908 = vmul.f32 %v898, 0.2
    %v909 = vmul.f32 %v900, 0.2
    %v910 = vmax.f32 %v851, %v902
    %v911 = vmax.f32 %v853, %v903
    %v912 = vmax.f32 %v894, %v904
    %v913 = vmax.f32 %v896, %v905
    %v914 = vmax.f32 %v855, %v906
    %v915 = vmax.f32 %v857, %v907
    %v916 = vmax.f32 %v898, %v908
    %v917 = vmax.f32 %v900, %v909
    %v918 = vadd.f32 %v910, %v914
    %v919 = vrot.slane %v918, 4
    %v920 = vadd.f32 %v918, %v919
    %v921 = vrot.slane %v920, 2
    %v922 = vadd.f32 %v920, %v921
    %v923 = vrot.slane %v922, 1
    %v924 = vadd.f32 %v922, %v923
    %v925 = vadd.f32 %v911, %v915
    %v926 = vrot.slane %v925, 4
    %v927 = vadd.f32 %v925, %v926
    %v928 = vrot.slane %v927, 2
    %v929 = vadd.f32 %v927, %v928
    %v930 = vrot.slane %v929, 1
    %v931 = vadd.f32 %v929, %v930
    %v932 = vadd.f32 %v912, %v916
    %v933 = vrot.slane %v932, 4
    %v934 = vadd.f32 %v932, %v933
    %v935 = vrot.slane %v934, 2
    %v936 = vadd.f32 %v934, %v935
    %v937 = vrot.slane %v936, 1
    %v938 = vadd.f32 %v936, %v937
    %v939 = vadd.f32 %v913, %v917
    %v940 = vrot.slane %v939, 4
    %v941 = vadd.f32 %v939, %v940
    %v942 = vrot.slane %v941, 2
    %v943 = vadd.f32 %v941, %v942
    %v944 = vrot.slane %v943, 1
    %v945 = vadd.f32 %v943, %v944
    %v946 = vmul.f32 %v910, %v910
    %v947 = vmul.f32 %v911, %v911
    %v948 = vmul.f32 %v912, %v912
    %v949 = vmul.f32 %v913, %v913
    %v950 = vmul.f32 %v914, %v914
    %v951 = vmul.f32 %v915, %v915
    %v952 = vmul.f32 %v916, %v916
    %v953 = vmul.f32 %v917, %v917
    %v954 = vadd.f32 %v946, %v950
    %v955 = vrot.slane %v954, 4
    %v956 = vadd.f32 %v954, %v955
    %v957 = vrot.slane %v956, 2
    %v958 = vadd.f32 %v956, %v957
    %v959 = vrot.slane %v958, 1
    %v960 = vadd.f32 %v958, %v959
    %v961 = vadd.f32 %v947, %v951
    %v962 = vrot.slane %v961, 4
    %v963 = vadd.f32 %v961, %v962
    %v964 = vrot.slane %v963, 2
    %v965 = vadd.f32 %v963, %v964
    %v966 = vrot.slane %v965, 1
    %v967 = vadd.f32 %v965, %v966
    %v968 = vadd.f32 %v948, %v952
    %v969 = vrot.slane %v968, 4
    %v970 = vadd.f32 %v968, %v969
    %v971 = vrot.slane %v970, 2
    %v972 = vadd.f32 %v970, %v971
    %v973 = vrot.slane %v972, 1
    %v974 = vadd.f32 %v972, %v973
    %v975 = vadd.f32 %v949, %v953
    %v976 = vrot.slane %v975, 4
    %v977 = vadd.f32 %v975, %v976
    %v978 = vrot.slane %v977, 2
    %v979 = vadd.f32 %v977, %v978
    %v980 = vrot.slane %v979, 1
    %v981 = vadd.f32 %v979, %v980
    %s982 = scalar_lea.vmem [#allocation8], 1
    %v983 = vld [vmem:[%s982] ss:$4 sm:$0xf]
    %s984 = scalar_lea.vmem [#allocation8], 2
    %v985 = vld [vmem:[%s984] ss:$4 sm:$0xf]
    %v986 = vmul.f32 %v924, 0.0625
    %v987 = vmul.f32 %v931, 0.0625
    %v988 = vmul.f32 %v938, 0.0625
    %v989 = vmul.f32 %v945, 0.0625
    %v990 = vmul.f32 %v960, 0.0625
    %v991 = vmul.f32 %v967, 0.0625
    %v992 = vmul.f32 %v974, 0.0625
    %v993 = vmul.f32 %v981, 0.0625
    %v994 = vmul.f32 %v986, %v986
    %v995 = vmul.f32 %v987, %v987
    %v996 = vmul.f32 %v988, %v988
    %v997 = vmul.f32 %v989, %v989
    %v998 = vsub.f32 %v990, %v994
    %v999 = vsub.f32 %v991, %v995
    %v1000 = vsub.f32 %v992, %v996
    %v1001 = vsub.f32 %v993, %v997
    %v1002 = vmax.f32 %v998, 0.0
    %v1003 = vmax.f32 %v999, 0.0
    %v1004 = vmax.f32 %v1000, 0.0
    %v1005 = vmax.f32 %v1001, 0.0
    %v1006 = vadd.f32 %v1002, 1e-05
    %v1007 = vadd.f32 %v1003, 1e-05
    %v1008 = vadd.f32 %v1004, 1e-05
    %v1009 = vadd.f32 %v1005, 1e-05
    %v1010 = vrsqrt.pop %v1006
    %v1011 = vrsqrt.pop %v1007
    %v1012 = vrsqrt.pop %v1008
    %v1013 = vrsqrt.pop %v1009
    %v1015 = vlaneseq
    %v1016 = vshrl.u32 %v1015, 7
    %v1017 = vsub.s32 0, %v1016
    %v1018 = vrot.slane %v983, %v1017
    %v1019 = vlaneseq
    %v1020 = vshrl.u32 %v1019, 7
    %v1021 = vsub.s32 1, %v1020
    %v1022 = vrot.slane %v983, %v1021
    %v1023 = vlaneseq
    %v1024 = vshrl.u32 %v1023, 7
    %v1025 = vsub.s32 2, %v1024
    %v1026 = vrot.slane %v983, %v1025
    %v1027 = vlaneseq
    %v1028 = vshrl.u32 %v1027, 7
    %v1029 = vsub.s32 3, %v1028
    %v1030 = vrot.slane %v983, %v1029
    %v1035 = vmul.f32 %v1010, %v1018
    %v1036 = vmul.f32 %v1011, %v1022
    %v1037 = vmul.f32 %v1012, %v1026
    %v1038 = vmul.f32 %v1013, %v1030
    %v1039 = vmul.f32 %v986, %v1035
    %v1040 = vmul.f32 %v987, %v1036
    %v1041 = vmul.f32 %v988, %v1037
    %v1042 = vmul.f32 %v989, %v1038
    %v1047 = vcombine.low %v1039, %v1040
    %v1048 = vcombine.low %v1041, %v1042
    %v1050 = vunpack.c.l.s4 1966171168
    %v1051 = vunpack.c.0.s8 %v1050
    %v1052 = vlaneseq
    %v1053 = vshrl.u32 %v1052, 7
    %v1054 = vsub.s32 %v1051, %v1053
    %v1055 = vrot.slane %v1047, %v1054
    %v1057 = vunpack.c.l.s4 1966171168
    %v1058 = vunpack.c.0.s8 %v1057
    %v1059 = vlaneseq
    %v1060 = vshrl.u32 %v1059, 7
    %v1061 = vsub.s32 %v1058, %v1060
    %v1062 = vrot.slane %v1048, %v1061
    %v1063 = vcombine.low %v1055, %v1062
    %v1065 = vunpack.c.l.s4 1966171168
    %v1066 = vunpack.c.0.s8 %v1065
    %v1067 = vlaneseq
    %v1068 = vshrl.u32 %v1067, 7
    %v1069 = vsub.s32 %v1066, %v1068
    %v1070 = vrot.slane %v1063, %v1069
    %v1072 = vsub.f32 %v985, %v1070
    %v1073 = vlaneseq
    %v1074 = vshrl.u32 %v1073, 7
    %v1075 = vsub.s32 0, %v1074
    %v1076 = vrot.slane %v1035, %v1075
    %v1077 = vlaneseq
    %v1078 = vshrl.u32 %v1077, 7
    %v1079 = vsub.s32 0, %v1078
    %v1080 = vrot.slane %v1036, %v1079
    %v1081 = vlaneseq
    %v1082 = vshrl.u32 %v1081, 7
    %v1083 = vsub.s32 0, %v1082
    %v1084 = vrot.slane %v1037, %v1083
    %v1085 = vlaneseq
    %v1086 = vshrl.u32 %v1085, 7
    %v1087 = vsub.s32 0, %v1086
    %v1088 = vrot.slane %v1038, %v1087
    %v1089 = vmul.f32 %v910, %v1076
    %v1090 = vmul.f32 %v911, %v1080
    %v1091 = vmul.f32 %v912, %v1084
    %v1092 = vmul.f32 %v913, %v1088
    %v1093 = vmul.f32 %v914, %v1076
    %v1094 = vmul.f32 %v915, %v1080
    %v1095 = vmul.f32 %v916, %v1084
    %v1096 = vmul.f32 %v917, %v1088
    %v1098 = vlaneseq
    %v1099 = vshrl.u32 %v1098, 7
    %v1100 = vsub.s32 0, %v1099
    %v1101 = vrot.slane %v1072, %v1100
    %v1102 = vlaneseq
    %v1103 = vshrl.u32 %v1102, 7
    %v1104 = vsub.s32 1, %v1103
    %v1105 = vrot.slane %v1072, %v1104
    %v1106 = vlaneseq
    %v1107 = vshrl.u32 %v1106, 7
    %v1108 = vsub.s32 2, %v1107
    %v1109 = vrot.slane %v1072, %v1108
    %v1110 = vlaneseq
    %v1111 = vshrl.u32 %v1110, 7
    %v1112 = vsub.s32 3, %v1111
    %v1113 = vrot.slane %v1072, %v1112
    %v1118 = vadd.f32 %v1089, %v1101
    %v1119 = vadd.f32 %v1090, %v1105
    %v1120 = vadd.f32 %v1091, %v1109
    %v1121 = vadd.f32 %v1092, %v1113
    %v1122 = vadd.f32 %v1093, %v1101
    %v1123 = vadd.f32 %v1094, %v1105
    %v1124 = vadd.f32 %v1095, %v1109
    %v1125 = vadd.f32 %v1096, %v1113
    %v1126 = vpack.c.bf16 %v1122, %v1118
    %v1127 = vpack.c.bf16 %v1123, %v1119
    %v1128 = vpack.c.bf16 %v1124, %v1120
    %v1129 = vpack.c.bf16 %v1125, %v1121
    %v1130 = vld [vmem:[#allocation10] sm:$0xff]
    %v1131 = vld [vmem:[#allocation10 + $0x8] sm:$0xff]
    %v1132 = vld [vmem:[#allocation10 + $0x10] sm:$0xff]
    %v1133 = vld [vmem:[#allocation10 + $0x18] sm:$0xff]
    %v1134 = vld [vmem:[#allocation10 + $0x20] sm:$0xff]
    %v1135 = vld [vmem:[#allocation10 + $0x28] sm:$0xff]
    %v1136 = vld [vmem:[#allocation10 + $0x30] sm:$0xff]
    %v1137 = vld [vmem:[#allocation10 + $0x38] sm:$0xff]
    %v1138 = vld [vmem:[#allocation10 + $0x40] sm:$0xff]
    %v1139 = vld [vmem:[#allocation10 + $0x48] sm:$0xff]
    %v1140 = vld [vmem:[#allocation10 + $0x50] sm:$0xff]
    %v1141 = vld [vmem:[#allocation10 + $0x58] sm:$0xff]
    %v1142 = vld [vmem:[#allocation10 + $0x60] sm:$0xff]
    %v1143 = vld [vmem:[#allocation10 + $0x68] sm:$0xff]
    %v1144 = vld [vmem:[#allocation10 + $0x70] sm:$0xff]
    %v1145 = vld [vmem:[#allocation10 + $0x78] sm:$0xff]
    %v1146 = vld [vmem:[#allocation10 + $0x80] sm:$0xff]
    %v1147 = vld [vmem:[#allocation10 + $0x88] sm:$0xff]
    %v1148 = vld [vmem:[#allocation10 + $0x90] sm:$0xff]
    %v1149 = vld [vmem:[#allocation10 + $0x98] sm:$0xff]
    %v1150 = vld [vmem:[#allocation10 + $0xa0] sm:$0xff]
    %v1151 = vld [vmem:[#allocation10 + $0xa8] sm:$0xff]
    %v1152 = vld [vmem:[#allocation10 + $0xb0] sm:$0xff]
    %v1153 = vld [vmem:[#allocation10 + $0xb8] sm:$0xff]
    %v1154 = vld [vmem:[#allocation10 + $0xc0] sm:$0xff]
    %v1155 = vld [vmem:[#allocation10 + $0xc8] sm:$0xff]
    %v1156 = vld [vmem:[#allocation10 + $0xd0] sm:$0xff]
    %v1157 = vld [vmem:[#allocation10 + $0xd8] sm:$0xff]
    %v1158 = vld [vmem:[#allocation10 + $0xe0] sm:$0xff]
    %v1159 = vld [vmem:[#allocation10 + $0xe8] sm:$0xff]
    %v1160 = vld [vmem:[#allocation10 + $0xf0] sm:$0xff]
    %v1161 = vld [vmem:[#allocation10 + $0xf8] sm:$0xff]
    %v1162 = vld [vmem:[#allocation10 + $0x100] sm:$0xff]
    %v1163 = vld [vmem:[#allocation10 + $0x108] sm:$0xff]
    %v1164 = vld [vmem:[#allocation10 + $0x110] sm:$0xff]
    %v1165 = vld [vmem:[#allocation10 + $0x118] sm:$0xff]
    %v1166 = vld [vmem:[#allocation10 + $0x120] sm:$0xff]
    %v1167 = vld [vmem:[#allocation10 + $0x128] sm:$0xff]
    %v1168 = vld [vmem:[#allocation10 + $0x130] sm:$0xff]
    %v1169 = vld [vmem:[#allocation10 + $0x138] sm:$0xff]
    %v1170 = vld [vmem:[#allocation10 + $0x140] sm:$0xff]
    %v1171 = vld [vmem:[#allocation10 + $0x148] sm:$0xff]
    %v1172 = vld [vmem:[#allocation10 + $0x150] sm:$0xff]
    %v1173 = vld [vmem:[#allocation10 + $0x158] sm:$0xff]
    %v1174 = vld [vmem:[#allocation10 + $0x160] sm:$0xff]
    %v1175 = vld [vmem:[#allocation10 + $0x168] sm:$0xff]
    %v1176 = vld [vmem:[#allocation10 + $0x170] sm:$0xff]
    %v1177 = vld [vmem:[#allocation10 + $0x178] sm:$0xff]
    %v1178 = vld [vmem:[#allocation10 + $0x180] sm:$0xff]
    %v1179 = vld [vmem:[#allocation10 + $0x188] sm:$0xff]
    %v1180 = vld [vmem:[#allocation10 + $0x190] sm:$0xff]
    %v1181 = vld [vmem:[#allocation10 + $0x198] sm:$0xff]
    %v1182 = vld [vmem:[#allocation10 + $0x1a0] sm:$0xff]
    %v1183 = vld [vmem:[#allocation10 + $0x1a8] sm:$0xff]
    %v1184 = vld [vmem:[#allocation10 + $0x1b0] sm:$0xff]
    %v1185 = vld [vmem:[#allocation10 + $0x1b8] sm:$0xff]
    %v1186 = vld [vmem:[#allocation10 + $0x1c0] sm:$0xff]
    %v1187 = vld [vmem:[#allocation10 + $0x1c8] sm:$0xff]
    %v1188 = vld [vmem:[#allocation10 + $0x1d0] sm:$0xff]
    %v1189 = vld [vmem:[#allocation10 + $0x1d8] sm:$0xff]
    %v1190 = vld [vmem:[#allocation10 + $0x1e0] sm:$0xff]
    %v1191 = vld [vmem:[#allocation10 + $0x1e8] sm:$0xff]
    %v1192 = vld [vmem:[#allocation10 + $0x1f0] sm:$0xff]
    %v1193 = vld [vmem:[#allocation10 + $0x1f8] sm:$0xff]
    %v1194 = vld [vmem:[#allocation10 + $0x200] sm:$0xff]
    %v1195 = vld [vmem:[#allocation10 + $0x208] sm:$0xff]
    %v1196 = vld [vmem:[#allocation10 + $0x210] sm:$0xff]
    %v1197 = vld [vmem:[#allocation10 + $0x218] sm:$0xff]
    %v1198 = vld [vmem:[#allocation10 + $0x220] sm:$0xff]
    %v1199 = vld [vmem:[#allocation10 + $0x228] sm:$0xff]
    %v1200 = vld [vmem:[#allocation10 + $0x230] sm:$0xff]
    %v1201 = vld [vmem:[#allocation10 + $0x238] sm:$0xff]
    %v1202 = vld [vmem:[#allocation10 + $0x240] sm:$0xff]
    %v1203 = vld [vmem:[#allocation10 + $0x248] sm:$0xff]
    %v1204 = vld [vmem:[#allocation10 + $0x250] sm:$0xff]
    %v1205 = vld [vmem:[#allocation10 + $0x258] sm:$0xff]
    %v1206 = vld [vmem:[#allocation10 + $0x260] sm:$0xff]
    %v1207 = vld [vmem:[#allocation10 + $0x268] sm:$0xff]
    %v1208 = vld [vmem:[#allocation10 + $0x270] sm:$0xff]
    %v1209 = vld [vmem:[#allocation10 + $0x278] sm:$0xff]
    %v1210 = vld [vmem:[#allocation10 + $0x280] sm:$0xff]
    %v1211 = vld [vmem:[#allocation10 + $0x288] sm:$0xff]
    %v1212 = vld [vmem:[#allocation10 + $0x290] sm:$0xff]
    %v1213 = vld [vmem:[#allocation10 + $0x298] sm:$0xff]
    %v1214 = vld [vmem:[#allocation10 + $0x2a0] sm:$0xff]
    %v1215 = vld [vmem:[#allocation10 + $0x2a8] sm:$0xff]
    %v1216 = vld [vmem:[#allocation10 + $0x2b0] sm:$0xff]
    %v1217 = vld [vmem:[#allocation10 + $0x2b8] sm:$0xff]
    %v1218 = vld [vmem:[#allocation10 + $0x2c0] sm:$0xff]
    %v1219 = vld [vmem:[#allocation10 + $0x2c8] sm:$0xff]
    %v1220 = vld [vmem:[#allocation10 + $0x2d0] sm:$0xff]
    %v1221 = vld [vmem:[#allocation10 + $0x2d8] sm:$0xff]
    %v1222 = vld [vmem:[#allocation10 + $0x2e0] sm:$0xff]
    %v1223 = vld [vmem:[#allocation10 + $0x2e8] sm:$0xff]
    %v1224 = vld [vmem:[#allocation10 + $0x2f0] sm:$0xff]
    %v1225 = vld [vmem:[#allocation10 + $0x2f8] sm:$0xff]
    %v1226 = vld [vmem:[#allocation10 + $0x300] sm:$0xff]
    %v1227 = vld [vmem:[#allocation10 + $0x308] sm:$0xff]
    %v1228 = vld [vmem:[#allocation10 + $0x310] sm:$0xff]
    %v1229 = vld [vmem:[#allocation10 + $0x318] sm:$0xff]
    %v1230 = vld [vmem:[#allocation10 + $0x320] sm:$0xff]
    %v1231 = vld [vmem:[#allocation10 + $0x328] sm:$0xff]
    %v1232 = vld [vmem:[#allocation10 + $0x330] sm:$0xff]
    %v1233 = vld [vmem:[#allocation10 + $0x338] sm:$0xff]
    %v1234 = vld [vmem:[#allocation10 + $0x340] sm:$0xff]
    %v1235 = vld [vmem:[#allocation10 + $0x348] sm:$0xff]
    %v1236 = vld [vmem:[#allocation10 + $0x350] sm:$0xff]
    %v1237 = vld [vmem:[#allocation10 + $0x358] sm:$0xff]
    %v1238 = vld [vmem:[#allocation10 + $0x360] sm:$0xff]
    %v1239 = vld [vmem:[#allocation10 + $0x368] sm:$0xff]
    %v1240 = vld [vmem:[#allocation10 + $0x370] sm:$0xff]
    %v1241 = vld [vmem:[#allocation10 + $0x378] sm:$0xff]
    %v1242 = vld [vmem:[#allocation10 + $0x380] sm:$0xff]
    %v1243 = vld [vmem:[#allocation10 + $0x388] sm:$0xff]
    %v1244 = vld [vmem:[#allocation10 + $0x390] sm:$0xff]
    %v1245 = vld [vmem:[#allocation10 + $0x398] sm:$0xff]
    %v1246 = vld [vmem:[#allocation10 + $0x3a0] sm:$0xff]
    %v1247 = vld [vmem:[#allocation10 + $0x3a8] sm:$0xff]
    %v1248 = vld [vmem:[#allocation10 + $0x3b0] sm:$0xff]
    %v1249 = vld [vmem:[#allocation10 + $0x3b8] sm:$0xff]
    %v1250 = vld [vmem:[#allocation10 + $0x3c0] sm:$0xff]
    %v1251 = vld [vmem:[#allocation10 + $0x3c8] sm:$0xff]
    %v1252 = vld [vmem:[#allocation10 + $0x3d0] sm:$0xff]
    %v1253 = vld [vmem:[#allocation10 + $0x3d8] sm:$0xff]
    %v1254 = vld [vmem:[#allocation10 + $0x3e0] sm:$0xff]
    %v1255 = vld [vmem:[#allocation10 + $0x3e8] sm:$0xff]
    %v1256 = vld [vmem:[#allocation10 + $0x3f0] sm:$0xff]
    %v1257 = vld [vmem:[#allocation10 + $0x3f8] sm:$0xff]
    %v1258 = vld [vmem:[#allocation10 + $0x400] sm:$0xff]
    %v1259 = vld [vmem:[#allocation10 + $0x408] sm:$0xff]
    %v1260 = vld [vmem:[#allocation10 + $0x410] sm:$0xff]
    %v1261 = vld [vmem:[#allocation10 + $0x418] sm:$0xff]
    %v1262 = vld [vmem:[#allocation10 + $0x420] sm:$0xff]
    %v1263 = vld [vmem:[#allocation10 + $0x428] sm:$0xff]
    %v1264 = vld [vmem:[#allocation10 + $0x430] sm:$0xff]
    %v1265 = vld [vmem:[#allocation10 + $0x438] sm:$0xff]
    %v1266 = vld [vmem:[#allocation10 + $0x440] sm:$0xff]
    %v1267 = vld [vmem:[#allocation10 + $0x448] sm:$0xff]
    %v1268 = vld [vmem:[#allocation10 + $0x450] sm:$0xff]
    %v1269 = vld [vmem:[#allocation10 + $0x458] sm:$0xff]
    %v1270 = vld [vmem:[#allocation10 + $0x460] sm:$0xff]
    %v1271 = vld [vmem:[#allocation10 + $0x468] sm:$0xff]
    %v1272 = vld [vmem:[#allocation10 + $0x470] sm:$0xff]
    %v1273 = vld [vmem:[#allocation10 + $0x478] sm:$0xff]
    %v1274 = vld [vmem:[#allocation10 + $0x480] sm:$0xff]
    %v1275 = vld [vmem:[#allocation10 + $0x488] sm:$0xff]
    %v1276 = vld [vmem:[#allocation10 + $0x490] sm:$0xff]
    %v1277 = vld [vmem:[#allocation10 + $0x498] sm:$0xff]
    %v1278 = vld [vmem:[#allocation10 + $0x4a0] sm:$0xff]
    %v1279 = vld [vmem:[#allocation10 + $0x4a8] sm:$0xff]
    %v1280 = vld [vmem:[#allocation10 + $0x4b0] sm:$0xff]
    %v1281 = vld [vmem:[#allocation10 + $0x4b8] sm:$0xff]
    %v1282 = vld [vmem:[#allocation10 + $0x4c0] sm:$0xff]
    %v1283 = vld [vmem:[#allocation10 + $0x4c8] sm:$0xff]
    %v1284 = vld [vmem:[#allocation10 + $0x4d0] sm:$0xff]
    %v1285 = vld [vmem:[#allocation10 + $0x4d8] sm:$0xff]
    %v1286 = vld [vmem:[#allocation10 + $0x4e0] sm:$0xff]
    %v1287 = vld [vmem:[#allocation10 + $0x4e8] sm:$0xff]
    %v1288 = vld [vmem:[#allocation10 + $0x4f0] sm:$0xff]
    %v1289 = vld [vmem:[#allocation10 + $0x4f8] sm:$0xff]
    %v1290 = vld [vmem:[#allocation10 + $0x500] sm:$0xff]
    %v1291 = vld [vmem:[#allocation10 + $0x508] sm:$0xff]
    %v1292 = vld [vmem:[#allocation10 + $0x510] sm:$0xff]
    %v1293 = vld [vmem:[#allocation10 + $0x518] sm:$0xff]
    %v1294 = vld [vmem:[#allocation10 + $0x520] sm:$0xff]
    %v1295 = vld [vmem:[#allocation10 + $0x528] sm:$0xff]
    %v1296 = vld [vmem:[#allocation10 + $0x530] sm:$0xff]
    %v1297 = vld [vmem:[#allocation10 + $0x538] sm:$0xff]
    %v1298 = vld [vmem:[#allocation10 + $0x540] sm:$0xff]
    %v1299 = vld [vmem:[#allocation10 + $0x548] sm:$0xff]
    %v1300 = vld [vmem:[#allocation10 + $0x550] sm:$0xff]
    %v1301 = vld [vmem:[#allocation10 + $0x558] sm:$0xff]
    %v1302 = vld [vmem:[#allocation10 + $0x560] sm:$0xff]
    %v1303 = vld [vmem:[#allocation10 + $0x568] sm:$0xff]
    %v1304 = vld [vmem:[#allocation10 + $0x570] sm:$0xff]
    %v1305 = vld [vmem:[#allocation10 + $0x578] sm:$0xff]
    %v1306 = vld [vmem:[#allocation10 + $0x580] sm:$0xff]
    %v1307 = vld [vmem:[#allocation10 + $0x588] sm:$0xff]
    %v1308 = vld [vmem:[#allocation10 + $0x590] sm:$0xff]
    %v1309 = vld [vmem:[#allocation10 + $0x598] sm:$0xff]
    %v1310 = vld [vmem:[#allocation10 + $0x5a0] sm:$0xff]
    %v1311 = vld [vmem:[#allocation10 + $0x5a8] sm:$0xff]
    %v1312 = vld [vmem:[#allocation10 + $0x5b0] sm:$0xff]
    %v1313 = vld [vmem:[#allocation10 + $0x5b8] sm:$0xff]
    %v1314 = vld [vmem:[#allocation10 + $0x5c0] sm:$0xff]
    %v1315 = vld [vmem:[#allocation10 + $0x5c8] sm:$0xff]
    %v1316 = vld [vmem:[#allocation10 + $0x5d0] sm:$0xff]
    %v1317 = vld [vmem:[#allocation10 + $0x5d8] sm:$0xff]
    %v1318 = vld [vmem:[#allocation10 + $0x5e0] sm:$0xff]
    %v1319 = vld [vmem:[#allocation10 + $0x5e8] sm:$0xff]
    %v1320 = vld [vmem:[#allocation10 + $0x5f0] sm:$0xff]
    %v1321 = vld [vmem:[#allocation10 + $0x5f8] sm:$0xff]
    %v1322 = vld [vmem:[#allocation10 + $0x600] sm:$0xff]
    %v1323 = vld [vmem:[#allocation10 + $0x608] sm:$0xff]
    %v1324 = vld [vmem:[#allocation10 + $0x610] sm:$0xff]
    %v1325 = vld [vmem:[#allocation10 + $0x618] sm:$0xff]
    %v1326 = vld [vmem:[#allocation10 + $0x620] sm:$0xff]
    %v1327 = vld [vmem:[#allocation10 + $0x628] sm:$0xff]
    %v1328 = vld [vmem:[#allocation10 + $0x630] sm:$0xff]
    %v1329 = vld [vmem:[#allocation10 + $0x638] sm:$0xff]
    %v1330 = vld [vmem:[#allocation10 + $0x640] sm:$0xff]
    %v1331 = vld [vmem:[#allocation10 + $0x648] sm:$0xff]
    %v1332 = vld [vmem:[#allocation10 + $0x650] sm:$0xff]
    %v1333 = vld [vmem:[#allocation10 + $0x658] sm:$0xff]
    %v1334 = vld [vmem:[#allocation10 + $0x660] sm:$0xff]
    %v1335 = vld [vmem:[#allocation10 + $0x668] sm:$0xff]
    %v1336 = vld [vmem:[#allocation10 + $0x670] sm:$0xff]
    %v1337 = vld [vmem:[#allocation10 + $0x678] sm:$0xff]
    %v1338 = vld [vmem:[#allocation10 + $0x680] sm:$0xff]
    %v1339 = vld [vmem:[#allocation10 + $0x688] sm:$0xff]
    %v1340 = vld [vmem:[#allocation10 + $0x690] sm:$0xff]
    %v1341 = vld [vmem:[#allocation10 + $0x698] sm:$0xff]
    %v1342 = vld [vmem:[#allocation10 + $0x6a0] sm:$0xff]
    %v1343 = vld [vmem:[#allocation10 + $0x6a8] sm:$0xff]
    %v1344 = vld [vmem:[#allocation10 + $0x6b0] sm:$0xff]
    %v1345 = vld [vmem:[#allocation10 + $0x6b8] sm:$0xff]
    %v1346 = vld [vmem:[#allocation10 + $0x6c0] sm:$0xff]
    %v1347 = vld [vmem:[#allocation10 + $0x6c8] sm:$0xff]
    %v1348 = vld [vmem:[#allocation10 + $0x6d0] sm:$0xff]
    %v1349 = vld [vmem:[#allocation10 + $0x6d8] sm:$0xff]
    %v1350 = vld [vmem:[#allocation10 + $0x6e0] sm:$0xff]
    %v1351 = vld [vmem:[#allocation10 + $0x6e8] sm:$0xff]
    %v1352 = vld [vmem:[#allocation10 + $0x6f0] sm:$0xff]
    %v1353 = vld [vmem:[#allocation10 + $0x6f8] sm:$0xff]
    %v1354 = vld [vmem:[#allocation10 + $0x700] sm:$0xff]
    %v1355 = vld [vmem:[#allocation10 + $0x708] sm:$0xff]
    %v1356 = vld [vmem:[#allocation10 + $0x710] sm:$0xff]
    %v1357 = vld [vmem:[#allocation10 + $0x718] sm:$0xff]
    %v1358 = vld [vmem:[#allocation10 + $0x720] sm:$0xff]
    %v1359 = vld [vmem:[#allocation10 + $0x728] sm:$0xff]
    %v1360 = vld [vmem:[#allocation10 + $0x730] sm:$0xff]
    %v1361 = vld [vmem:[#allocation10 + $0x738] sm:$0xff]
    %v1362 = vld [vmem:[#allocation10 + $0x740] sm:$0xff]
    %v1363 = vld [vmem:[#allocation10 + $0x748] sm:$0xff]
    %v1364 = vld [vmem:[#allocation10 + $0x750] sm:$0xff]
    %v1365 = vld [vmem:[#allocation10 + $0x758] sm:$0xff]
    %v1366 = vld [vmem:[#allocation10 + $0x760] sm:$0xff]
    %v1367 = vld [vmem:[#allocation10 + $0x768] sm:$0xff]
    %v1368 = vld [vmem:[#allocation10 + $0x770] sm:$0xff]
    %v1369 = vld [vmem:[#allocation10 + $0x778] sm:$0xff]
    %v1370 = vld [vmem:[#allocation10 + $0x780] sm:$0xff]
    %v1371 = vld [vmem:[#allocation10 + $0x788] sm:$0xff]
    %v1372 = vld [vmem:[#allocation10 + $0x790] sm:$0xff]
    %v1373 = vld [vmem:[#allocation10 + $0x798] sm:$0xff]
    %v1374 = vld [vmem:[#allocation10 + $0x7a0] sm:$0xff]
    %v1375 = vld [vmem:[#allocation10 + $0x7a8] sm:$0xff]
    %v1376 = vld [vmem:[#allocation10 + $0x7b0] sm:$0xff]
    %v1377 = vld [vmem:[#allocation10 + $0x7b8] sm:$0xff]
    %v1378 = vld [vmem:[#allocation10 + $0x7c0] sm:$0xff]
    %v1379 = vld [vmem:[#allocation10 + $0x7c8] sm:$0xff]
    %v1380 = vld [vmem:[#allocation10 + $0x7d0] sm:$0xff]
    %v1381 = vld [vmem:[#allocation10 + $0x7d8] sm:$0xff]
    %v1382 = vld [vmem:[#allocation10 + $0x7e0] sm:$0xff]
    %v1383 = vld [vmem:[#allocation10 + $0x7e8] sm:$0xff]
    %v1384 = vld [vmem:[#allocation10 + $0x7f0] sm:$0xff]
    %v1385 = vld [vmem:[#allocation10 + $0x7f8] sm:$0xff]
    %v1386 = vld [vmem:[#allocation11] ss:$4 sm:$0xff]
    %v1388 = vlaneseq
    %v1389 = vshrl.u32 %v1388, 7
    %v1390 = vsub.s32 0, %v1389
    %v1391 = vrot.slane %v1386, %v1390
    %v1392 = vlaneseq
    %v1393 = vshrl.u32 %v1392, 7
    %v1394 = vsub.s32 1, %v1393
    %v1395 = vrot.slane %v1386, %v1394
    %v1396 = vlaneseq
    %v1397 = vshrl.u32 %v1396, 7
    %v1398 = vsub.s32 2, %v1397
    %v1399 = vrot.slane %v1386, %v1398
    %v1400 = vlaneseq
    %v1401 = vshrl.u32 %v1400, 7
    %v1402 = vsub.s32 3, %v1401
    %v1403 = vrot.slane %v1386, %v1402
    %v1404 = vlaneseq
    %v1405 = vshrl.u32 %v1404, 7
    %v1406 = vsub.s32 4, %v1405
    %v1407 = vrot.slane %v1386, %v1406
    %v1408 = vlaneseq
    %v1409 = vshrl.u32 %v1408, 7
    %v1410 = vsub.s32 5, %v1409
    %v1411 = vrot.slane %v1386, %v1410
    %v1412 = vlaneseq
    %v1413 = vshrl.u32 %v1412, 7
    %v1414 = vsub.s32 6, %v1413
    %v1415 = vrot.slane %v1386, %v1414
    %v1416 = vlaneseq
    %v1417 = vshrl.u32 %v1416, 7
    %v1418 = vsub.s32 7, %v1417
    %v1419 = vrot.slane %v1386, %v1418
    %v1684 = vunpack.c.l.b16 %v1130
    %v1685 = vunpack.c.h.b16 %v1130
    %v1686 = vunpack.c.l.b16 %v1131
    %v1687 = vunpack.c.h.b16 %v1131
    %v1688 = vunpack.c.l.b16 %v1132
    %v1689 = vunpack.c.h.b16 %v1132
    %v1690 = vunpack.c.l.b16 %v1133
    %v1691 = vunpack.c.h.b16 %v1133
    %v1692 = vunpack.c.l.b16 %v1134
    %v1693 = vunpack.c.h.b16 %v1134
    %v1694 = vunpack.c.l.b16 %v1135
    %v1695 = vunpack.c.h.b16 %v1135
    %v1696 = vunpack.c.l.b16 %v1136
    %v1697 = vunpack.c.h.b16 %v1136
    %v1698 = vunpack.c.l.b16 %v1137
    %v1699 = vunpack.c.h.b16 %v1137
    %v1700 = vunpack.c.l.b16 %v1138
    %v1701 = vunpack.c.h.b16 %v1138
    %v1702 = vunpack.c.l.b16 %v1139
    %v1703 = vunpack.c.h.b16 %v1139
    %v1704 = vunpack.c.l.b16 %v1140
    %v1705 = vunpack.c.h.b16 %v1140
    %v1706 = vunpack.c.l.b16 %v1141
    %v1707 = vunpack.c.h.b16 %v1141
    %v1708 = vunpack.c.l.b16 %v1142
    %v1709 = vunpack.c.h.b16 %v1142
    %v1710 = vunpack.c.l.b16 %v1143
    %v1711 = vunpack.c.h.b16 %v1143
    %v1712 = vunpack.c.l.b16 %v1144
    %v1713 = vunpack.c.h.b16 %v1144
    %v1714 = vunpack.c.l.b16 %v1145
    %v1715 = vunpack.c.h.b16 %v1145
    %v1716 = vunpack.c.l.b16 %v1146
    %v1717 = vunpack.c.h.b16 %v1146
    %v1718 = vunpack.c.l.b16 %v1147
    %v1719 = vunpack.c.h.b16 %v1147
    %v1720 = vunpack.c.l.b16 %v1148
    %v1721 = vunpack.c.h.b16 %v1148
    %v1722 = vunpack.c.l.b16 %v1149
    %v1723 = vunpack.c.h.b16 %v1149
    %v1724 = vunpack.c.l.b16 %v1150
    %v1725 = vunpack.c.h.b16 %v1150
    %v1726 = vunpack.c.l.b16 %v1151
    %v1727 = vunpack.c.h.b16 %v1151
    %v1728 = vunpack.c.l.b16 %v1152
    %v1729 = vunpack.c.h.b16 %v1152
    %v1730 = vunpack.c.l.b16 %v1153
    %v1731 = vunpack.c.h.b16 %v1153
    %v1732 = vunpack.c.l.b16 %v1154
    %v1733 = vunpack.c.h.b16 %v1154
    %v1734 = vunpack.c.l.b16 %v1155
    %v1735 = vunpack.c.h.b16 %v1155
    %v1736 = vunpack.c.l.b16 %v1156
    %v1737 = vunpack.c.h.b16 %v1156
    %v1738 = vunpack.c.l.b16 %v1157
    %v1739 = vunpack.c.h.b16 %v1157
    %v1740 = vunpack.c.l.b16 %v1158
    %v1741 = vunpack.c.h.b16 %v1158
    %v1742 = vunpack.c.l.b16 %v1159
    %v1743 = vunpack.c.h.b16 %v1159
    %v1744 = vunpack.c.l.b16 %v1160
    %v1745 = vunpack.c.h.b16 %v1160
    %v1746 = vunpack.c.l.b16 %v1161
    %v1747 = vunpack.c.h.b16 %v1161
    %v1748 = vunpack.c.l.b16 %v1162
    %v1749 = vunpack.c.h.b16 %v1162
    %v1750 = vunpack.c.l.b16 %v1163
    %v1751 = vunpack.c.h.b16 %v1163
    %v1752 = vunpack.c.l.b16 %v1164
    %v1753 = vunpack.c.h.b16 %v1164
    %v1754 = vunpack.c.l.b16 %v1165
    %v1755 = vunpack.c.h.b16 %v1165
    %v1756 = vunpack.c.l.b16 %v1166
    %v1757 = vunpack.c.h.b16 %v1166
    %v1758 = vunpack.c.l.b16 %v1167
    %v1759 = vunpack.c.h.b16 %v1167
    %v1760 = vunpack.c.l.b16 %v1168
    %v1761 = vunpack.c.h.b16 %v1168
    %v1762 = vunpack.c.l.b16 %v1169
    %v1763 = vunpack.c.h.b16 %v1169
    %v1764 = vunpack.c.l.b16 %v1170
    %v1765 = vunpack.c.h.b16 %v1170
    %v1766 = vunpack.c.l.b16 %v1171
    %v1767 = vunpack.c.h.b16 %v1171
    %v1768 = vunpack.c.l.b16 %v1172
    %v1769 = vunpack.c.h.b16 %v1172
    %v1770 = vunpack.c.l.b16 %v1173
    %v1771 = vunpack.c.h.b16 %v1173
    %v1772 = vunpack.c.l.b16 %v1174
    %v1773 = vunpack.c.h.b16 %v1174
    %v1774 = vunpack.c.l.b16 %v1175
    %v1775 = vunpack.c.h.b16 %v1175
    %v1776 = vunpack.c.l.b16 %v1176
    %v1777 = vunpack.c.h.b16 %v1176
    %v1778 = vunpack.c.l.b16 %v1177
    %v1779 = vunpack.c.h.b16 %v1177
    %v1780 = vunpack.c.l.b16 %v1178
    %v1781 = vunpack.c.h.b16 %v1178
    %v1782 = vunpack.c.l.b16 %v1179
    %v1783 = vunpack.c.h.b16 %v1179
    %v1784 = vunpack.c.l.b16 %v1180
    %v1785 = vunpack.c.h.b16 %v1180
    %v1786 = vunpack.c.l.b16 %v1181
    %v1787 = vunpack.c.h.b16 %v1181
    %v1788 = vunpack.c.l.b16 %v1182
    %v1789 = vunpack.c.h.b16 %v1182
    %v1790 = vunpack.c.l.b16 %v1183
    %v1791 = vunpack.c.h.b16 %v1183
    %v1792 = vunpack.c.l.b16 %v1184
    %v1793 = vunpack.c.h.b16 %v1184
    %v1794 = vunpack.c.l.b16 %v1185
    %v1795 = vunpack.c.h.b16 %v1185
    %v1796 = vunpack.c.l.b16 %v1186
    %v1797 = vunpack.c.h.b16 %v1186
    %v1798 = vunpack.c.l.b16 %v1187
    %v1799 = vunpack.c.h.b16 %v1187
    %v1800 = vunpack.c.l.b16 %v1188
    %v1801 = vunpack.c.h.b16 %v1188
    %v1802 = vunpack.c.l.b16 %v1189
    %v1803 = vunpack.c.h.b16 %v1189
    %v1804 = vunpack.c.l.b16 %v1190
    %v1805 = vunpack.c.h.b16 %v1190
    %v1806 = vunpack.c.l.b16 %v1191
    %v1807 = vunpack.c.h.b16 %v1191
    %v1808 = vunpack.c.l.b16 %v1192
    %v1809 = vunpack.c.h.b16 %v1192
    %v1810 = vunpack.c.l.b16 %v1193
    %v1811 = vunpack.c.h.b16 %v1193
    %v1812 = vunpack.c.l.b16 %v1194
    %v1813 = vunpack.c.h.b16 %v1194
    %v1814 = vunpack.c.l.b16 %v1195
    %v1815 = vunpack.c.h.b16 %v1195
    %v1816 = vunpack.c.l.b16 %v1196
    %v1817 = vunpack.c.h.b16 %v1196
    %v1818 = vunpack.c.l.b16 %v1197
    %v1819 = vunpack.c.h.b16 %v1197
    %v1820 = vunpack.c.l.b16 %v1198
    %v1821 = vunpack.c.h.b16 %v1198
    %v1822 = vunpack.c.l.b16 %v1199
    %v1823 = vunpack.c.h.b16 %v1199
    %v1824 = vunpack.c.l.b16 %v1200
    %v1825 = vunpack.c.h.b16 %v1200
    %v1826 = vunpack.c.l.b16 %v1201
    %v1827 = vunpack.c.h.b16 %v1201
    %v1828 = vunpack.c.l.b16 %v1202
    %v1829 = vunpack.c.h.b16 %v1202
    %v1830 = vunpack.c.l.b16 %v1203
    %v1831 = vunpack.c.h.b16 %v1203
    %v1832 = vunpack.c.l.b16 %v1204
    %v1833 = vunpack.c.h.b16 %v1204
    %v1834 = vunpack.c.l.b16 %v1205
    %v1835 = vunpack.c.h.b16 %v1205
    %v1836 = vunpack.c.l.b16 %v1206
    %v1837 = vunpack.c.h.b16 %v1206
    %v1838 = vunpack.c.l.b16 %v1207
    %v1839 = vunpack.c.h.b16 %v1207
    %v1840 = vunpack.c.l.b16 %v1208
    %v1841 = vunpack.c.h.b16 %v1208
    %v1842 = vunpack.c.l.b16 %v1209
    %v1843 = vunpack.c.h.b16 %v1209
    %v1844 = vunpack.c.l.b16 %v1210
    %v1845 = vunpack.c.h.b16 %v1210
    %v1846 = vunpack.c.l.b16 %v1211
    %v1847 = vunpack.c.h.b16 %v1211
    %v1848 = vunpack.c.l.b16 %v1212
    %v1849 = vunpack.c.h.b16 %v1212
    %v1850 = vunpack.c.l.b16 %v1213
    %v1851 = vunpack.c.h.b16 %v1213
    %v1852 = vunpack.c.l.b16 %v1214
    %v1853 = vunpack.c.h.b16 %v1214
    %v1854 = vunpack.c.l.b16 %v1215
    %v1855 = vunpack.c.h.b16 %v1215
    %v1856 = vunpack.c.l.b16 %v1216
    %v1857 = vunpack.c.h.b16 %v1216
    %v1858 = vunpack.c.l.b16 %v1217
    %v1859 = vunpack.c.h.b16 %v1217
    %v1860 = vunpack.c.l.b16 %v1218
    %v1861 = vunpack.c.h.b16 %v1218
    %v1862 = vunpack.c.l.b16 %v1219
    %v1863 = vunpack.c.h.b16 %v1219
    %v1864 = vunpack.c.l.b16 %v1220
    %v1865 = vunpack.c.h.b16 %v1220
    %v1866 = vunpack.c.l.b16 %v1221
    %v1867 = vunpack.c.h.b16 %v1221
    %v1868 = vunpack.c.l.b16 %v1222
    %v1869 = vunpack.c.h.b16 %v1222
    %v1870 = vunpack.c.l.b16 %v1223
    %v1871 = vunpack.c.h.b16 %v1223
    %v1872 = vunpack.c.l.b16 %v1224
    %v1873 = vunpack.c.h.b16 %v1224
    %v1874 = vunpack.c.l.b16 %v1225
    %v1875 = vunpack.c.h.b16 %v1225
    %v1876 = vunpack.c.l.b16 %v1226
    %v1877 = vunpack.c.h.b16 %v1226
    %v1878 = vunpack.c.l.b16 %v1227
    %v1879 = vunpack.c.h.b16 %v1227
    %v1880 = vunpack.c.l.b16 %v1228
    %v1881 = vunpack.c.h.b16 %v1228
    %v1882 = vunpack.c.l.b16 %v1229
    %v1883 = vunpack.c.h.b16 %v1229
    %v1884 = vunpack.c.l.b16 %v1230
    %v1885 = vunpack.c.h.b16 %v1230
    %v1886 = vunpack.c.l.b16 %v1231
    %v1887 = vunpack.c.h.b16 %v1231
    %v1888 = vunpack.c.l.b16 %v1232
    %v1889 = vunpack.c.h.b16 %v1232
    %v1890 = vunpack.c.l.b16 %v1233
    %v1891 = vunpack.c.h.b16 %v1233
    %v1892 = vunpack.c.l.b16 %v1234
    %v1893 = vunpack.c.h.b16 %v1234
    %v1894 = vunpack.c.l.b16 %v1235
    %v1895 = vunpack.c.h.b16 %v1235
    %v1896 = vunpack.c.l.b16 %v1236
    %v1897 = vunpack.c.h.b16 %v1236
    %v1898 = vunpack.c.l.b16 %v1237
    %v1899 = vunpack.c.h.b16 %v1237
    %v1900 = vunpack.c.l.b16 %v1238
    %v1901 = vunpack.c.h.b16 %v1238
    %v1902 = vunpack.c.l.b16 %v1239
    %v1903 = vunpack.c.h.b16 %v1239
    %v1904 = vunpack.c.l.b16 %v1240
    %v1905 = vunpack.c.h.b16 %v1240
    %v1906 = vunpack.c.l.b16 %v1241
    %v1907 = vunpack.c.h.b16 %v1241
    %v1908 = vunpack.c.l.b16 %v1242
    %v1909 = vunpack.c.h.b16 %v1242
    %v1910 = vunpack.c.l.b16 %v1243
    %v1911 = vunpack.c.h.b16 %v1243
    %v1912 = vunpack.c.l.b16 %v1244
    %v1913 = vunpack.c.h.b16 %v1244
    %v1914 = vunpack.c.l.b16 %v1245
    %v1915 = vunpack.c.h.b16 %v1245
    %v1916 = vunpack.c.l.b16 %v1246
    %v1917 = vunpack.c.h.b16 %v1246
    %v1918 = vunpack.c.l.b16 %v1247
    %v1919 = vunpack.c.h.b16 %v1247
    %v1920 = vunpack.c.l.b16 %v1248
    %v1921 = vunpack.c.h.b16 %v1248
    %v1922 = vunpack.c.l.b16 %v1249
    %v1923 = vunpack.c.h.b16 %v1249
    %v1924 = vunpack.c.l.b16 %v1250
    %v1925 = vunpack.c.h.b16 %v1250
    %v1926 = vunpack.c.l.b16 %v1251
    %v1927 = vunpack.c.h.b16 %v1251
    %v1928 = vunpack.c.l.b16 %v1252
    %v1929 = vunpack.c.h.b16 %v1252
    %v1930 = vunpack.c.l.b16 %v1253
    %v1931 = vunpack.c.h.b16 %v1253
    %v1932 = vunpack.c.l.b16 %v1254
    %v1933 = vunpack.c.h.b16 %v1254
    %v1934 = vunpack.c.l.b16 %v1255
    %v1935 = vunpack.c.h.b16 %v1255
    %v1936 = vunpack.c.l.b16 %v1256
    %v1937 = vunpack.c.h.b16 %v1256
    %v1938 = vunpack.c.l.b16 %v1257
    %v1939 = vunpack.c.h.b16 %v1257
    %v1940 = vunpack.c.l.b16 %v1258
    %v1941 = vunpack.c.h.b16 %v1258
    %v1942 = vunpack.c.l.b16 %v1259
    %v1943 = vunpack.c.h.b16 %v1259
    %v1944 = vunpack.c.l.b16 %v1260
    %v1945 = vunpack.c.h.b16 %v1260
    %v1946 = vunpack.c.l.b16 %v1261
    %v1947 = vunpack.c.h.b16 %v1261
    %v1948 = vunpack.c.l.b16 %v1262
    %v1949 = vunpack.c.h.b16 %v1262
    %v1950 = vunpack.c.l.b16 %v1263
    %v1951 = vunpack.c.h.b16 %v1263
    %v1952 = vunpack.c.l.b16 %v1264
    %v1953 = vunpack.c.h.b16 %v1264
    %v1954 = vunpack.c.l.b16 %v1265
    %v1955 = vunpack.c.h.b16 %v1265
    %v1956 = vunpack.c.l.b16 %v1266
    %v1957 = vunpack.c.h.b16 %v1266
    %v1958 = vunpack.c.l.b16 %v1267
    %v1959 = vunpack.c.h.b16 %v1267
    %v1960 = vunpack.c.l.b16 %v1268
    %v1961 = vunpack.c.h.b16 %v1268
    %v1962 = vunpack.c.l.b16 %v1269
    %v1963 = vunpack.c.h.b16 %v1269
    %v1964 = vunpack.c.l.b16 %v1270
    %v1965 = vunpack.c.h.b16 %v1270
    %v1966 = vunpack.c.l.b16 %v1271
    %v1967 = vunpack.c.h.b16 %v1271
    %v1968 = vunpack.c.l.b16 %v1272
    %v1969 = vunpack.c.h.b16 %v1272
    %v1970 = vunpack.c.l.b16 %v1273
    %v1971 = vunpack.c.h.b16 %v1273
    %v1972 = vunpack.c.l.b16 %v1274
    %v1973 = vunpack.c.h.b16 %v1274
    %v1974 = vunpack.c.l.b16 %v1275
    %v1975 = vunpack.c.h.b16 %v1275
    %v1976 = vunpack.c.l.b16 %v1276
    %v1977 = vunpack.c.h.b16 %v1276
    %v1978 = vunpack.c.l.b16 %v1277
    %v1979 = vunpack.c.h.b16 %v1277
    %v1980 = vunpack.c.l.b16 %v1278
    %v1981 = vunpack.c.h.b16 %v1278
    %v1982 = vunpack.c.l.b16 %v1279
    %v1983 = vunpack.c.h.b16 %v1279
    %v1984 = vunpack.c.l.b16 %v1280
    %v1985 = vunpack.c.h.b16 %v1280
    %v1986 = vunpack.c.l.b16 %v1281
    %v1987 = vunpack.c.h.b16 %v1281
    %v1988 = vunpack.c.l.b16 %v1282
    %v1989 = vunpack.c.h.b16 %v1282
    %v1990 = vunpack.c.l.b16 %v1283
    %v1991 = vunpack.c.h.b16 %v1283
    %v1992 = vunpack.c.l.b16 %v1284
    %v1993 = vunpack.c.h.b16 %v1284
    %v1994 = vunpack.c.l.b16 %v1285
    %v1995 = vunpack.c.h.b16 %v1285
    %v1996 = vunpack.c.l.b16 %v1286
    %v1997 = vunpack.c.h.b16 %v1286
    %v1998 = vunpack.c.l.b16 %v1287
    %v1999 = vunpack.c.h.b16 %v1287
    %v2000 = vunpack.c.l.b16 %v1288
    %v2001 = vunpack.c.h.b16 %v1288
    %v2002 = vunpack.c.l.b16 %v1289
    %v2003 = vunpack.c.h.b16 %v1289
    %v2004 = vunpack.c.l.b16 %v1290
    %v2005 = vunpack.c.h.b16 %v1290
    %v2006 = vunpack.c.l.b16 %v1291
    %v2007 = vunpack.c.h.b16 %v1291
    %v2008 = vunpack.c.l.b16 %v1292
    %v2009 = vunpack.c.h.b16 %v1292
    %v2010 = vunpack.c.l.b16 %v1293
    %v2011 = vunpack.c.h.b16 %v1293
    %v2012 = vunpack.c.l.b16 %v1294
    %v2013 = vunpack.c.h.b16 %v1294
    %v2014 = vunpack.c.l.b16 %v1295
    %v2015 = vunpack.c.h.b16 %v1295
    %v2016 = vunpack.c.l.b16 %v1296
    %v2017 = vunpack.c.h.b16 %v1296
    %v2018 = vunpack.c.l.b16 %v1297
    %v2019 = vunpack.c.h.b16 %v1297
    %v2020 = vunpack.c.l.b16 %v1298
    %v2021 = vunpack.c.h.b16 %v1298
    %v2022 = vunpack.c.l.b16 %v1299
    %v2023 = vunpack.c.h.b16 %v1299
    %v2024 = vunpack.c.l.b16 %v1300
    %v2025 = vunpack.c.h.b16 %v1300
    %v2026 = vunpack.c.l.b16 %v1301
    %v2027 = vunpack.c.h.b16 %v1301
    %v2028 = vunpack.c.l.b16 %v1302
    %v2029 = vunpack.c.h.b16 %v1302
    %v2030 = vunpack.c.l.b16 %v1303
    %v2031 = vunpack.c.h.b16 %v1303
    %v2032 = vunpack.c.l.b16 %v1304
    %v2033 = vunpack.c.h.b16 %v1304
    %v2034 = vunpack.c.l.b16 %v1305
    %v2035 = vunpack.c.h.b16 %v1305
    %v2036 = vunpack.c.l.b16 %v1306
    %v2037 = vunpack.c.h.b16 %v1306
    %v2038 = vunpack.c.l.b16 %v1307
    %v2039 = vunpack.c.h.b16 %v1307
    %v2040 = vunpack.c.l.b16 %v1308
    %v2041 = vunpack.c.h.b16 %v1308
    %v2042 = vunpack.c.l.b16 %v1309
    %v2043 = vunpack.c.h.b16 %v1309
    %v2044 = vunpack.c.l.b16 %v1310
    %v2045 = vunpack.c.h.b16 %v1310
    %v2046 = vunpack.c.l.b16 %v1311
    %v2047 = vunpack.c.h.b16 %v1311
    %v2048 = vunpack.c.l.b16 %v1312
    %v2049 = vunpack.c.h.b16 %v1312
    %v2050 = vunpack.c.l.b16 %v1313
    %v2051 = vunpack.c.h.b16 %v1313
    %v2052 = vunpack.c.l.b16 %v1314
    %v2053 = vunpack.c.h.b16 %v1314
    %v2054 = vunpack.c.l.b16 %v1315
    %v2055 = vunpack.c.h.b16 %v1315
    %v2056 = vunpack.c.l.b16 %v1316
    %v2057 = vunpack.c.h.b16 %v1316
    %v2058 = vunpack.c.l.b16 %v1317
    %v2059 = vunpack.c.h.b16 %v1317
    %v2060 = vunpack.c.l.b16 %v1318
    %v2061 = vunpack.c.h.b16 %v1318
    %v2062 = vunpack.c.l.b16 %v1319
    %v2063 = vunpack.c.h.b16 %v1319
    %v2064 = vunpack.c.l.b16 %v1320
    %v2065 = vunpack.c.h.b16 %v1320
    %v2066 = vunpack.c.l.b16 %v1321
    %v2067 = vunpack.c.h.b16 %v1321
    %v2068 = vunpack.c.l.b16 %v1322
    %v2069 = vunpack.c.h.b16 %v1322
    %v2070 = vunpack.c.l.b16 %v1323
    %v2071 = vunpack.c.h.b16 %v1323
    %v2072 = vunpack.c.l.b16 %v1324
    %v2073 = vunpack.c.h.b16 %v1324
    %v2074 = vunpack.c.l.b16 %v1325
    %v2075 = vunpack.c.h.b16 %v1325
    %v2076 = vunpack.c.l.b16 %v1326
    %v2077 = vunpack.c.h.b16 %v1326
    %v2078 = vunpack.c.l.b16 %v1327
    %v2079 = vunpack.c.h.b16 %v1327
    %v2080 = vunpack.c.l.b16 %v1328
    %v2081 = vunpack.c.h.b16 %v1328
    %v2082 = vunpack.c.l.b16 %v1329
    %v2083 = vunpack.c.h.b16 %v1329
    %v2084 = vunpack.c.l.b16 %v1330
    %v2085 = vunpack.c.h.b16 %v1330
    %v2086 = vunpack.c.l.b16 %v1331
    %v2087 = vunpack.c.h.b16 %v1331
    %v2088 = vunpack.c.l.b16 %v1332
    %v2089 = vunpack.c.h.b16 %v1332
    %v2090 = vunpack.c.l.b16 %v1333
    %v2091 = vunpack.c.h.b16 %v1333
    %v2092 = vunpack.c.l.b16 %v1334
    %v2093 = vunpack.c.h.b16 %v1334
    %v2094 = vunpack.c.l.b16 %v1335
    %v2095 = vunpack.c.h.b16 %v1335
    %v2096 = vunpack.c.l.b16 %v1336
    %v2097 = vunpack.c.h.b16 %v1336
    %v2098 = vunpack.c.l.b16 %v1337
    %v2099 = vunpack.c.h.b16 %v1337
    %v2100 = vunpack.c.l.b16 %v1338
    %v2101 = vunpack.c.h.b16 %v1338
    %v2102 = vunpack.c.l.b16 %v1339
    %v2103 = vunpack.c.h.b16 %v1339
    %v2104 = vunpack.c.l.b16 %v1340
    %v2105 = vunpack.c.h.b16 %v1340
    %v2106 = vunpack.c.l.b16 %v1341
    %v2107 = vunpack.c.h.b16 %v1341
    %v2108 = vunpack.c.l.b16 %v1342
    %v2109 = vunpack.c.h.b16 %v1342
    %v2110 = vunpack.c.l.b16 %v1343
    %v2111 = vunpack.c.h.b16 %v1343
    %v2112 = vunpack.c.l.b16 %v1344
    %v2113 = vunpack.c.h.b16 %v1344
    %v2114 = vunpack.c.l.b16 %v1345
    %v2115 = vunpack.c.h.b16 %v1345
    %v2116 = vunpack.c.l.b16 %v1346
    %v2117 = vunpack.c.h.b16 %v1346
    %v2118 = vunpack.c.l.b16 %v1347
    %v2119 = vunpack.c.h.b16 %v1347
    %v2120 = vunpack.c.l.b16 %v1348
    %v2121 = vunpack.c.h.b16 %v1348
    %v2122 = vunpack.c.l.b16 %v1349
    %v2123 = vunpack.c.h.b16 %v1349
    %v2124 = vunpack.c.l.b16 %v1350
    %v2125 = vunpack.c.h.b16 %v1350
    %v2126 = vunpack.c.l.b16 %v1351
    %v2127 = vunpack.c.h.b16 %v1351
    %v2128 = vunpack.c.l.b16 %v1352
    %v2129 = vunpack.c.h.b16 %v1352
    %v2130 = vunpack.c.l.b16 %v1353
    %v2131 = vunpack.c.h.b16 %v1353
    %v2132 = vunpack.c.l.b16 %v1354
    %v2133 = vunpack.c.h.b16 %v1354
    %v2134 = vunpack.c.l.b16 %v1355
    %v2135 = vunpack.c.h.b16 %v1355
    %v2136 = vunpack.c.l.b16 %v1356
    %v2137 = vunpack.c.h.b16 %v1356
    %v2138 = vunpack.c.l.b16 %v1357
    %v2139 = vunpack.c.h.b16 %v1357
    %v2140 = vunpack.c.l.b16 %v1358
    %v2141 = vunpack.c.h.b16 %v1358
    %v2142 = vunpack.c.l.b16 %v1359
    %v2143 = vunpack.c.h.b16 %v1359
    %v2144 = vunpack.c.l.b16 %v1360
    %v2145 = vunpack.c.h.b16 %v1360
    %v2146 = vunpack.c.l.b16 %v1361
    %v2147 = vunpack.c.h.b16 %v1361
    %v2148 = vunpack.c.l.b16 %v1362
    %v2149 = vunpack.c.h.b16 %v1362
    %v2150 = vunpack.c.l.b16 %v1363
    %v2151 = vunpack.c.h.b16 %v1363
    %v2152 = vunpack.c.l.b16 %v1364
    %v2153 = vunpack.c.h.b16 %v1364
    %v2154 = vunpack.c.l.b16 %v1365
    %v2155 = vunpack.c.h.b16 %v1365
    %v2156 = vunpack.c.l.b16 %v1366
    %v2157 = vunpack.c.h.b16 %v1366
    %v2158 = vunpack.c.l.b16 %v1367
    %v2159 = vunpack.c.h.b16 %v1367
    %v2160 = vunpack.c.l.b16 %v1368
    %v2161 = vunpack.c.h.b16 %v1368
    %v2162 = vunpack.c.l.b16 %v1369
    %v2163 = vunpack.c.h.b16 %v1369
    %v2164 = vunpack.c.l.b16 %v1370
    %v2165 = vunpack.c.h.b16 %v1370
    %v2166 = vunpack.c.l.b16 %v1371
    %v2167 = vunpack.c.h.b16 %v1371
    %v2168 = vunpack.c.l.b16 %v1372
    %v2169 = vunpack.c.h.b16 %v1372
    %v2170 = vunpack.c.l.b16 %v1373
    %v2171 = vunpack.c.h.b16 %v1373
    %v2172 = vunpack.c.l.b16 %v1374
    %v2173 = vunpack.c.h.b16 %v1374
    %v2174 = vunpack.c.l.b16 %v1375
    %v2175 = vunpack.c.h.b16 %v1375
    %v2176 = vunpack.c.l.b16 %v1376
    %v2177 = vunpack.c.h.b16 %v1376
    %v2178 = vunpack.c.l.b16 %v1377
    %v2179 = vunpack.c.h.b16 %v1377
    %v2180 = vunpack.c.l.b16 %v1378
    %v2181 = vunpack.c.h.b16 %v1378
    %v2182 = vunpack.c.l.b16 %v1379
    %v2183 = vunpack.c.h.b16 %v1379
    %v2184 = vunpack.c.l.b16 %v1380
    %v2185 = vunpack.c.h.b16 %v1380
    %v2186 = vunpack.c.l.b16 %v1381
    %v2187 = vunpack.c.h.b16 %v1381
    %v2188 = vunpack.c.l.b16 %v1382
    %v2189 = vunpack.c.h.b16 %v1382
    %v2190 = vunpack.c.l.b16 %v1383
    %v2191 = vunpack.c.h.b16 %v1383
    %v2192 = vunpack.c.l.b16 %v1384
    %v2193 = vunpack.c.h.b16 %v1384
    %v2194 = vunpack.c.l.b16 %v1385
    %v2195 = vunpack.c.h.b16 %v1385
    %v2196 = vpack.c.b16 %v1692, %v1684
    %v2197 = vpack.c.b16 %v1693, %v1685
    %v2198 = vpack.c.b16 %v1694, %v1686
    %v2199 = vpack.c.b16 %v1695, %v1687
    %v2200 = vpack.c.b16 %v1696, %v1688
    %v2201 = vpack.c.b16 %v1697, %v1689
    %v2202 = vpack.c.b16 %v1698, %v1690
    %v2203 = vpack.c.b16 %v1699, %v1691
    %v2204 = vpack.c.b16 %v1708, %v1700
    %v2205 = vpack.c.b16 %v1709, %v1701
    %v2206 = vpack.c.b16 %v1710, %v1702
    %v2207 = vpack.c.b16 %v1711, %v1703
    %v2208 = vpack.c.b16 %v1712, %v1704
    %v2209 = vpack.c.b16 %v1713, %v1705
    %v2210 = vpack.c.b16 %v1714, %v1706
    %v2211 = vpack.c.b16 %v1715, %v1707
    %v2212 = vpack.c.b16 %v1724, %v1716
    %v2213 = vpack.c.b16 %v1725, %v1717
    %v2214 = vpack.c.b16 %v1726, %v1718
    %v2215 = vpack.c.b16 %v1727, %v1719
    %v2216 = vpack.c.b16 %v1728, %v1720
    %v2217 = vpack.c.b16 %v1729, %v1721
    %v2218 = vpack.c.b16 %v1730, %v1722
    %v2219 = vpack.c.b16 %v1731, %v1723
    %v2220 = vpack.c.b16 %v1740, %v1732
    %v2221 = vpack.c.b16 %v1741, %v1733
    %v2222 = vpack.c.b16 %v1742, %v1734
    %v2223 = vpack.c.b16 %v1743, %v1735
    %v2224 = vpack.c.b16 %v1744, %v1736
    %v2225 = vpack.c.b16 %v1745, %v1737
    %v2226 = vpack.c.b16 %v1746, %v1738
    %v2227 = vpack.c.b16 %v1747, %v1739
    %v2228 = vpack.c.b16 %v1756, %v1748
    %v2229 = vpack.c.b16 %v1757, %v1749
    %v2230 = vpack.c.b16 %v1758, %v1750
    %v2231 = vpack.c.b16 %v1759, %v1751
    %v2232 = vpack.c.b16 %v1760, %v1752
    %v2233 = vpack.c.b16 %v1761, %v1753
    %v2234 = vpack.c.b16 %v1762, %v1754
    %v2235 = vpack.c.b16 %v1763, %v1755
    %v2236 = vpack.c.b16 %v1772, %v1764
    %v2237 = vpack.c.b16 %v1773, %v1765
    %v2238 = vpack.c.b16 %v1774, %v1766
    %v2239 = vpack.c.b16 %v1775, %v1767
    %v2240 = vpack.c.b16 %v1776, %v1768
    %v2241 = vpack.c.b16 %v1777, %v1769
    %v2242 = vpack.c.b16 %v1778, %v1770
    %v2243 = vpack.c.b16 %v1779, %v1771
    %v2244 = vpack.c.b16 %v1788, %v1780
    %v2245 = vpack.c.b16 %v1789, %v1781
    %v2246 = vpack.c.b16 %v1790, %v1782
    %v2247 = vpack.c.b16 %v1791, %v1783
    %v2248 = vpack.c.b16 %v1792, %v1784
    %v2249 = vpack.c.b16 %v1793, %v1785
    %v2250 = vpack.c.b16 %v1794, %v1786
    %v2251 = vpack.c.b16 %v1795, %v1787
    %v2252 = vpack.c.b16 %v1804, %v1796
    %v2253 = vpack.c.b16 %v1805, %v1797
    %v2254 = vpack.c.b16 %v1806, %v1798
    %v2255 = vpack.c.b16 %v1807, %v1799
    %v2256 = vpack.c.b16 %v1808, %v1800
    %v2257 = vpack.c.b16 %v1809, %v1801
    %v2258 = vpack.c.b16 %v1810, %v1802
    %v2259 = vpack.c.b16 %v1811, %v1803
    %v2260 = vpack.c.b16 %v1820, %v1812
    %v2261 = vpack.c.b16 %v1821, %v1813
    %v2262 = vpack.c.b16 %v1822, %v1814
    %v2263 = vpack.c.b16 %v1823, %v1815
    %v2264 = vpack.c.b16 %v1824, %v1816
    %v2265 = vpack.c.b16 %v1825, %v1817
    %v2266 = vpack.c.b16 %v1826, %v1818
    %v2267 = vpack.c.b16 %v1827, %v1819
    %v2268 = vpack.c.b16 %v1836, %v1828
    %v2269 = vpack.c.b16 %v1837, %v1829
    %v2270 = vpack.c.b16 %v1838, %v1830
    %v2271 = vpack.c.b16 %v1839, %v1831
    %v2272 = vpack.c.b16 %v1840, %v1832
    %v2273 = vpack.c.b16 %v1841, %v1833
    %v2274 = vpack.c.b16 %v1842, %v1834
    %v2275 = vpack.c.b16 %v1843, %v1835
    %v2276 = vpack.c.b16 %v1852, %v1844
    %v2277 = vpack.c.b16 %v1853, %v1845
    %v2278 = vpack.c.b16 %v1854, %v1846
    %v2279 = vpack.c.b16 %v1855, %v1847
    %v2280 = vpack.c.b16 %v1856, %v1848
    %v2281 = vpack.c.b16 %v1857, %v1849
    %v2282 = vpack.c.b16 %v1858, %v1850
    %v2283 = vpack.c.b16 %v1859, %v1851
    %v2284 = vpack.c.b16 %v1868, %v1860
    %v2285 = vpack.c.b16 %v1869, %v1861
    %v2286 = vpack.c.b16 %v1870, %v1862
    %v2287 = vpack.c.b16 %v1871, %v1863
    %v2288 = vpack.c.b16 %v1872, %v1864
    %v2289 = vpack.c.b16 %v1873, %v1865
    %v2290 = vpack.c.b16 %v1874, %v1866
    %v2291 = vpack.c.b16 %v1875, %v1867
    %v2292 = vpack.c.b16 %v1884, %v1876
    %v2293 = vpack.c.b16 %v1885, %v1877
    %v2294 = vpack.c.b16 %v1886, %v1878
    %v2295 = vpack.c.b16 %v1887, %v1879
    %v2296 = vpack.c.b16 %v1888, %v1880
    %v2297 = vpack.c.b16 %v1889, %v1881
    %v2298 = vpack.c.b16 %v1890, %v1882
    %v2299 = vpack.c.b16 %v1891, %v1883
    %v2300 = vpack.c.b16 %v1900, %v1892
    %v2301 = vpack.c.b16 %v1901, %v1893
    %v2302 = vpack.c.b16 %v1902, %v1894
    %v2303 = vpack.c.b16 %v1903, %v1895
    %v2304 = vpack.c.b16 %v1904, %v1896
    %v2305 = vpack.c.b16 %v1905, %v1897
    %v2306 = vpack.c.b16 %v1906, %v1898
    %v2307 = vpack.c.b16 %v1907, %v1899
    %v2308 = vpack.c.b16 %v1916, %v1908
    %v2309 = vpack.c.b16 %v1917, %v1909
    %v2310 = vpack.c.b16 %v1918, %v1910
    %v2311 = vpack.c.b16 %v1919, %v1911
    %v2312 = vpack.c.b16 %v1920, %v1912
    %v2313 = vpack.c.b16 %v1921, %v1913
    %v2314 = vpack.c.b16 %v1922, %v1914
    %v2315 = vpack.c.b16 %v1923, %v1915
    %v2316 = vpack.c.b16 %v1932, %v1924
    %v2317 = vpack.c.b16 %v1933, %v1925
    %v2318 = vpack.c.b16 %v1934, %v1926
    %v2319 = vpack.c.b16 %v1935, %v1927
    %v2320 = vpack.c.b16 %v1936, %v1928
    %v2321 = vpack.c.b16 %v1937, %v1929
    %v2322 = vpack.c.b16 %v1938, %v1930
    %v2323 = vpack.c.b16 %v1939, %v1931
    %v2324 = vpack.c.b16 %v1948, %v1940
    %v2325 = vpack.c.b16 %v1949, %v1941
    %v2326 = vpack.c.b16 %v1950, %v1942
    %v2327 = vpack.c.b16 %v1951, %v1943
    %v2328 = vpack.c.b16 %v1952, %v1944
    %v2329 = vpack.c.b16 %v1953, %v1945
    %v2330 = vpack.c.b16 %v1954, %v1946
    %v2331 = vpack.c.b16 %v1955, %v1947
    %v2332 = vpack.c.b16 %v1964, %v1956
    %v2333 = vpack.c.b16 %v1965, %v1957
    %v2334 = vpack.c.b16 %v1966, %v1958
    %v2335 = vpack.c.b16 %v1967, %v1959
    %v2336 = vpack.c.b16 %v1968, %v1960
    %v2337 = vpack.c.b16 %v1969, %v1961
    %v2338 = vpack.c.b16 %v1970, %v1962
    %v2339 = vpack.c.b16 %v1971, %v1963
    %v2340 = vpack.c.b16 %v1980, %v1972
    %v2341 = vpack.c.b16 %v1981, %v1973
    %v2342 = vpack.c.b16 %v1982, %v1974
    %v2343 = vpack.c.b16 %v1983, %v1975
    %v2344 = vpack.c.b16 %v1984, %v1976
    %v2345 = vpack.c.b16 %v1985, %v1977
    %v2346 = vpack.c.b16 %v1986, %v1978
    %v2347 = vpack.c.b16 %v1987, %v1979
    %v2348 = vpack.c.b16 %v1996, %v1988
    %v2349 = vpack.c.b16 %v1997, %v1989
    %v2350 = vpack.c.b16 %v1998, %v1990
    %v2351 = vpack.c.b16 %v1999, %v1991
    %v2352 = vpack.c.b16 %v2000, %v1992
    %v2353 = vpack.c.b16 %v2001, %v1993
    %v2354 = vpack.c.b16 %v2002, %v1994
    %v2355 = vpack.c.b16 %v2003, %v1995
    %v2356 = vpack.c.b16 %v2012, %v2004
    %v2357 = vpack.c.b16 %v2013, %v2005
    %v2358 = vpack.c.b16 %v2014, %v2006
    %v2359 = vpack.c.b16 %v2015, %v2007
    %v2360 = vpack.c.b16 %v2016, %v2008
    %v2361 = vpack.c.b16 %v2017, %v2009
    %v2362 = vpack.c.b16 %v2018, %v2010
    %v2363 = vpack.c.b16 %v2019, %v2011
    %v2364 = vpack.c.b16 %v2028, %v2020
    %v2365 = vpack.c.b16 %v2029, %v2021
    %v2366 = vpack.c.b16 %v2030, %v2022
    %v2367 = vpack.c.b16 %v2031, %v2023
    %v2368 = vpack.c.b16 %v2032, %v2024
    %v2369 = vpack.c.b16 %v2033, %v2025
    %v2370 = vpack.c.b16 %v2034, %v2026
    %v2371 = vpack.c.b16 %v2035, %v2027
    %v2372 = vpack.c.b16 %v2044, %v2036
    %v2373 = vpack.c.b16 %v2045, %v2037
    %v2374 = vpack.c.b16 %v2046, %v2038
    %v2375 = vpack.c.b16 %v2047, %v2039
    %v2376 = vpack.c.b16 %v2048, %v2040
    %v2377 = vpack.c.b16 %v2049, %v2041
    %v2378 = vpack.c.b16 %v2050, %v2042
    %v2379 = vpack.c.b16 %v2051, %v2043
    %v2380 = vpack.c.b16 %v2060, %v2052
    %v2381 = vpack.c.b16 %v2061, %v2053
    %v2382 = vpack.c.b16 %v2062, %v2054
    %v2383 = vpack.c.b16 %v2063, %v2055
    %v2384 = vpack.c.b16 %v2064, %v2056
    %v2385 = vpack.c.b16 %v2065, %v2057
    %v2386 = vpack.c.b16 %v2066, %v2058
    %v2387 = vpack.c.b16 %v2067, %v2059
    %v2388 = vpack.c.b16 %v2076, %v2068
    %v2389 = vpack.c.b16 %v2077, %v2069
    %v2390 = vpack.c.b16 %v2078, %v2070
    %v2391 = vpack.c.b16 %v2079, %v2071
    %v2392 = vpack.c.b16 %v2080, %v2072
    %v2393 = vpack.c.b16 %v2081, %v2073
    %v2394 = vpack.c.b16 %v2082, %v2074
    %v2395 = vpack.c.b16 %v2083, %v2075
    %v2396 = vpack.c.b16 %v2092, %v2084
    %v2397 = vpack.c.b16 %v2093, %v2085
    %v2398 = vpack.c.b16 %v2094, %v2086
    %v2399 = vpack.c.b16 %v2095, %v2087
    %v2400 = vpack.c.b16 %v2096, %v2088
    %v2401 = vpack.c.b16 %v2097, %v2089
    %v2402 = vpack.c.b16 %v2098, %v2090
    %v2403 = vpack.c.b16 %v2099, %v2091
    %v2404 = vpack.c.b16 %v2108, %v2100
    %v2405 = vpack.c.b16 %v2109, %v2101
    %v2406 = vpack.c.b16 %v2110, %v2102
    %v2407 = vpack.c.b16 %v2111, %v2103
    %v2408 = vpack.c.b16 %v2112, %v2104
    %v2409 = vpack.c.b16 %v2113, %v2105
    %v2410 = vpack.c.b16 %v2114, %v2106
    %v2411 = vpack.c.b16 %v2115, %v2107
    %v2412 = vpack.c.b16 %v2124, %v2116
    %v2413 = vpack.c.b16 %v2125, %v2117
    %v2414 = vpack.c.b16 %v2126, %v2118
    %v2415 = vpack.c.b16 %v2127, %v2119
    %v2416 = vpack.c.b16 %v2128, %v2120
    %v2417 = vpack.c.b16 %v2129, %v2121
    %v2418 = vpack.c.b16 %v2130, %v2122
    %v2419 = vpack.c.b16 %v2131, %v2123
    %v2420 = vpack.c.b16 %v2140, %v2132
    %v2421 = vpack.c.b16 %v2141, %v2133
    %v2422 = vpack.c.b16 %v2142, %v2134
    %v2423 = vpack.c.b16 %v2143, %v2135
    %v2424 = vpack.c.b16 %v2144, %v2136
    %v2425 = vpack.c.b16 %v2145, %v2137
    %v2426 = vpack.c.b16 %v2146, %v2138
    %v2427 = vpack.c.b16 %v2147, %v2139
    %v2428 = vpack.c.b16 %v2156, %v2148
    %v2429 = vpack.c.b16 %v2157, %v2149
    %v2430 = vpack.c.b16 %v2158, %v2150
    %v2431 = vpack.c.b16 %v2159, %v2151
    %v2432 = vpack.c.b16 %v2160, %v2152
    %v2433 = vpack.c.b16 %v2161, %v2153
    %v2434 = vpack.c.b16 %v2162, %v2154
    %v2435 = vpack.c.b16 %v2163, %v2155
    %v2436 = vpack.c.b16 %v2172, %v2164
    %v2437 = vpack.c.b16 %v2173, %v2165
    %v2438 = vpack.c.b16 %v2174, %v2166
    %v2439 = vpack.c.b16 %v2175, %v2167
    %v2440 = vpack.c.b16 %v2176, %v2168
    %v2441 = vpack.c.b16 %v2177, %v2169
    %v2442 = vpack.c.b16 %v2178, %v2170
    %v2443 = vpack.c.b16 %v2179, %v2171
    %v2444 = vpack.c.b16 %v2188, %v2180
    %v2445 = vpack.c.b16 %v2189, %v2181
    %v2446 = vpack.c.b16 %v2190, %v2182
    %v2447 = vpack.c.b16 %v2191, %v2183
    %v2448 = vpack.c.b16 %v2192, %v2184
    %v2449 = vpack.c.b16 %v2193, %v2185
    %v2450 = vpack.c.b16 %v2194, %v2186
    %v2451 = vpack.c.b16 %v2195, %v2187
    %2708 = vmatprep.subr.bf16.mxu0 %v2197
    %2709 = vmatpush1.bf16.msra.mxu0 %v2196
    %2710 = vmatprep.subr.bf16.mxu0 %v2205
    %2711 = vmatpush1.bf16.msra.mxu0 %v2204
    %2712 = vmatprep.subr.bf16.mxu0 %v2213
    %2713 = vmatpush1.bf16.msra.mxu0 %v2212
    %2714 = vmatprep.subr.bf16.mxu0 %v2221
    %2715 = vmatpush1.bf16.msra.mxu0 %v2220
    %2716 = vmatprep.subr.bf16.mxu0 %v2229
    %2717 = vmatpush1.bf16.msra.mxu0 %v2228
    %2718 = vmatprep.subr.bf16.mxu0 %v2237
    %2719 = vmatpush1.bf16.msra.mxu0 %v2236
    %2720 = vmatprep.subr.bf16.mxu0 %v2245
    %2721 = vmatpush1.bf16.msra.mxu0 %v2244
    %2722 = vmatprep.subr.bf16.mxu0 %v2253
    %2723 = vmatpush1.bf16.msra.mxu0 %v2252
    %2724 = vmatprep.subr.bf16.mxu0 %v2261
    %2725 = vmatpush1.bf16.msra.mxu0 %v2260
    %2726 = vmatprep.subr.bf16.mxu0 %v2269
    %2727 = vmatpush1.bf16.msra.mxu0 %v2268
    %2728 = vmatprep.subr.bf16.mxu0 %v2277
    %2729 = vmatpush1.bf16.msra.mxu0 %v2276
    %2730 = vmatprep.subr.bf16.mxu0 %v2285
    %2731 = vmatpush1.bf16.msra.mxu0 %v2284
    %2732 = vmatprep.subr.bf16.mxu0 %v2293
    %2733 = vmatpush1.bf16.msra.mxu0 %v2292
    %2734 = vmatprep.subr.bf16.mxu0 %v2301
    %2735 = vmatpush1.bf16.msra.mxu0 %v2300
    %2736 = vmatprep.subr.bf16.mxu0 %v2309
    %2737 = vmatpush1.bf16.msra.mxu0 %v2308
    %2738 = vmatprep.subr.bf16.mxu0 %v2317
    %2739 = vmatpush1.bf16.msra.mxu0 %v2316
    %2740 = vmatprep.mubr.bf16.mxu0 %v1127
    %2741 = vmatmul.mubr.bf16.gmra.mrb[0].mxu0 %v1126
    %v2742 = vpop.f32.mrb[0].mxu0
    %v2743 = vadd.f32 %v1391, %v2742
    %v2744 = vpop.f32.mrb[0].mxu0
    %v2745 = vadd.f32 %v1395, %v2744
    %v2746 = vpop.f32.mrb[0].mxu0
    %v2747 = vadd.f32 %v1391, %v2746
    %v2748 = vpop.f32.mrb[0].mxu0
    %v2749 = vadd.f32 %v1395, %v2748
    %2750 = vdwg.mxu0
    %2751 = vmatprep.subr.bf16.mxu0 %v2325
    %2752 = vmatpush1.bf16.msra.mxu0 %v2324
    %2753 = vmatprep.subr.bf16.mxu0 %v2333
    %2754 = vmatpush1.bf16.msra.mxu0 %v2332
    %2755 = vmatprep.subr.bf16.mxu0 %v2341
    %2756 = vmatpush1.bf16.msra.mxu0 %v2340
    %2757 = vmatprep.subr.bf16.mxu0 %v2349
    %2758 = vmatpush1.bf16.msra.mxu0 %v2348
    %2759 = vmatprep.subr.bf16.mxu0 %v2357
    %2760 = vmatpush1.bf16.msra.mxu0 %v2356
    %2761 = vmatprep.subr.bf16.mxu0 %v2365
    %2762 = vmatpush1.bf16.msra.mxu0 %v2364
    %2763 = vmatprep.subr.bf16.mxu0 %v2373
    %2764 = vmatpush1.bf16.msra.mxu0 %v2372
    %2765 = vmatprep.subr.bf16.mxu0 %v2381
    %2766 = vmatpush1.bf16.msra.mxu0 %v2380
    %2767 = vmatprep.subr.bf16.mxu0 %v2389
    %2768 = vmatpush1.bf16.msra.mxu0 %v2388
    %2769 = vmatprep.subr.bf16.mxu0 %v2397
    %2770 = vmatpush1.bf16.msra.mxu0 %v2396
    %2771 = vmatprep.subr.bf16.mxu0 %v2405
    %2772 = vmatpush1.bf16.msra.mxu0 %v2404
    %2773 = vmatprep.subr.bf16.mxu0 %v2413
    %2774 = vmatpush1.bf16.msra.mxu0 %v2412
    %2775 = vmatprep.subr.bf16.mxu0 %v2421
    %2776 = vmatpush1.bf16.msra.mxu0 %v2420
    %2777 = vmatprep.subr.bf16.mxu0 %v2429
    %2778 = vmatpush1.bf16.msra.mxu0 %v2428
    %2779 = vmatprep.subr.bf16.mxu0 %v2437
    %2780 = vmatpush1.bf16.msra.mxu0 %v2436
    %2781 = vmatprep.subr.bf16.mxu0 %v2445
    %2782 = vmatpush1.bf16.msra.mxu0 %v2444
    %2783 = vmatprep.mubr.bf16.mxu0 %v1129
    %2784 = vmatmul.mubr.bf16.gmra.mrb[0].mxu0 %v1128
    %v2785 = vpop.f32.mrb[0].mxu0
    %v2786 = vadd.f32 %v2743, %v2785
    %v2787 = vpop.f32.mrb[0].mxu0
    %v2788 = vadd.f32 %v2745, %v2787
    %v2789 = vpop.f32.mrb[0].mxu0
    %v2790 = vadd.f32 %v2747, %v2789
    %v2791 = vpop.f32.mrb[0].mxu0
    %v2792 = vadd.f32 %v2749, %v2791
    %2793 = vdwg.mxu0
    %2794 = vmatprep.subr.bf16.mxu0 %v2199
    %2795 = vmatpush1.bf16.msra.mxu0 %v2198
    %2796 = vmatprep.subr.bf16.mxu0 %v2207
    %2797 = vmatpush1.bf16.msra.mxu0 %v2206
    %2798 = vmatprep.subr.bf16.mxu0 %v2215
    %2799 = vmatpush1.bf16.msra.mxu0 %v2214
    %2800 = vmatprep.subr.bf16.mxu0 %v2223
    %2801 = vmatpush1.bf16.msra.mxu0 %v2222
    %2802 = vmatprep.subr.bf16.mxu0 %v2231
    %2803 = vmatpush1.bf16.msra.mxu0 %v2230
    %2804 = vmatprep.subr.bf16.mxu0 %v2239
    %2805 = vmatpush1.bf16.msra.mxu0 %v2238
    %2806 = vmatprep.subr.bf16.mxu0 %v2247
    %2807 = vmatpush1.bf16.msra.mxu0 %v2246
    %2808 = vmatprep.subr.bf16.mxu0 %v2255
    %2809 = vmatpush1.bf16.msra.mxu0 %v2254
    %2810 = vmatprep.subr.bf16.mxu0 %v2263
    %2811 = vmatpush1.bf16.msra.mxu0 %v2262
    %2812 = vmatprep.subr.bf16.mxu0 %v2271
    %2813 = vmatpush1.bf16.msra.mxu0 %v2270
    %2814 = vmatprep.subr.bf16.mxu0 %v2279
    %2815 = vmatpush1.bf16.msra.mxu0 %v2278
    %2816 = vmatprep.subr.bf16.mxu0 %v2287
    %2817 = vmatpush1.bf16.msra.mxu0 %v2286
    %2818 = vmatprep.subr.bf16.mxu0 %v2295
    %2819 = vmatpush1.bf16.msra.mxu0 %v2294
    %2820 = vmatprep.subr.bf16.mxu0 %v2303
    %2821 = vmatpush1.bf16.msra.mxu0 %v2302
    %2822 = vmatprep.subr.bf16.mxu0 %v2311
    %2823 = vmatpush1.bf16.msra.mxu0 %v2310
    %2824 = vmatprep.subr.bf16.mxu0 %v2319
    %2825 = vmatpush1.bf16.msra.mxu0 %v2318
    %2826 = vmatprep.mubr.bf16.mxu0 %v1127
    %2827 = vmatmul.mubr.bf16.gmra.mrb[0].mxu0 %v1126
    %v2828 = vpop.f32.mrb[0].mxu0
    %v2829 = vadd.f32 %v1399, %v2828
    %v2830 = vpop.f32.mrb[0].mxu0
    %v2831 = vadd.f32 %v1403, %v2830
    %v2832 = vpop.f32.mrb[0].mxu0
    %v2833 = vadd.f32 %v1399, %v2832
    %v2834 = vpop.f32.mrb[0].mxu0
    %v2835 = vadd.f32 %v1403, %v2834
    %2836 = vdwg.mxu0
    %2837 = vmatprep.subr.bf16.mxu0 %v2327
    %2838 = vmatpush1.bf16.msra.mxu0 %v2326
    %2839 = vmatprep.subr.bf16.mxu0 %v2335
    %2840 = vmatpush1.bf16.msra.mxu0 %v2334
    %2841 = vmatprep.subr.bf16.mxu0 %v2343
    %2842 = vmatpush1.bf16.msra.mxu0 %v2342
    %2843 = vmatprep.subr.bf16.mxu0 %v2351
    %2844 = vmatpush1.bf16.msra.mxu0 %v2350
    %2845 = vmatprep.subr.bf16.mxu0 %v2359
    %2846 = vmatpush1.bf16.msra.mxu0 %v2358
    %2847 = vmatprep.subr.bf16.mxu0 %v2367
    %2848 = vmatpush1.bf16.msra.mxu0 %v2366
    %2849 = vmatprep.subr.bf16.mxu0 %v2375
    %2850 = vmatpush1.bf16.msra.mxu0 %v2374
    %2851 = vmatprep.subr.bf16.mxu0 %v2383
    %2852 = vmatpush1.bf16.msra.mxu0 %v2382
    %2853 = vmatprep.subr.bf16.mxu0 %v2391
    %2854 = vmatpush1.bf16.msra.mxu0 %v2390
    %2855 = vmatprep.subr.bf16.mxu0 %v2399
    %2856 = vmatpush1.bf16.msra.mxu0 %v2398
    %2857 = vmatprep.subr.bf16.mxu0 %v2407
    %2858 = vmatpush1.bf16.msra.mxu0 %v2406
    %2859 = vmatprep.subr.bf16.mxu0 %v2415
    %2860 = vmatpush1.bf16.msra.mxu0 %v2414
    %2861 = vmatprep.subr.bf16.mxu0 %v2423
    %2862 = vmatpush1.bf16.msra.mxu0 %v2422
    %2863 = vmatprep.subr.bf16.mxu0 %v2431
    %2864 = vmatpush1.bf16.msra.mxu0 %v2430
    %2865 = vmatprep.subr.bf16.mxu0 %v2439
    %2866 = vmatpush1.bf16.msra.mxu0 %v2438
    %2867 = vmatprep.subr.bf16.mxu0 %v2447
    %2868 = vmatpush1.bf16.msra.mxu0 %v2446
    %2869 = vmatprep.mubr.bf16.mxu0 %v1129
    %2870 = vmatmul.mubr.bf16.gmra.mrb[0].mxu0 %v1128
    %v2871 = vpop.f32.mrb[0].mxu0
    %v2872 = vadd.f32 %v2829, %v2871
    %v2873 = vpop.f32.mrb[0].mxu0
    %v2874 = vadd.f32 %v2831, %v2873
    %v2875 = vpop.f32.mrb[0].mxu0
    %v2876 = vadd.f32 %v2833, %v2875
    %v2877 = vpop.f32.mrb[0].mxu0
    %v2878 = vadd.f32 %v2835, %v2877
    %2879 = vdwg.mxu0
    %2880 = vmatprep.subr.bf16.mxu0 %v2201
    %2881 = vmatpush1.bf16.msra.mxu0 %v2200
    %2882 = vmatprep.subr.bf16.mxu0 %v2209
    %2883 = vmatpush1.bf16.msra.mxu0 %v2208
    %2884 = vmatprep.subr.bf16.mxu0 %v2217
    %2885 = vmatpush1.bf16.msra.mxu0 %v2216
    %2886 = vmatprep.subr.bf16.mxu0 %v2225
    %2887 = vmatpush1.bf16.msra.mxu0 %v2224
    %2888 = vmatprep.subr.bf16.mxu0 %v2233
    %2889 = vmatpush1.bf16.msra.mxu0 %v2232
    %2890 = vmatprep.subr.bf16.mxu0 %v2241
    %2891 = vmatpush1.bf16.msra.mxu0 %v2240
    %2892 = vmatprep.subr.bf16.mxu0 %v2249
    %2893 = vmatpush1.bf16.msra.mxu0 %v2248
    %2894 = vmatprep.subr.bf16.mxu0 %v2257
    %2895 = vmatpush1.bf16.msra.mxu0 %v2256
    %2896 = vmatprep.subr.bf16.mxu0 %v2265
    %2897 = vmatpush1.bf16.msra.mxu0 %v2264
    %2898 = vmatprep.subr.bf16.mxu0 %v2273
    %2899 = vmatpush1.bf16.msra.mxu0 %v2272
    %2900 = vmatprep.subr.bf16.mxu0 %v2281
    %2901 = vmatpush1.bf16.msra.mxu0 %v2280
    %2902 = vmatprep.subr.bf16.mxu0 %v2289
    %2903 = vmatpush1.bf16.msra.mxu0 %v2288
    %2904 = vmatprep.subr.bf16.mxu0 %v2297
    %2905 = vmatpush1.bf16.msra.mxu0 %v2296
    %2906 = vmatprep.subr.bf16.mxu0 %v2305
    %2907 = vmatpush1.bf16.msra.mxu0 %v2304
    %2908 = vmatprep.subr.bf16.mxu0 %v2313
    %2909 = vmatpush1.bf16.msra.mxu0 %v2312
    %2910 = vmatprep.subr.bf16.mxu0 %v2321
    %2911 = vmatpush1.bf16.msra.mxu0 %v2320
    %2912 = vmatprep.mubr.bf16.mxu0 %v1127
    %2913 = vmatmul.mubr.bf16.gmra.mrb[0].mxu0 %v1126
    %v2914 = vpop.f32.mrb[0].mxu0
    %v2915 = vadd.f32 %v1407, %v2914
    %v2916 = vpop.f32.mrb[0].mxu0
    %v2917 = vadd.f32 %v1411, %v2916
    %v2918 = vpop.f32.mrb[0].mxu0
    %v2919 = vadd.f32 %v1407, %v2918
    %v2920 = vpop.f32.mrb[0].mxu0
    %v2921 = vadd.f32 %v1411, %v2920
    %2922 = vdwg.mxu0
    %2923 = vmatprep.subr.bf16.mxu0 %v2329
    %2924 = vmatpush1.bf16.msra.mxu0 %v2328
    %2925 = vmatprep.subr.bf16.mxu0 %v2337
    %2926 = vmatpush1.bf16.msra.mxu0 %v2336
    %2927 = vmatprep.subr.bf16.mxu0 %v2345
    %2928 = vmatpush1.bf16.msra.mxu0 %v2344
    %2929 = vmatprep.subr.bf16.mxu0 %v2353
    %2930 = vmatpush1.bf16.msra.mxu0 %v2352
    %2931 = vmatprep.subr.bf16.mxu0 %v2361
    %2932 = vmatpush1.bf16.msra.mxu0 %v2360
    %2933 = vmatprep.subr.bf16.mxu0 %v2369
    %2934 = vmatpush1.bf16.msra.mxu0 %v2368
    %2935 = vmatprep.subr.bf16.mxu0 %v2377
    %2936 = vmatpush1.bf16.msra.mxu0 %v2376
    %2937 = vmatprep.subr.bf16.mxu0 %v2385
    %2938 = vmatpush1.bf16.msra.mxu0 %v2384
    %2939 = vmatprep.subr.bf16.mxu0 %v2393
    %2940 = vmatpush1.bf16.msra.mxu0 %v2392
    %2941 = vmatprep.subr.bf16.mxu0 %v2401
    %2942 = vmatpush1.bf16.msra.mxu0 %v2400
    %2943 = vmatprep.subr.bf16.mxu0 %v2409
    %2944 = vmatpush1.bf16.msra.mxu0 %v2408
    %2945 = vmatprep.subr.bf16.mxu0 %v2417
    %2946 = vmatpush1.bf16.msra.mxu0 %v2416
    %2947 = vmatprep.subr.bf16.mxu0 %v2425
    %2948 = vmatpush1.bf16.msra.mxu0 %v2424
    %2949 = vmatprep.subr.bf16.mxu0 %v2433
    %2950 = vmatpush1.bf16.msra.mxu0 %v2432
    %2951 = vmatprep.subr.bf16.mxu0 %v2441
    %2952 = vmatpush1.bf16.msra.mxu0 %v2440
    %2953 = vmatprep.subr.bf16.mxu0 %v2449
    %2954 = vmatpush1.bf16.msra.mxu0 %v2448
    %2955 = vmatprep.mubr.bf16.mxu0 %v1129
    %2956 = vmatmul.mubr.bf16.gmra.mrb[0].mxu0 %v1128
    %v2957 = vpop.f32.mrb[0].mxu0
    %v2958 = vadd.f32 %v2915, %v2957
    %v2959 = vpop.f32.mrb[0].mxu0
    %v2960 = vadd.f32 %v2917, %v2959
    %v2961 = vpop.f32.mrb[0].mxu0
    %v2962 = vadd.f32 %v2919, %v2961
    %v2963 = vpop.f32.mrb[0].mxu0
    %v2964 = vadd.f32 %v2921, %v2963
    %2965 = vdwg.mxu0
    %2966 = vmatprep.subr.bf16.mxu0 %v2203
    %2967 = vmatpush1.bf16.msra.mxu0 %v2202
    %2968 = vmatprep.subr.bf16.mxu0 %v2211
    %2969 = vmatpush1.bf16.msra.mxu0 %v2210
    %2970 = vmatprep.subr.bf16.mxu0 %v2219
    %2971 = vmatpush1.bf16.msra.mxu0 %v2218
    %2972 = vmatprep.subr.bf16.mxu0 %v2227
    %2973 = vmatpush1.bf16.msra.mxu0 %v2226
    %2974 = vmatprep.subr.bf16.mxu0 %v2235
    %2975 = vmatpush1.bf16.msra.mxu0 %v2234
    %2976 = vmatprep.subr.bf16.mxu0 %v2243
    %2977 = vmatpush1.bf16.msra.mxu0 %v2242
    %2978 = vmatprep.subr.bf16.mxu0 %v2251
    %2979 = vmatpush1.bf16.msra.mxu0 %v2250
    %2980 = vmatprep.subr.bf16.mxu0 %v2259
    %2981 = vmatpush1.bf16.msra.mxu0 %v2258
    %2982 = vmatprep.subr.bf16.mxu0 %v2267
    %2983 = vmatpush1.bf16.msra.mxu0 %v2266
    %2984 = vmatprep.subr.bf16.mxu0 %v2275
    %2985 = vmatpush1.bf16.msra.mxu0 %v2274
    %2986 = vmatprep.subr.bf16.mxu0 %v2283
    %2987 = vmatpush1.bf16.msra.mxu0 %v2282
    %2988 = vmatprep.subr.bf16.mxu0 %v2291
    %2989 = vmatpush1.bf16.msra.mxu0 %v2290
    %2990 = vmatprep.subr.bf16.mxu0 %v2299
    %2991 = vmatpush1.bf16.msra.mxu0 %v2298
    %2992 = vmatprep.subr.bf16.mxu0 %v2307
    %2993 = vmatpush1.bf16.msra.mxu0 %v2306
    %2994 = vmatprep.subr.bf16.mxu0 %v2315
    %2995 = vmatpush1.bf16.msra.mxu0 %v2314
    %2996 = vmatprep.subr.bf16.mxu0 %v2323
    %2997 = vmatpush1.bf16.msra.mxu0 %v2322
    %2998 = vmatprep.mubr.bf16.mxu0 %v1127
    %2999 = vmatmul.mubr.bf16.gmra.mrb[0].mxu0 %v1126
    %v3000 = vpop.f32.mrb[0].mxu0
    %v3001 = vadd.f32 %v1415, %v3000
    %v3002 = vpop.f32.mrb[0].mxu0
    %v3003 = vadd.f32 %v1419, %v3002
    %v3004 = vpop.f32.mrb[0].mxu0
    %v3005 = vadd.f32 %v1415, %v3004
    %v3006 = vpop.f32.mrb[0].mxu0
    %v3007 = vadd.f32 %v1419, %v3006
    %3008 = vdwg.mxu0
    %3009 = vmatprep.subr.bf16.mxu0 %v2331
    %3010 = vmatpush1.bf16.msra.mxu0 %v2330
    %3011 = vmatprep.subr.bf16.mxu0 %v2339
    %3012 = vmatpush1.bf16.msra.mxu0 %v2338
    %3013 = vmatprep.subr.bf16.mxu0 %v2347
    %3014 = vmatpush1.bf16.msra.mxu0 %v2346
    %3015 = vmatprep.subr.bf16.mxu0 %v2355
    %3016 = vmatpush1.bf16.msra.mxu0 %v2354
    %3017 = vmatprep.subr.bf16.mxu0 %v2363
    %3018 = vmatpush1.bf16.msra.mxu0 %v2362
    %3019 = vmatprep.subr.bf16.mxu0 %v2371
    %3020 = vmatpush1.bf16.msra.mxu0 %v2370
    %3021 = vmatprep.subr.bf16.mxu0 %v2379
    %3022 = vmatpush1.bf16.msra.mxu0 %v2378
    %3023 = vmatprep.subr.bf16.mxu0 %v2387
    %3024 = vmatpush1.bf16.msra.mxu0 %v2386
    %3025 = vmatprep.subr.bf16.mxu0 %v2395
    %3026 = vmatpush1.bf16.msra.mxu0 %v2394
    %3027 = vmatprep.subr.bf16.mxu0 %v2403
    %3028 = vmatpush1.bf16.msra.mxu0 %v2402
    %3029 = vmatprep.subr.bf16.mxu0 %v2411
    %3030 = vmatpush1.bf16.msra.mxu0 %v2410
    %3031 = vmatprep.subr.bf16.mxu0 %v2419
    %3032 = vmatpush1.bf16.msra.mxu0 %v2418
    %3033 = vmatprep.subr.bf16.mxu0 %v2427
    %3034 = vmatpush1.bf16.msra.mxu0 %v2426
    %3035 = vmatprep.subr.bf16.mxu0 %v2435
    %3036 = vmatpush1.bf16.msra.mxu0 %v2434
    %3037 = vmatprep.subr.bf16.mxu0 %v2443
    %3038 = vmatpush1.bf16.msra.mxu0 %v2442
    %3039 = vmatprep.subr.bf16.mxu0 %v2451
    %3040 = vmatpush1.bf16.msra.mxu0 %v2450
    %3041 = vmatprep.mubr.bf16.mxu0 %v1129
    %3042 = vmatmul.mubr.bf16.gmra.mrb[0].mxu0 %v1128
    %v3043 = vpop.f32.mrb[0].mxu0
    %v3044 = vadd.f32 %v3001, %v3043
    %v3045 = vpop.f32.mrb[0].mxu0
    %v3046 = vadd.f32 %v3003, %v3045
    %v3047 = vpop.f32.mrb[0].mxu0
    %v3048 = vadd.f32 %v3005, %v3047
    %v3049 = vpop.f32.mrb[0].mxu0
    %v3050 = vadd.f32 %v3007, %v3049
    %3051 = vdwg.mxu0
    %v3052 = vmul.f32 %v2786, 0.2
    %v3053 = vmul.f32 %v2788, 0.2
    %v3054 = vmul.f32 %v2872, 0.2
    %v3055 = vmul.f32 %v2874, 0.2
    %v3056 = vmul.f32 %v2958, 0.2
    %v3057 = vmul.f32 %v2960, 0.2
    %v3058 = vmul.f32 %v3044, 0.2
    %v3059 = vmul.f32 %v3046, 0.2
    %v3060 = vmul.f32 %v2790, 0.2
    %v3061 = vmul.f32 %v2792, 0.2
    %v3062 = vmul.f32 %v2876, 0.2
    %v3063 = vmul.f32 %v2878, 0.2
    %v3064 = vmul.f32 %v2962, 0.2
    %v3065 = vmul.f32 %v2964, 0.2
    %v3066 = vmul.f32 %v3048, 0.2
    %v3067 = vmul.f32 %v3050, 0.2
    %v3068 = vmax.f32 %v2786, %v3052
    %v3069 = vmax.f32 %v2788, %v3053
    %v3070 = vmax.f32 %v2872, %v3054
    %v3071 = vmax.f32 %v2874, %v3055
    %v3072 = vmax.f32 %v2958, %v3056
    %v3073 = vmax.f32 %v2960, %v3057
    %v3074 = vmax.f32 %v3044, %v3058
    %v3075 = vmax.f32 %v3046, %v3059
    %v3076 = vmax.f32 %v2790, %v3060
    %v3077 = vmax.f32 %v2792, %v3061
    %v3078 = vmax.f32 %v2876, %v3062
    %v3079 = vmax.f32 %v2878, %v3063
    %v3080 = vmax.f32 %v2962, %v3064
    %v3081 = vmax.f32 %v2964, %v3065
    %v3082 = vmax.f32 %v3048, %v3066
    %v3083 = vmax.f32 %v3050, %v3067
    %v3084 = vadd.f32 %v3068, %v3076
    %v3085 = vrot.slane %v3084, 4
    %v3086 = vadd.f32 %v3084, %v3085
    %v3087 = vrot.slane %v3086, 2
    %v3088 = vadd.f32 %v3086, %v3087
    %v3089 = vrot.slane %v3088, 1
    %v3090 = vadd.f32 %v3088, %v3089
    %v3091 = vadd.f32 %v3069, %v3077
    %v3092 = vrot.slane %v3091, 4
    %v3093 = vadd.f32 %v3091, %v3092
    %v3094 = vrot.slane %v3093, 2
    %v3095 = vadd.f32 %v3093, %v3094
    %v3096 = vrot.slane %v3095, 1
    %v3097 = vadd.f32 %v3095, %v3096
    %v3098 = vadd.f32 %v3070, %v3078
    %v3099 = vrot.slane %v3098, 4
    %v3100 = vadd.f32 %v3098, %v3099
    %v3101 = vrot.slane %v3100, 2
    %v3102 = vadd.f32 %v3100, %v3101
    %v3103 = vrot.slane %v3102, 1
    %v3104 = vadd.f32 %v3102, %v3103
    %v3105 = vadd.f32 %v3071, %v3079
    %v3106 = vrot.slane %v3105, 4
    %v3107 = vadd.f32 %v3105, %v3106
    %v3108 = vrot.slane %v3107, 2
    %v3109 = vadd.f32 %v3107, %v3108
    %v3110 = vrot.slane %v3109, 1
    %v3111 = vadd.f32 %v3109, %v3110
    %v3112 = vadd.f32 %v3072, %v3080
    %v3113 = vrot.slane %v3112, 4
    %v3114 = vadd.f32 %v3112, %v3113
    %v3115 = vrot.slane %v3114, 2
    %v3116 = vadd.f32 %v3114, %v3115
    %v3117 = vrot.slane %v3116, 1
    %v3118 = vadd.f32 %v3116, %v3117
    %v3119 = vadd.f32 %v3073, %v3081
    %v3120 = vrot.slane %v3119, 4
    %v3121 = vadd.f32 %v3119, %v3120
    %v3122 = vrot.slane %v3121, 2
    %v3123 = vadd.f32 %v3121, %v3122
    %v3124 = vrot.slane %v3123, 1
    %v3125 = vadd.f32 %v3123, %v3124
    %v3126 = vadd.f32 %v3074, %v3082
    %v3127 = vrot.slane %v3126, 4
    %v3128 = vadd.f32 %v3126, %v3127
    %v3129 = vrot.slane %v3128, 2
    %v3130 = vadd.f32 %v3128, %v3129
    %v3131 = vrot.slane %v3130, 1
    %v3132 = vadd.f32 %v3130, %v3131
    %v3133 = vadd.f32 %v3075, %v3083
    %v3134 = vrot.slane %v3133, 4
    %v3135 = vadd.f32 %v3133, %v3134
    %v3136 = vrot.slane %v3135, 2
    %v3137 = vadd.f32 %v3135, %v3136
    %v3138 = vrot.slane %v3137, 1
    %v3139 = vadd.f32 %v3137, %v3138
    %v3140 = vmul.f32 %v3068, %v3068
    %v3141 = vmul.f32 %v3069, %v3069
    %v3142 = vmul.f32 %v3070, %v3070
    %v3143 = vmul.f32 %v3071, %v3071
    %v3144 = vmul.f32 %v3072, %v3072
    %v3145 = vmul.f32 %v3073, %v3073
    %v3146 = vmul.f32 %v3074, %v3074
    %v3147 = vmul.f32 %v3075, %v3075
    %v3148 = vmul.f32 %v3076, %v3076
    %v3149 = vmul.f32 %v3077, %v3077
    %v3150 = vmul.f32 %v3078, %v3078
    %v3151 = vmul.f32 %v3079, %v3079
    %v3152 = vmul.f32 %v3080, %v3080
    %v3153 = vmul.f32 %v3081, %v3081
    %v3154 = vmul.f32 %v3082, %v3082
    %v3155 = vmul.f32 %v3083, %v3083
    %v3156 = vadd.f32 %v3140, %v3148
    %v3157 = vrot.slane %v3156, 4
    %v3158 = vadd.f32 %v3156, %v3157
    %v3159 = vrot.slane %v3158, 2
    %v3160 = vadd.f32 %v3158, %v3159
    %v3161 = vrot.slane %v3160, 1
    %v3162 = vadd.f32 %v3160, %v3161
    %v3163 = vadd.f32 %v3141, %v3149
    %v3164 = vrot.slane %v3163, 4
    %v3165 = vadd.f32 %v3163, %v3164
    %v3166 = vrot.slane %v3165, 2
    %v3167 = vadd.f32 %v3165, %v3166
    %v3168 = vrot.slane %v3167, 1
    %v3169 = vadd.f32 %v3167, %v3168
    %v3170 = vadd.f32 %v3142, %v3150
    %v3171 = vrot.slane %v3170, 4
    %v3172 = vadd.f32 %v3170, %v3171
    %v3173 = vrot.slane %v3172, 2
    %v3174 = vadd.f32 %v3172, %v3173
    %v3175 = vrot.slane %v3174, 1
    %v3176 = vadd.f32 %v3174, %v3175
    %v3177 = vadd.f32 %v3143, %v3151
    %v3178 = vrot.slane %v3177, 4
    %v3179 = vadd.f32 %v3177, %v3178
    %v3180 = vrot.slane %v3179, 2
    %v3181 = vadd.f32 %v3179, %v3180
    %v3182 = vrot.slane %v3181, 1
    %v3183 = vadd.f32 %v3181, %v3182
    %v3184 = vadd.f32 %v3144, %v3152
    %v3185 = vrot.slane %v3184, 4
    %v3186 = vadd.f32 %v3184, %v3185
    %v3187 = vrot.slane %v3186, 2
    %v3188 = vadd.f32 %v3186, %v3187
    %v3189 = vrot.slane %v3188, 1
    %v3190 = vadd.f32 %v3188, %v3189
    %v3191 = vadd.f32 %v3145, %v3153
    %v3192 = vrot.slane %v3191, 4
    %v3193 = vadd.f32 %v3191, %v3192
    %v3194 = vrot.slane %v3193, 2
    %v3195 = vadd.f32 %v3193, %v3194
    %v3196 = vrot.slane %v3195, 1
    %v3197 = vadd.f32 %v3195, %v3196
    %v3198 = vadd.f32 %v3146, %v3154
    %v3199 = vrot.slane %v3198, 4
    %v3200 = vadd.f32 %v3198, %v3199
    %v3201 = vrot.slane %v3200, 2
    %v3202 = vadd.f32 %v3200, %v3201
    %v3203 = vrot.slane %v3202, 1
    %v3204 = vadd.f32 %v3202, %v3203
    %v3205 = vadd.f32 %v3147, %v3155
    %v3206 = vrot.slane %v3205, 4
    %v3207 = vadd.f32 %v3205, %v3206
    %v3208 = vrot.slane %v3207, 2
    %v3209 = vadd.f32 %v3207, %v3208
    %v3210 = vrot.slane %v3209, 1
    %v3211 = vadd.f32 %v3209, %v3210
    %s3212 = scalar_lea.vmem [#allocation11], 1
    %v3213 = vld [vmem:[%s3212] ss:$4 sm:$0xff]
    %s3214 = scalar_lea.vmem [#allocation11], 2
    %v3215 = vld [vmem:[%s3214] ss:$4 sm:$0xff]
    %v3216 = vmul.f32 %v3090, 0.0625
    %v3217 = vmul.f32 %v3097, 0.0625
    %v3218 = vmul.f32 %v3104, 0.0625
    %v3219 = vmul.f32 %v3111, 0.0625
    %v3220 = vmul.f32 %v3118, 0.0625
    %v3221 = vmul.f32 %v3125, 0.0625
    %v3222 = vmul.f32 %v3132, 0.0625
    %v3223 = vmul.f32 %v3139, 0.0625
    %v3224 = vmul.f32 %v3162, 0.0625
    %v3225 = vmul.f32 %v3169, 0.0625
    %v3226 = vmul.f32 %v3176, 0.0625
    %v3227 = vmul.f32 %v3183, 0.0625
    %v3228 = vmul.f32 %v3190, 0.0625
    %v3229 = vmul.f32 %v3197, 0.0625
    %v3230 = vmul.f32 %v3204, 0.0625
    %v3231 = vmul.f32 %v3211, 0.0625
    %v3232 = vmul.f32 %v3216, %v3216
    %v3233 = vmul.f32 %v3217, %v3217
    %v3234 = vmul.f32 %v3218, %v3218
    %v3235 = vmul.f32 %v3219, %v3219
    %v3236 = vmul.f32 %v3220, %v3220
    %v3237 = vmul.f32 %v3221, %v3221
    %v3238 = vmul.f32 %v3222, %v3222
    %v3239 = vmul.f32 %v3223, %v3223
    %v3240 = vsub.f32 %v3224, %v3232
    %v3241 = vsub.f32 %v3225, %v3233
    %v3242 = vsub.f32 %v3226, %v3234
    %v3243 = vsub.f32 %v3227, %v3235
    %v3244 = vsub.f32 %v3228, %v3236
    %v3245 = vsub.f32 %v3229, %v3237
    %v3246 = vsub.f32 %v3230, %v3238
    %v3247 = vsub.f32 %v3231, %v3239
    %v3248 = vmax.f32 %v3240, 0.0
    %v3249 = vmax.f32 %v3241, 0.0
    %v3250 = vmax.f32 %v3242, 0.0
    %v3251 = vmax.f32 %v3243, 0.0
    %v3252 = vmax.f32 %v3244, 0.0
    %v3253 = vmax.f32 %v3245, 0.0
    %v3254 = vmax.f32 %v3246, 0.0
    %v3255 = vmax.f32 %v3247, 0.0
    %v3256 = vadd.f32 %v3248, 1e-05
    %v3257 = vadd.f32 %v3249, 1e-05
    %v3258 = vadd.f32 %v3250, 1e-05
    %v3259 = vadd.f32 %v3251, 1e-05
    %v3260 = vadd.f32 %v3252, 1e-05
    %v3261 = vadd.f32 %v3253, 1e-05
    %v3262 = vadd.f32 %v3254, 1e-05
    %v3263 = vadd.f32 %v3255, 1e-05
    %v3264 = vrsqrt.pop %v3256
    %v3265 = vrsqrt.pop %v3257
    %v3266 = vrsqrt.pop %v3258
    %v3267 = vrsqrt.pop %v3259
    %v3268 = vrsqrt.pop %v3260
    %v3269 = vrsqrt.pop %v3261
    %v3270 = vrsqrt.pop %v3262
    %v3271 = vrsqrt.pop %v3263
    %v3273 = vlaneseq
    %v3274 = vshrl.u32 %v3273, 7
    %v3275 = vsub.s32 0, %v3274
    %v3276 = vrot.slane %v3213, %v3275
    %v3277 = vlaneseq
    %v3278 = vshrl.u32 %v3277, 7
    %v3279 = vsub.s32 1, %v3278
    %v3280 = vrot.slane %v3213, %v3279
    %v3281 = vlaneseq
    %v3282 = vshrl.u32 %v3281, 7
    %v3283 = vsub.s32 2, %v3282
    %v3284 = vrot.slane %v3213, %v3283
    %v3285 = vlaneseq
    %v3286 = vshrl.u32 %v3285, 7
    %v3287 = vsub.s32 3, %v3286
    %v3288 = vrot.slane %v3213, %v3287
    %v3289 = vlaneseq
    %v3290 = vshrl.u32 %v3289, 7
    %v3291 = vsub.s32 4, %v3290
    %v3292 = vrot.slane %v3213, %v3291
    %v3293 = vlaneseq
    %v3294 = vshrl.u32 %v3293, 7
    %v3295 = vsub.s32 5, %v3294
    %v3296 = vrot.slane %v3213, %v3295
    %v3297 = vlaneseq
    %v3298 = vshrl.u32 %v3297, 7
    %v3299 = vsub.s32 6, %v3298
    %v3300 = vrot.slane %v3213, %v3299
    %v3301 = vlaneseq
    %v3302 = vshrl.u32 %v3301, 7
    %v3303 = vsub.s32 7, %v3302
    %v3304 = vrot.slane %v3213, %v3303
    %v3313 = vmul.f32 %v3264, %v3276
    %v3314 = vmul.f32 %v3265, %v3280
    %v3315 = vmul.f32 %v3266, %v3284
    %v3316 = vmul.f32 %v3267, %v3288
    %v3317 = vmul.f32 %v3268, %v3292
    %v3318 = vmul.f32 %v3269, %v3296
    %v3319 = vmul.f32 %v3270, %v3300
    %v3320 = vmul.f32 %v3271, %v3304
    %v3321 = vmul.f32 %v3216, %v3313
    %v3322 = vmul.f32 %v3217, %v3314
    %v3323 = vmul.f32 %v3218, %v3315
    %v3324 = vmul.f32 %v3219, %v3316
    %v3325 = vmul.f32 %v3220, %v3317
    %v3326 = vmul.f32 %v3221, %v3318
    %v3327 = vmul.f32 %v3222, %v3319
    %v3328 = vmul.f32 %v3223, %v3320
    %v3337 = vcombine.low %v3321, %v3322
    %v3338 = vcombine.low %v3323, %v3324
    %v3339 = vcombine.low %v3325, %v3326
    %v3340 = vcombine.low %v3327, %v3328
    %v3342 = vunpack.c.l.s4 1966171168
    %v3343 = vunpack.c.0.s8 %v3342
    %v3344 = vlaneseq
    %v3345 = vshrl.u32 %v3344, 7
    %v3346 = vsub.s32 %v3343, %v3345
    %v3347 = vrot.slane %v3337, %v3346
    %v3349 = vunpack.c.l.s4 1966171168
    %v3350 = vunpack.c.0.s8 %v3349
    %v3351 = vlaneseq
    %v3352 = vshrl.u32 %v3351, 7
    %v3353 = vsub.s32 %v3350, %v3352
    %v3354 = vrot.slane %v3338, %v3353
    %v3356 = vunpack.c.l.s4 1966171168
    %v3357 = vunpack.c.0.s8 %v3356
    %v3358 = vlaneseq
    %v3359 = vshrl.u32 %v3358, 7
    %v3360 = vsub.s32 %v3357, %v3359
    %v3361 = vrot.slane %v3339, %v3360
    %v3363 = vunpack.c.l.s4 1966171168
    %v3364 = vunpack.c.0.s8 %v3363
    %v3365 = vlaneseq
    %v3366 = vshrl.u32 %v3365, 7
    %v3367 = vsub.s32 %v3364, %v3366
    %v3368 = vrot.slane %v3340, %v3367
    %v3369 = vcombine.low %v3347, %v3354
    %v3370 = vcombine.low %v3361, %v3368
    %v3372 = vunpack.c.l.s4 1966171168
    %v3373 = vunpack.c.0.s8 %v3372
    %v3374 = vlaneseq
    %v3375 = vshrl.u32 %v3374, 7
    %v3376 = vsub.s32 %v3373, %v3375
    %v3377 = vrot.slane %v3369, %v3376
    %v3379 = vunpack.c.l.s4 1966171168
    %v3380 = vunpack.c.0.s8 %v3379
    %v3381 = vlaneseq
    %v3382 = vshrl.u32 %v3381, 7
    %v3383 = vsub.s32 %v3380, %v3382
    %v3384 = vrot.slane %v3370, %v3383
    %v3385 = vcombine.low %v3377, %v3384
    %v3387 = vsub.f32 %v3215, %v3385
    %v3388 = vlaneseq
    %v3389 = vshrl.u32 %v3388, 7
    %v3390 = vsub.s32 0, %v3389
    %v3391 = vrot.slane %v3313, %v3390
    %v3392 = vlaneseq
    %v3393 = vshrl.u32 %v3392, 7
    %v3394 = vsub.s32 0, %v3393
    %v3395 = vrot.slane %v3314, %v3394
    %v3396 = vlaneseq
    %v3397 = vshrl.u32 %v3396, 7
    %v3398 = vsub.s32 0, %v3397
    %v3399 = vrot.slane %v3315, %v3398
    %v3400 = vlaneseq
    %v3401 = vshrl.u32 %v3400, 7
    %v3402 = vsub.s32 0, %v3401
    %v3403 = vrot.slane %v3316, %v3402
    %v3404 = vlaneseq
    %v3405 = vshrl.u32 %v3404, 7
    %v3406 = vsub.s32 0, %v3405
    %v3407 = vrot.slane %v3317, %v3406
    %v3408 = vlaneseq
    %v3409 = vshrl.u32 %v3408, 7
    %v3410 = vsub.s32 0, %v3409
    %v3411 = vrot.slane %v3318, %v3410
    %v3412 = vlaneseq
    %v3413 = vshrl.u32 %v3412, 7
    %v3414 = vsub.s32 0, %v3413
    %v3415 = vrot.slane %v3319, %v3414
    %v3416 = vlaneseq
    %v3417 = vshrl.u32 %v3416, 7
    %v3418 = vsub.s32 0, %v3417
    %v3419 = vrot.slane %v3320, %v3418
    %v3420 = vmul.f32 %v3068, %v3391
    %v3421 = vmul.f32 %v3069, %v3395
    %v3422 = vmul.f32 %v3070, %v3399
    %v3423 = vmul.f32 %v3071, %v3403
    %v3424 = vmul.f32 %v3072, %v3407
    %v3425 = vmul.f32 %v3073, %v3411
    %v3426 = vmul.f32 %v3074, %v3415
    %v3427 = vmul.f32 %v3075, %v3419
    %v3428 = vmul.f32 %v3076, %v3391
    %v3429 = vmul.f32 %v3077, %v3395
    %v3430 = vmul.f32 %v3078, %v3399
    %v3431 = vmul.f32 %v3079, %v3403
    %v3432 = vmul.f32 %v3080, %v3407
    %v3433 = vmul.f32 %v3081, %v3411
    %v3434 = vmul.f32 %v3082, %v3415
    %v3435 = vmul.f32 %v3083, %v3419
    %v3437 = vlaneseq
    %v3438 = vshrl.u32 %v3437, 7
    %v3439 = vsub.s32 0, %v3438
    %v3440 = vrot.slane %v3387, %v3439
    %v3441 = vlaneseq
    %v3442 = vshrl.u32 %v3441, 7
    %v3443 = vsub.s32 1, %v3442
    %v3444 = vrot.slane %v3387, %v3443
    %v3445 = vlaneseq
    %v3446 = vshrl.u32 %v3445, 7
    %v3447 = vsub.s32 2, %v3446
    %v3448 = vrot.slane %v3387, %v3447
    %v3449 = vlaneseq
    %v3450 = vshrl.u32 %v3449, 7
    %v3451 = vsub.s32 3, %v3450
    %v3452 = vrot.slane %v3387, %v3451
    %v3453 = vlaneseq
    %v3454 = vshrl.u32 %v3453, 7
    %v3455 = vsub.s32 4, %v3454
    %v3456 = vrot.slane %v3387, %v3455
    %v3457 = vlaneseq
    %v3458 = vshrl.u32 %v3457, 7
    %v3459 = vsub.s32 5, %v3458
    %v3460 = vrot.slane %v3387, %v3459
    %v3461 = vlaneseq
    %v3462 = vshrl.u32 %v3461, 7
    %v3463 = vsub.s32 6, %v3462
    %v3464 = vrot.slane %v3387, %v3463
    %v3465 = vlaneseq
    %v3466 = vshrl.u32 %v3465, 7
    %v3467 = vsub.s32 7, %v3466
    %v3468 = vrot.slane %v3387, %v3467
    %v3477 = vadd.f32 %v3420, %v3440
    %v3478 = vadd.f32 %v3421, %v3444
    %v3479 = vadd.f32 %v3422, %v3448
    %v3480 = vadd.f32 %v3423, %v3452
    %v3481 = vadd.f32 %v3424, %v3456
    %v3482 = vadd.f32 %v3425, %v3460
    %v3483 = vadd.f32 %v3426, %v3464
    %v3484 = vadd.f32 %v3427, %v3468
    %v3485 = vadd.f32 %v3428, %v3440
    %v3486 = vadd.f32 %v3429, %v3444
    %v3487 = vadd.f32 %v3430, %v3448
    %v3488 = vadd.f32 %v3431, %v3452
    %v3489 = vadd.f32 %v3432, %v3456
    %v3490 = vadd.f32 %v3433, %v3460
    %v3491 = vadd.f32 %v3434, %v3464
    %v3492 = vadd.f32 %v3435, %v3468
    %v3493 = vpack.c.bf16 %v3485, %v3477
    %v3494 = vpack.c.bf16 %v3486, %v3478
    %v3495 = vpack.c.bf16 %v3487, %v3479
    %v3496 = vpack.c.bf16 %v3488, %v3480
    %v3497 = vpack.c.bf16 %v3489, %v3481
    %v3498 = vpack.c.bf16 %v3490, %v3482
    %v3499 = vpack.c.bf16 %v3491, %v3483
    %v3500 = vpack.c.bf16 %v3492, %v3484
    %v3501 = vld [vmem:[#allocation13] sm:$0xff]
    %v3502 = vld [vmem:[#allocation13 + $0x8] sm:$0xff]
    %v3503 = vld [vmem:[#allocation13 + $0x10] sm:$0xff]
    %v3504 = vld [vmem:[#allocation13 + $0x18] sm:$0xf]
    %v3505 = vld [vmem:[#allocation13 + $0x1c] sm:$0xff]
    %v3506 = vld [vmem:[#allocation13 + $0x24] sm:$0xff]
    %v3507 = vld [vmem:[#allocation13 + $0x2c] sm:$0xff]
    %v3508 = vld [vmem:[#allocation13 + $0x34] sm:$0xf]
    %v3509 = vld [vmem:[#allocation13 + $0x38] sm:$0xff]
    %v3510 = vld [vmem:[#allocation13 + $0x40] sm:$0xff]
    %v3511 = vld [vmem:[#allocation13 + $0x48] sm:$0xff]
    %v3512 = vld [vmem:[#allocation13 + $0x50] sm:$0xf]
    %v3513 = vld [vmem:[#allocation13 + $0x54] sm:$0xff]
    %v3514 = vld [vmem:[#allocation13 + $0x5c] sm:$0xff]
    %v3515 = vld [vmem:[#allocation13 + $0x64] sm:$0xff]
    %v3516 = vld [vmem:[#allocation13 + $0x6c] sm:$0xf]
    %v3517 = vld [vmem:[#allocation13 + $0x70] sm:$0xff]
    %v3518 = vld [vmem:[#allocation13 + $0x78] sm:$0xff]
    %v3519 = vld [vmem:[#allocation13 + $0x80] sm:$0xff]
    %v3520 = vld [vmem:[#allocation13 + $0x88] sm:$0xf]
    %v3521 = vld [vmem:[#allocation13 + $0x8c] sm:$0xff]
    %v3522 = vld [vmem:[#allocation13 + $0x94] sm:$0xff]
    %v3523 = vld [vmem:[#allocation13 + $0x9c] sm:$0xff]
    %v3524 = vld [vmem:[#allocation13 + $0xa4] sm:$0xf]
    %v3525 = vld [vmem:[#allocation13 + $0xa8] sm:$0xff]
    %v3526 = vld [vmem:[#allocation13 + $0xb0] sm:$0xff]
    %v3527 = vld [vmem:[#allocation13 + $0xb8] sm:$0xff]
    %v3528 = vld [vmem:[#allocation13 + $0xc0] sm:$0xf]
    %v3529 = vld [vmem:[#allocation13 + $0xc4] sm:$0xff]
    %v3530 = vld [vmem:[#allocation13 + $0xcc] sm:$0xff]
    %v3531 = vld [vmem:[#allocation13 + $0xd4] sm:$0xff]
    %v3532 = vld [vmem:[#allocation13 + $0xdc] sm:$0xf]
    %v3533 = vld [vmem:[#allocation13 + $0xe0] sm:$0xff]
    %v3534 = vld [vmem:[#allocation13 + $0xe8] sm:$0xff]
    %v3535 = vld [vmem:[#allocation13 + $0xf0] sm:$0xff]
    %v3536 = vld [vmem:[#allocation13 + $0xf8] sm:$0xf]
    %v3537 = vld [vmem:[#allocation13 + $0xfc] sm:$0xff]
    %v3538 = vld [vmem:[#allocation13 + $0x104] sm:$0xff]
    %v3539 = vld [vmem:[#allocation13 + $0x10c] sm:$0xff]
    %v3540 = vld [vmem:[#allocation13 + $0x114] sm:$0xf]
    %v3541 = vld [vmem:[#allocation13 + $0x118] sm:$0xff]
    %v3542 = vld [vmem:[#allocation13 + $0x120] sm:$0xff]
    %v3543 = vld [vmem:[#allocation13 + $0x128] sm:$0xff]
    %v3544 = vld [vmem:[#allocation13 + $0x130] sm:$0xf]
    %v3545 = vld [vmem:[#allocation13 + $0x134] sm:$0xff]
    %v3546 = vld [vmem:[#allocation13 + $0x13c] sm:$0xff]
    %v3547 = vld [vmem:[#allocation13 + $0x144] sm:$0xff]
    %v3548 = vld [vmem:[#allocation13 + $0x14c] sm:$0xf]
    %v3549 = vld [vmem:[#allocation13 + $0x150] sm:$0xff]
    %v3550 = vld [vmem:[#allocation13 + $0x158] sm:$0xff]
    %v3551 = vld [vmem:[#allocation13 + $0x160] sm:$0xff]
    %v3552 = vld [vmem:[#allocation13 + $0x168] sm:$0xf]
    %v3553 = vld [vmem:[#allocation13 + $0x16c] sm:$0xff]
    %v3554 = vld [vmem:[#allocation13 + $0x174] sm:$0xff]
    %v3555 = vld [vmem:[#allocation13 + $0x17c] sm:$0xff]
    %v3556 = vld [vmem:[#allocation13 + $0x184] sm:$0xf]
    %v3557 = vld [vmem:[#allocation13 + $0x188] sm:$0xff]
    %v3558 = vld [vmem:[#allocation13 + $0x190] sm:$0xff]
    %v3559 = vld [vmem:[#allocation13 + $0x198] sm:$0xff]
    %v3560 = vld [vmem:[#allocation13 + $0x1a0] sm:$0xf]
    %v3561 = vld [vmem:[#allocation13 + $0x1a4] sm:$0xff]
    %v3562 = vld [vmem:[#allocation13 + $0x1ac] sm:$0xff]
    %v3563 = vld [vmem:[#allocation13 + $0x1b4] sm:$0xff]
    %v3564 = vld [vmem:[#allocation13 + $0x1bc] sm:$0xf]
    %v3565 = vld [vmem:[#allocation13 + $0x1c0] sm:$0xff]
    %v3566 = vld [vmem:[#allocation13 + $0x1c8] sm:$0xff]
    %v3567 = vld [vmem:[#allocation13 + $0x1d0] sm:$0xff]
    %v3568 = vld [vmem:[#allocation13 + $0x1d8] sm:$0xf]
    %v3569 = vld [vmem:[#allocation13 + $0x1dc] sm:$0xff]
    %v3570 = vld [vmem:[#allocation13 + $0x1e4] sm:$0xff]
    %v3571 = vld [vmem:[#allocation13 + $0x1ec] sm:$0xff]
    %v3572 = vld [vmem:[#allocation13 + $0x1f4] sm:$0xf]
    %v3573 = vld [vmem:[#allocation13 + $0x1f8] sm:$0xff]
    %v3574 = vld [vmem:[#allocation13 + $0x200] sm:$0xff]
    %v3575 = vld [vmem:[#allocation13 + $0x208] sm:$0xff]
    %v3576 = vld [vmem:[#allocation13 + $0x210] sm:$0xf]
    %v3577 = vld [vmem:[#allocation13 + $0x214] sm:$0xff]
    %v3578 = vld [vmem:[#allocation13 + $0x21c] sm:$0xff]
    %v3579 = vld [vmem:[#allocation13 + $0x224] sm:$0xff]
    %v3580 = vld [vmem:[#allocation13 + $0x22c] sm:$0xf]
    %v3581 = vld [vmem:[#allocation13 + $0x230] sm:$0xff]
    %v3582 = vld [vmem:[#allocation13 + $0x238] sm:$0xff]
    %v3583 = vld [vmem:[#allocation13 + $0x240] sm:$0xff]
    %v3584 = vld [vmem:[#allocation13 + $0x248] sm:$0xf]
    %v3585 = vld [vmem:[#allocation13 + $0x24c] sm:$0xff]
    %v3586 = vld [vmem:[#allocation13 + $0x254] sm:$0xff]
    %v3587 = vld [vmem:[#allocation13 + $0x25c] sm:$0xff]
    %v3588 = vld [vmem:[#allocation13 + $0x264] sm:$0xf]
    %v3589 = vld [vmem:[#allocation13 + $0x268] sm:$0xff]
    %v3590 = vld [vmem:[#allocation13 + $0x270] sm:$0xff]
    %v3591 = vld [vmem:[#allocation13 + $0x278] sm:$0xff]
    %v3592 = vld [vmem:[#allocation13 + $0x280] sm:$0xf]
    %v3593 = vld [vmem:[#allocation13 + $0x284] sm:$0xff]
    %v3594 = vld [vmem:[#allocation13 + $0x28c] sm:$0xff]
    %v3595 = vld [vmem:[#allocation13 + $0x294] sm:$0xff]
    %v3596 = vld [vmem:[#allocation13 + $0x29c] sm:$0xf]
    %v3597 = vld [vmem:[#allocation13 + $0x2a0] sm:$0xff]
    %v3598 = vld [vmem:[#allocation13 + $0x2a8] sm:$0xff]
    %v3599 = vld [vmem:[#allocation13 + $0x2b0] sm:$0xff]
    %v3600 = vld [vmem:[#allocation13 + $0x2b8] sm:$0xf]
    %v3601 = vld [vmem:[#allocation13 + $0x2bc] sm:$0xff]
    %v3602 = vld [vmem:[#allocation13 + $0x2c4] sm:$0xff]
    %v3603 = vld [vmem:[#allocation13 + $0x2cc] sm:$0xff]
    %v3604 = vld [vmem:[#allocation13 + $0x2d4] sm:$0xf]
    %v3605 = vld [vmem:[#allocation13 + $0x2d8] sm:$0xff]
    %v3606 = vld [vmem:[#allocation13 + $0x2e0] sm:$0xff]
    %v3607 = vld [vmem:[#allocation13 + $0x2e8] sm:$0xff]
    %v3608 = vld [vmem:[#allocation13 + $0x2f0] sm:$0xf]
    %v3609 = vld [vmem:[#allocation13 + $0x2f4] sm:$0xff]
    %v3610 = vld [vmem:[#allocation13 + $0x2fc] sm:$0xff]
    %v3611 = vld [vmem:[#allocation13 + $0x304] sm:$0xff]
    %v3612 = vld [vmem:[#allocation13 + $0x30c] sm:$0xf]
    %v3613 = vld [vmem:[#allocation13 + $0x310] sm:$0xff]
    %v3614 = vld [vmem:[#allocation13 + $0x318] sm:$0xff]
    %v3615 = vld [vmem:[#allocation13 + $0x320] sm:$0xff]
    %v3616 = vld [vmem:[#allocation13 + $0x328] sm:$0xf]
    %v3617 = vld [vmem:[#allocation13 + $0x32c] sm:$0xff]
    %v3618 = vld [vmem:[#allocation13 + $0x334] sm:$0xff]
    %v3619 = vld [vmem:[#allocation13 + $0x33c] sm:$0xff]
    %v3620 = vld [vmem:[#allocation13 + $0x344] sm:$0xf]
    %v3621 = vld [vmem:[#allocation13 + $0x348] sm:$0xff]
    %v3622 = vld [vmem:[#allocation13 + $0x350] sm:$0xff]
    %v3623 = vld [vmem:[#allocation13 + $0x358] sm:$0xff]
    %v3624 = vld [vmem:[#allocation13 + $0x360] sm:$0xf]
    %v3625 = vld [vmem:[#allocation13 + $0x364] sm:$0xff]
    %v3626 = vld [vmem:[#allocation13 + $0x36c] sm:$0xff]
    %v3627 = vld [vmem:[#allocation13 + $0x374] sm:$0xff]
    %v3628 = vld [vmem:[#allocation13 + $0x37c] sm:$0xf]
    %v3629 = vld [vmem:[#allocation13 + $0x380] sm:$0xff]
    %v3630 = vld [vmem:[#allocation13 + $0x388] sm:$0xff]
    %v3631 = vld [vmem:[#allocation13 + $0x390] sm:$0xff]
    %v3632 = vld [vmem:[#allocation13 + $0x398] sm:$0xf]
    %v3633 = vld [vmem:[#allocation13 + $0x39c] sm:$0xff]
    %v3634 = vld [vmem:[#allocation13 + $0x3a4] sm:$0xff]
    %v3635 = vld [vmem:[#allocation13 + $0x3ac] sm:$0xff]
    %v3636 = vld [vmem:[#allocation13 + $0x3b4] sm:$0xf]
    %v3637 = vld [vmem:[#allocation13 + $0x3b8] sm:$0xff]
    %v3638 = vld [vmem:[#allocation13 + $0x3c0] sm:$0xff]
    %v3639 = vld [vmem:[#allocation13 + $0x3c8] sm:$0xff]
    %v3640 = vld [vmem:[#allocation13 + $0x3d0] sm:$0xf]
    %v3641 = vld [vmem:[#allocation13 + $0x3d4] sm:$0xff]
    %v3642 = vld [vmem:[#allocation13 + $0x3dc] sm:$0xff]
    %v3643 = vld [vmem:[#allocation13 + $0x3e4] sm:$0xff]
    %v3644 = vld [vmem:[#allocation13 + $0x3ec] sm:$0xf]
    %v3645 = vld [vmem:[#allocation13 + $0x3f0] sm:$0xff]
    %v3646 = vld [vmem:[#allocation13 + $0x3f8] sm:$0xff]
    %v3647 = vld [vmem:[#allocation13 + $0x400] sm:$0xff]
    %v3648 = vld [vmem:[#allocation13 + $0x408] sm:$0xf]
    %v3649 = vld [vmem:[#allocation13 + $0x40c] sm:$0xff]
    %v3650 = vld [vmem:[#allocation13 + $0x414] sm:$0xff]
    %v3651 = vld [vmem:[#allocation13 + $0x41c] sm:$0xff]
    %v3652 = vld [vmem:[#allocation13 + $0x424] sm:$0xf]
    %v3653 = vld [vmem:[#allocation13 + $0x428] sm:$0xff]
    %v3654 = vld [vmem:[#allocation13 + $0x430] sm:$0xff]
    %v3655 = vld [vmem:[#allocation13 + $0x438] sm:$0xff]
    %v3656 = vld [vmem:[#allocation13 + $0x440] sm:$0xf]
    %v3657 = vld [vmem:[#allocation13 + $0x444] sm:$0xff]
    %v3658 = vld [vmem:[#allocation13 + $0x44c] sm:$0xff]
    %v3659 = vld [vmem:[#allocation13 + $0x454] sm:$0xff]
    %v3660 = vld [vmem:[#allocation13 + $0x45c] sm:$0xf]
    %v3661 = vld [vmem:[#allocation13 + $0x460] sm:$0xff]
    %v3662 = vld [vmem:[#allocation13 + $0x468] sm:$0xff]
    %v3663 = vld [vmem:[#allocation13 + $0x470] sm:$0xff]
    %v3664 = vld [vmem:[#allocation13 + $0x478] sm:$0xf]
    %v3665 = vld [vmem:[#allocation13 + $0x47c] sm:$0xff]
    %v3666 = vld [vmem:[#allocation13 + $0x484] sm:$0xff]
    %v3667 = vld [vmem:[#allocation13 + $0x48c] sm:$0xff]
    %v3668 = vld [vmem:[#allocation13 + $0x494] sm:$0xf]
    %v3669 = vld [vmem:[#allocation13 + $0x498] sm:$0xff]
    %v3670 = vld [vmem:[#allocation13 + $0x4a0] sm:$0xff]
    %v3671 = vld [vmem:[#allocation13 + $0x4a8] sm:$0xff]
    %v3672 = vld [vmem:[#allocation13 + $0x4b0] sm:$0xf]
    %v3673 = vld [vmem:[#allocation13 + $0x4b4] sm:$0xff]
    %v3674 = vld [vmem:[#allocation13 + $0x4bc] sm:$0xff]
    %v3675 = vld [vmem:[#allocation13 + $0x4c4] sm:$0xff]
    %v3676 = vld [vmem:[#allocation13 + $0x4cc] sm:$0xf]
    %v3677 = vld [vmem:[#allocation13 + $0x4d0] sm:$0xff]
    %v3678 = vld [vmem:[#allocation13 + $0x4d8] sm:$0xff]
    %v3679 = vld [vmem:[#allocation13 + $0x4e0] sm:$0xff]
    %v3680 = vld [vmem:[#allocation13 + $0x4e8] sm:$0xf]
    %v3681 = vld [vmem:[#allocation13 + $0x4ec] sm:$0xff]
    %v3682 = vld [vmem:[#allocation13 + $0x4f4] sm:$0xff]
    %v3683 = vld [vmem:[#allocation13 + $0x4fc] sm:$0xff]
    %v3684 = vld [vmem:[#allocation13 + $0x504] sm:$0xf]
    %v3685 = vld [vmem:[#allocation13 + $0x508] sm:$0xff]
    %v3686 = vld [vmem:[#allocation13 + $0x510] sm:$0xff]
    %v3687 = vld [vmem:[#allocation13 + $0x518] sm:$0xff]
    %v3688 = vld [vmem:[#allocation13 + $0x520] sm:$0xf]
    %v3689 = vld [vmem:[#allocation13 + $0x524] sm:$0xff]
    %v3690 = vld [vmem:[#allocation13 + $0x52c] sm:$0xff]
    %v3691 = vld [vmem:[#allocation13 + $0x534] sm:$0xff]
    %v3692 = vld [vmem:[#allocation13 + $0x53c] sm:$0xf]
    %v3693 = vld [vmem:[#allocation13 + $0x540] sm:$0xff]
    %v3694 = vld [vmem:[#allocation13 + $0x548] sm:$0xff]
    %v3695 = vld [vmem:[#allocation13 + $0x550] sm:$0xff]
    %v3696 = vld [vmem:[#allocation13 + $0x558] sm:$0xf]
    %v3697 = vld [vmem:[#allocation13 + $0x55c] sm:$0xff]
    %v3698 = vld [vmem:[#allocation13 + $0x564] sm:$0xff]
    %v3699 = vld [vmem:[#allocation13 + $0x56c] sm:$0xff]
    %v3700 = vld [vmem:[#allocation13 + $0x574] sm:$0xf]
    %v3701 = vld [vmem:[#allocation13 + $0x578] sm:$0xff]
    %v3702 = vld [vmem:[#allocation13 + $0x580] sm:$0xff]
    %v3703 = vld [vmem:[#allocation13 + $0x588] sm:$0xff]
    %v3704 = vld [vmem:[#allocation13 + $0x590] sm:$0xf]
    %v3705 = vld [vmem:[#allocation13 + $0x594] sm:$0xff]
    %v3706 = vld [vmem:[#allocation13 + $0x59c] sm:$0xff]
    %v3707 = vld [vmem:[#allocation13 + $0x5a4] sm:$0xff]
    %v3708 = vld [vmem:[#allocation13 + $0x5ac] sm:$0xf]
    %v3709 = vld [vmem:[#allocation13 + $0x5b0] sm:$0xff]
    %v3710 = vld [vmem:[#allocation13 + $0x5b8] sm:$0xff]
    %v3711 = vld [vmem:[#allocation13 + $0x5c0] sm:$0xff]
    %v3712 = vld [vmem:[#allocation13 + $0x5c8] sm:$0xf]
    %v3713 = vld [vmem:[#allocation13 + $0x5cc] sm:$0xff]
    %v3714 = vld [vmem:[#allocation13 + $0x5d4] sm:$0xff]
    %v3715 = vld [vmem:[#allocation13 + $0x5dc] sm:$0xff]
    %v3716 = vld [vmem:[#allocation13 + $0x5e4] sm:$0xf]
    %v3717 = vld [vmem:[#allocation13 + $0x5e8] sm:$0xff]
    %v3718 = vld [vmem:[#allocation13 + $0x5f0] sm:$0xff]
    %v3719 = vld [vmem:[#allocation13 + $0x5f8] sm:$0xff]
    %v3720 = vld [vmem:[#allocation13 + $0x600] sm:$0xf]
    %v3721 = vld [vmem:[#allocation13 + $0x604] sm:$0xff]
    %v3722 = vld [vmem:[#allocation13 + $0x60c] sm:$0xff]
    %v3723 = vld [vmem:[#allocation13 + $0x614] sm:$0xff]
    %v3724 = vld [vmem:[#allocation13 + $0x61c] sm:$0xf]
    %v3725 = vld [vmem:[#allocation13 + $0x620] sm:$0xff]
    %v3726 = vld [vmem:[#allocation13 + $0x628] sm:$0xff]
    %v3727 = vld [vmem:[#allocation13 + $0x630] sm:$0xff]
    %v3728 = vld [vmem:[#allocation13 + $0x638] sm:$0xf]
    %v3729 = vld [vmem:[#allocation13 + $0x63c] sm:$0xff]
    %v3730 = vld [vmem:[#allocation13 + $0x644] sm:$0xff]
    %v3731 = vld [vmem:[#allocation13 + $0x64c] sm:$0xff]
    %v3732 = vld [vmem:[#allocation13 + $0x654] sm:$0xf]
    %v3733 = vld [vmem:[#allocation13 + $0x658] sm:$0xff]
    %v3734 = vld [vmem:[#allocation13 + $0x660] sm:$0xff]
    %v3735 = vld [vmem:[#allocation13 + $0x668] sm:$0xff]
    %v3736 = vld [vmem:[#allocation13 + $0x670] sm:$0xf]
    %v3737 = vld [vmem:[#allocation13 + $0x674] sm:$0xff]
    %v3738 = vld [vmem:[#allocation13 + $0x67c] sm:$0xff]
    %v3739 = vld [vmem:[#allocation13 + $0x684] sm:$0xff]
    %v3740 = vld [vmem:[#allocation13 + $0x68c] sm:$0xf]
    %v3741 = vld [vmem:[#allocation13 + $0x690] sm:$0xff]
    %v3742 = vld [vmem:[#allocation13 + $0x698] sm:$0xff]
    %v3743 = vld [vmem:[#allocation13 + $0x6a0] sm:$0xff]
    %v3744 = vld [vmem:[#allocation13 + $0x6a8] sm:$0xf]
    %v3745 = vld [vmem:[#allocation13 + $0x6ac] sm:$0xff]
    %v3746 = vld [vmem:[#allocation13 + $0x6b4] sm:$0xff]
    %v3747 = vld [vmem:[#allocation13 + $0x6bc] sm:$0xff]
    %v3748 = vld [vmem:[#allocation13 + $0x6c4] sm:$0xf]
    %v3749 = vld [vmem:[#allocation13 + $0x6c8] sm:$0xff]
    %v3750 = vld [vmem:[#allocation13 + $0x6d0] sm:$0xff]
    %v3751 = vld [vmem:[#allocation13 + $0x6d8] sm:$0xff]
    %v3752 = vld [vmem:[#allocation13 + $0x6e0] sm:$0xf]
    %v3753 = vld [vmem:[#allocation13 + $0x6e4] sm:$0xff]
    %v3754 = vld [vmem:[#allocation13 + $0x6ec] sm:$0xff]
    %v3755 = vld [vmem:[#allocation13 + $0x6f4] sm:$0xff]
    %v3756 = vld [vmem:[#allocation13 + $0x6fc] sm:$0xf]
    %v3757 = vld [vmem:[#allocation13 + $0x700] sm:$0xff]
    %v3758 = vld [vmem:[#allocation13 + $0x708] sm:$0xff]
    %v3759 = vld [vmem:[#allocation13 + $0x710] sm:$0xff]
    %v3760 = vld [vmem:[#allocation13 + $0x718] sm:$0xf]
    %v3761 = vld [vmem:[#allocation13 + $0x71c] sm:$0xff]
    %v3762 = vld [vmem:[#allocation13 + $0x724] sm:$0xff]
    %v3763 = vld [vmem:[#allocation13 + $0x72c] sm:$0xff]
    %v3764 = vld [vmem:[#allocation13 + $0x734] sm:$0xf]
    %v3765 = vld [vmem:[#allocation13 + $0x738] sm:$0xff]
    %v3766 = vld [vmem:[#allocation13 + $0x740] sm:$0xff]
    %v3767 = vld [vmem:[#allocation13 + $0x748] sm:$0xff]
    %v3768 = vld [vmem:[#allocation13 + $0x750] sm:$0xf]
    %v3769 = vld [vmem:[#allocation13 + $0x754] sm:$0xff]
    %v3770 = vld [vmem:[#allocation13 + $0x75c] sm:$0xff]
    %v3771 = vld [vmem:[#allocation13 + $0x764] sm:$0xff]
    %v3772 = vld [vmem:[#allocation13 + $0x76c] sm:$0xf]
    %v3773 = vld [vmem:[#allocation13 + $0x770] sm:$0xff]
    %v3774 = vld [vmem:[#allocation13 + $0x778] sm:$0xff]
    %v3775 = vld [vmem:[#allocation13 + $0x780] sm:$0xff]
    %v3776 = vld [vmem:[#allocation13 + $0x788] sm:$0xf]
    %v3777 = vld [vmem:[#allocation13 + $0x78c] sm:$0xff]
    %v3778 = vld [vmem:[#allocation13 + $0x794] sm:$0xff]
    %v3779 = vld [vmem:[#allocation13 + $0x79c] sm:$0xff]
    %v3780 = vld [vmem:[#allocation13 + $0x7a4] sm:$0xf]
    %v3781 = vld [vmem:[#allocation13 + $0x7a8] sm:$0xff]
    %v3782 = vld [vmem:[#allocation13 + $0x7b0] sm:$0xff]
    %v3783 = vld [vmem:[#allocation13 + $0x7b8] sm:$0xff]
    %v3784 = vld [vmem:[#allocation13 + $0x7c0] sm:$0xf]
    %v3785 = vld [vmem:[#allocation13 + $0x7c4] sm:$0xff]
    %v3786 = vld [vmem:[#allocation13 + $0x7cc] sm:$0xff]
    %v3787 = vld [vmem:[#allocation13 + $0x7d4] sm:$0xff]
    %v3788 = vld [vmem:[#allocation13 + $0x7dc] sm:$0xf]
    %v3789 = vld [vmem:[#allocation13 + $0x7e0] sm:$0xff]
    %v3790 = vld [vmem:[#allocation13 + $0x7e8] sm:$0xff]
    %v3791 = vld [vmem:[#allocation13 + $0x7f0] sm:$0xff]
    %v3792 = vld [vmem:[#allocation13 + $0x7f8] sm:$0xf]
    %v3793 = vld [vmem:[#allocation13 + $0x7fc] sm:$0xff]
    %v3794 = vld [vmem:[#allocation13 + $0x804] sm:$0xff]
    %v3795 = vld [vmem:[#allocation13 + $0x80c] sm:$0xff]
    %v3796 = vld [vmem:[#allocation13 + $0x814] sm:$0xf]
    %v3797 = vld [vmem:[#allocation13 + $0x818] sm:$0xff]
    %v3798 = vld [vmem:[#allocation13 + $0x820] sm:$0xff]
    %v3799 = vld [vmem:[#allocation13 + $0x828] sm:$0xff]
    %v3800 = vld [vmem:[#allocation13 + $0x830] sm:$0xf]
    %v3801 = vld [vmem:[#allocation13 + $0x834] sm:$0xff]
    %v3802 = vld [vmem:[#allocation13 + $0x83c] sm:$0xff]
    %v3803 = vld [vmem:[#allocation13 + $0x844] sm:$0xff]
    %v3804 = vld [vmem:[#allocation13 + $0x84c] sm:$0xf]
    %v3805 = vld [vmem:[#allocation13 + $0x850] sm:$0xff]
    %v3806 = vld [vmem:[#allocation13 + $0x858] sm:$0xff]
    %v3807 = vld [vmem:[#allocation13 + $0x860] sm:$0xff]
    %v3808 = vld [vmem:[#allocation13 + $0x868] sm:$0xf]
    %v3809 = vld [vmem:[#allocation13 + $0x86c] sm:$0xff]
    %v3810 = vld [vmem:[#allocation13 + $0x874] sm:$0xff]
    %v3811 = vld [vmem:[#allocation13 + $0x87c] sm:$0xff]
    %v3812 = vld [vmem:[#allocation13 + $0x884] sm:$0xf]
    %v3813 = vld [vmem:[#allocation13 + $0x888] sm:$0xff]
    %v3814 = vld [vmem:[#allocation13 + $0x890] sm:$0xff]
    %v3815 = vld [vmem:[#allocation13 + $0x898] sm:$0xff]
    %v3816 = vld [vmem:[#allocation13 + $0x8a0] sm:$0xf]
    %v3817 = vld [vmem:[#allocation13 + $0x8a4] sm:$0xff]
    %v3818 = vld [vmem:[#allocation13 + $0x8ac] sm:$0xff]
    %v3819 = vld [vmem:[#allocation13 + $0x8b4] sm:$0xff]
    %v3820 = vld [vmem:[#allocation13 + $0x8bc] sm:$0xf]
    %v3821 = vld [vmem:[#allocation13 + $0x8c0] sm:$0xff]
    %v3822 = vld [vmem:[#allocation13 + $0x8c8] sm:$0xff]
    %v3823 = vld [vmem:[#allocation13 + $0x8d0] sm:$0xff]
    %v3824 = vld [vmem:[#allocation13 + $0x8d8] sm:$0xf]
    %v3825 = vld [vmem:[#allocation13 + $0x8dc] sm:$0xff]
    %v3826 = vld [vmem:[#allocation13 + $0x8e4] sm:$0xff]
    %v3827 = vld [vmem:[#allocation13 + $0x8ec] sm:$0xff]
    %v3828 = vld [vmem:[#allocation13 + $0x8f4] sm:$0xf]
    %v3829 = vld [vmem:[#allocation13 + $0x8f8] sm:$0xff]
    %v3830 = vld [vmem:[#allocation13 + $0x900] sm:$0xff]
    %v3831 = vld [vmem:[#allocation13 + $0x908] sm:$0xff]
    %v3832 = vld [vmem:[#allocation13 + $0x910] sm:$0xf]
    %v3833 = vld [vmem:[#allocation13 + $0x914] sm:$0xff]
    %v3834 = vld [vmem:[#allocation13 + $0x91c] sm:$0xff]
    %v3835 = vld [vmem:[#allocation13 + $0x924] sm:$0xff]
    %v3836 = vld [vmem:[#allocation13 + $0x92c] sm:$0xf]
    %v3837 = vld [vmem:[#allocation13 + $0x930] sm:$0xff]
    %v3838 = vld [vmem:[#allocation13 + $0x938] sm:$0xff]
    %v3839 = vld [vmem:[#allocation13 + $0x940] sm:$0xff]
    %v3840 = vld [vmem:[#allocation13 + $0x948] sm:$0xf]
    %v3841 = vld [vmem:[#allocation13 + $0x94c] sm:$0xff]
    %v3842 = vld [vmem:[#allocation13 + $0x954] sm:$0xff]
    %v3843 = vld [vmem:[#allocation13 + $0x95c] sm:$0xff]
    %v3844 = vld [vmem:[#allocation13 + $0x964] sm:$0xf]
    %v3845 = vld [vmem:[#allocation13 + $0x968] sm:$0xff]
    %v3846 = vld [vmem:[#allocation13 + $0x970] sm:$0xff]
    %v3847 = vld [vmem:[#allocation13 + $0x978] sm:$0xff]
    %v3848 = vld [vmem:[#allocation13 + $0x980] sm:$0xf]
    %v3849 = vld [vmem:[#allocation13 + $0x984] sm:$0xff]
    %v3850 = vld [vmem:[#allocation13 + $0x98c] sm:$0xff]
    %v3851 = vld [vmem:[#allocation13 + $0x994] sm:$0xff]
    %v3852 = vld [vmem:[#allocation13 + $0x99c] sm:$0xf]
    %v3853 = vld [vmem:[#allocation13 + $0x9a0] sm:$0xff]
    %v3854 = vld [vmem:[#allocation13 + $0x9a8] sm:$0xff]
    %v3855 = vld [vmem:[#allocation13 + $0x9b0] sm:$0xff]
    %v3856 = vld [vmem:[#allocation13 + $0x9b8] sm:$0xf]
    %v3857 = vld [vmem:[#allocation13 + $0x9bc] sm:$0xff]
    %v3858 = vld [vmem:[#allocation13 + $0x9c4] sm:$0xff]
    %v3859 = vld [vmem:[#allocation13 + $0x9cc] sm:$0xff]
    %v3860 = vld [vmem:[#allocation13 + $0x9d4] sm:$0xf]
    %v3861 = vld [vmem:[#allocation13 + $0x9d8] sm:$0xff]
    %v3862 = vld [vmem:[#allocation13 + $0x9e0] sm:$0xff]
    %v3863 = vld [vmem:[#allocation13 + $0x9e8] sm:$0xff]
    %v3864 = vld [vmem:[#allocation13 + $0x9f0] sm:$0xf]
    %v3865 = vld [vmem:[#allocation13 + $0x9f4] sm:$0xff]
    %v3866 = vld [vmem:[#allocation13 + $0x9fc] sm:$0xff]
    %v3867 = vld [vmem:[#allocation13 + $0xa04] sm:$0xff]
    %v3868 = vld [vmem:[#allocation13 + $0xa0c] sm:$0xf]
    %v3869 = vld [vmem:[#allocation13 + $0xa10] sm:$0xff]
    %v3870 = vld [vmem:[#allocation13 + $0xa18] sm:$0xff]
    %v3871 = vld [vmem:[#allocation13 + $0xa20] sm:$0xff]
    %v3872 = vld [vmem:[#allocation13 + $0xa28] sm:$0xf]
    %v3873 = vld [vmem:[#allocation13 + $0xa2c] sm:$0xff]
    %v3874 = vld [vmem:[#allocation13 + $0xa34] sm:$0xff]
    %v3875 = vld [vmem:[#allocation13 + $0xa3c] sm:$0xff]
    %v3876 = vld [vmem:[#allocation13 + $0xa44] sm:$0xf]
    %v3877 = vld [vmem:[#allocation13 + $0xa48] sm:$0xff]
    %v3878 = vld [vmem:[#allocation13 + $0xa50] sm:$0xff]
    %v3879 = vld [vmem:[#allocation13 + $0xa58] sm:$0xff]
    %v3880 = vld [vmem:[#allocation13 + $0xa60] sm:$0xf]
    %v3881 = vld [vmem:[#allocation13 + $0xa64] sm:$0xff]
    %v3882 = vld [vmem:[#allocation13 + $0xa6c] sm:$0xff]
    %v3883 = vld [vmem:[#allocation13 + $0xa74] sm:$0xff]
    %v3884 = vld [vmem:[#allocation13 + $0xa7c] sm:$0xf]
    %v3885 = vld [vmem:[#allocation13 + $0xa80] sm:$0xff]
    %v3886 = vld [vmem:[#allocation13 + $0xa88] sm:$0xff]
    %v3887 = vld [vmem:[#allocation13 + $0xa90] sm:$0xff]
    %v3888 = vld [vmem:[#allocation13 + $0xa98] sm:$0xf]
    %v3889 = vld [vmem:[#allocation13 + $0xa9c] sm:$0xff]
    %v3890 = vld [vmem:[#allocation13 + $0xaa4] sm:$0xff]
    %v3891 = vld [vmem:[#allocation13 + $0xaac] sm:$0xff]
    %v3892 = vld [vmem:[#allocation13 + $0xab4] sm:$0xf]
    %v3893 = vld [vmem:[#allocation13 + $0xab8] sm:$0xff]
    %v3894 = vld [vmem:[#allocation13 + $0xac0] sm:$0xff]
    %v3895 = vld [vmem:[#allocation13 + $0xac8] sm:$0xff]
    %v3896 = vld [vmem:[#allocation13 + $0xad0] sm:$0xf]
    %v3897 = vld [vmem:[#allocation13 + $0xad4] sm:$0xff]
    %v3898 = vld [vmem:[#allocation13 + $0xadc] sm:$0xff]
    %v3899 = vld [vmem:[#allocation13 + $0xae4] sm:$0xff]
    %v3900 = vld [vmem:[#allocation13 + $0xaec] sm:$0xf]
    %v3901 = vld [vmem:[#allocation13 + $0xaf0] sm:$0xff]
    %v3902 = vld [vmem:[#allocation13 + $0xaf8] sm:$0xff]
    %v3903 = vld [vmem:[#allocation13 + $0xb00] sm:$0xff]
    %v3904 = vld [vmem:[#allocation13 + $0xb08] sm:$0xf]
    %v3905 = vld [vmem:[#allocation13 + $0xb0c] sm:$0xff]
    %v3906 = vld [vmem:[#allocation13 + $0xb14] sm:$0xff]
    %v3907 = vld [vmem:[#allocation13 + $0xb1c] sm:$0xff]
    %v3908 = vld [vmem:[#allocation13 + $0xb24] sm:$0xf]
    %v3909 = vld [vmem:[#allocation13 + $0xb28] sm:$0xff]
    %v3910 = vld [vmem:[#allocation13 + $0xb30] sm:$0xff]
    %v3911 = vld [vmem:[#allocation13 + $0xb38] sm:$0xff]
    %v3912 = vld [vmem:[#allocation13 + $0xb40] sm:$0xf]
    %v3913 = vld [vmem:[#allocation13 + $0xb44] sm:$0xff]
    %v3914 = vld [vmem:[#allocation13 + $0xb4c] sm:$0xff]
    %v3915 = vld [vmem:[#allocation13 + $0xb54] sm:$0xff]
    %v3916 = vld [vmem:[#allocation13 + $0xb5c] sm:$0xf]
    %v3917 = vld [vmem:[#allocation13 + $0xb60] sm:$0xff]
    %v3918 = vld [vmem:[#allocation13 + $0xb68] sm:$0xff]
    %v3919 = vld [vmem:[#allocation13 + $0xb70] sm:$0xff]
    %v3920 = vld [vmem:[#allocation13 + $0xb78] sm:$0xf]
    %v3921 = vld [vmem:[#allocation13 + $0xb7c] sm:$0xff]
    %v3922 = vld [vmem:[#allocation13 + $0xb84] sm:$0xff]
    %v3923 = vld [vmem:[#allocation13 + $0xb8c] sm:$0xff]
    %v3924 = vld [vmem:[#allocation13 + $0xb94] sm:$0xf]
    %v3925 = vld [vmem:[#allocation13 + $0xb98] sm:$0xff]
    %v3926 = vld [vmem:[#allocation13 + $0xba0] sm:$0xff]
    %v3927 = vld [vmem:[#allocation13 + $0xba8] sm:$0xff]
    %v3928 = vld [vmem:[#allocation13 + $0xbb0] sm:$0xf]
    %v3929 = vld [vmem:[#allocation13 + $0xbb4] sm:$0xff]
    %v3930 = vld [vmem:[#allocation13 + $0xbbc] sm:$0xff]
    %v3931 = vld [vmem:[#allocation13 + $0xbc4] sm:$0xff]
    %v3932 = vld [vmem:[#allocation13 + $0xbcc] sm:$0xf]
    %v3933 = vld [vmem:[#allocation13 + $0xbd0] sm:$0xff]
    %v3934 = vld [vmem:[#allocation13 + $0xbd8] sm:$0xff]
    %v3935 = vld [vmem:[#allocation13 + $0xbe0] sm:$0xff]
    %v3936 = vld [vmem:[#allocation13 + $0xbe8] sm:$0xf]
    %v3937 = vld [vmem:[#allocation13 + $0xbec] sm:$0xff]
    %v3938 = vld [vmem:[#allocation13 + $0xbf4] sm:$0xff]
    %v3939 = vld [vmem:[#allocation13 + $0xbfc] sm:$0xff]
    %v3940 = vld [vmem:[#allocation13 + $0xc04] sm:$0xf]
    %v3941 = vld [vmem:[#allocation13 + $0xc08] sm:$0xff]
    %v3942 = vld [vmem:[#allocation13 + $0xc10] sm:$0xff]
    %v3943 = vld [vmem:[#allocation13 + $0xc18] sm:$0xff]
    %v3944 = vld [vmem:[#allocation13 + $0xc20] sm:$0xf]
    %v3945 = vld [vmem:[#allocation13 + $0xc24] sm:$0xff]
    %v3946 = vld [vmem:[#allocation13 + $0xc2c] sm:$0xff]
    %v3947 = vld [vmem:[#allocation13 + $0xc34] sm:$0xff]
    %v3948 = vld [vmem:[#allocation13 + $0xc3c] sm:$0xf]
    %v3949 = vld [vmem:[#allocation13 + $0xc40] sm:$0xff]
    %v3950 = vld [vmem:[#allocation13 + $0xc48] sm:$0xff]
    %v3951 = vld [vmem:[#allocation13 + $0xc50] sm:$0xff]
    %v3952 = vld [vmem:[#allocation13 + $0xc58] sm:$0xf]
    %v3953 = vld [vmem:[#allocation13 + $0xc5c] sm:$0xff]
    %v3954 = vld [vmem:[#allocation13 + $0xc64] sm:$0xff]
    %v3955 = vld [vmem:[#allocation13 + $0xc6c] sm:$0xff]
    %v3956 = vld [vmem:[#allocation13 + $0xc74] sm:$0xf]
    %v3957 = vld [vmem:[#allocation13 + $0xc78] sm:$0xff]
    %v3958 = vld [vmem:[#allocation13 + $0xc80] sm:$0xff]
    %v3959 = vld [vmem:[#allocation13 + $0xc88] sm:$0xff]
    %v3960 = vld [vmem:[#allocation13 + $0xc90] sm:$0xf]
    %v3961 = vld [vmem:[#allocation13 + $0xc94] sm:$0xff]
    %v3962 = vld [vmem:[#allocation13 + $0xc9c] sm:$0xff]
    %v3963 = vld [vmem:[#allocation13 + $0xca4] sm:$0xff]
    %v3964 = vld [vmem:[#allocation13 + $0xcac] sm:$0xf]
    %v3965 = vld [vmem:[#allocation13 + $0xcb0] sm:$0xff]
    %v3966 = vld [vmem:[#allocation13 + $0xcb8] sm:$0xff]
    %v3967 = vld [vmem:[#allocation13 + $0xcc0] sm:$0xff]
    %v3968 = vld [vmem:[#allocation13 + $0xcc8] sm:$0xf]
    %v3969 = vld [vmem:[#allocation13 + $0xccc] sm:$0xff]
    %v3970 = vld [vmem:[#allocation13 + $0xcd4] sm:$0xff]
    %v3971 = vld [vmem:[#allocation13 + $0xcdc] sm:$0xff]
    %v3972 = vld [vmem:[#allocation13 + $0xce4] sm:$0xf]
    %v3973 = vld [vmem:[#allocation13 + $0xce8] sm:$0xff]
    %v3974 = vld [vmem:[#allocation13 + $0xcf0] sm:$0xff]
    %v3975 = vld [vmem:[#allocation13 + $0xcf8] sm:$0xff]
    %v3976 = vld [vmem:[#allocation13 + $0xd00] sm:$0xf]
    %v3977 = vld [vmem:[#allocation13 + $0xd04] sm:$0xff]
    %v3978 = vld [vmem:[#allocation13 + $0xd0c] sm:$0xff]
    %v3979 = vld [vmem:[#allocation13 + $0xd14] sm:$0xff]
    %v3980 = vld [vmem:[#allocation13 + $0xd1c] sm:$0xf]
    %v3981 = vld [vmem:[#allocation13 + $0xd20] sm:$0xff]
    %v3982 = vld [vmem:[#allocation13 + $0xd28] sm:$0xff]
    %v3983 = vld [vmem:[#allocation13 + $0xd30] sm:$0xff]
    %v3984 = vld [vmem:[#allocation13 + $0xd38] sm:$0xf]
    %v3985 = vld [vmem:[#allocation13 + $0xd3c] sm:$0xff]
    %v3986 = vld [vmem:[#allocation13 + $0xd44] sm:$0xff]
    %v3987 = vld [vmem:[#allocation13 + $0xd4c] sm:$0xff]
    %v3988 = vld [vmem:[#allocation13 + $0xd54] sm:$0xf]
    %v3989 = vld [vmem:[#allocation13 + $0xd58] sm:$0xff]
    %v3990 = vld [vmem:[#allocation13 + $0xd60] sm:$0xff]
    %v3991 = vld [vmem:[#allocation13 + $0xd68] sm:$0xff]
    %v3992 = vld [vmem:[#allocation13 + $0xd70] sm:$0xf]
    %v3993 = vld [vmem:[#allocation13 + $0xd74] sm:$0xff]
    %v3994 = vld [vmem:[#allocation13 + $0xd7c] sm:$0xff]
    %v3995 = vld [vmem:[#allocation13 + $0xd84] sm:$0xff]
    %v3996 = vld [vmem:[#allocation13 + $0xd8c] sm:$0xf]
    %v3997 = vld [vmem:[#allocation13 + $0xd90] sm:$0xff]
    %v3998 = vld [vmem:[#allocation13 + $0xd98] sm:$0xff]
    %v3999 = vld [vmem:[#allocation13 + $0xda0] sm:$0xff]
    %v4000 = vld [vmem:[#allocation13 + $0xda8] sm:$0xf]
    %v4001 = vld [vmem:[#allocation13 + $0xdac] sm:$0xff]
    %v4002 = vld [vmem:[#allocation13 + $0xdb4] sm:$0xff]
    %v4003 = vld [vmem:[#allocation13 + $0xdbc] sm:$0xff]
    %v4004 = vld [vmem:[#allocation13 + $0xdc4] sm:$0xf]
    %v4005 = vld [vmem:[#allocation13 + $0xdc8] sm:$0xff]
    %v4006 = vld [vmem:[#allocation13 + $0xdd0] sm:$0xff]
    %v4007 = vld [vmem:[#allocation13 + $0xdd8] sm:$0xff]
    %v4008 = vld [vmem:[#allocation13 + $0xde0] sm:$0xf]
    %v4009 = vld [vmem:[#allocation13 + $0xde4] sm:$0xff]
    %v4010 = vld [vmem:[#allocation13 + $0xdec] sm:$0xff]
    %v4011 = vld [vmem:[#allocation13 + $0xdf4] sm:$0xff]
    %v4012 = vld [vmem:[#allocation13 + $0xdfc] sm:$0xf]
    %v4013 = vld [vmem:[#allocation14] sm:$0xff]
    %v4015 = vlaneseq
    %v4016 = vshrl.u32 %v4015, 7
    %v4017 = vsub.s32 0, %v4016
    %v4018 = vrot.slane %v4013, %v4017
    %v4019 = vlaneseq
    %v4020 = vshrl.u32 %v4019, 7
    %v4021 = vsub.s32 1, %v4020
    %v4022 = vrot.slane %v4013, %v4021
    %v4023 = vlaneseq
    %v4024 = vshrl.u32 %v4023, 7
    %v4025 = vsub.s32 2, %v4024
    %v4026 = vrot.slane %v4013, %v4025
    %v4027 = vlaneseq
    %v4028 = vshrl.u32 %v4027, 7
    %v4029 = vsub.s32 3, %v4028
    %v4030 = vrot.slane %v4013, %v4029
    %v4031 = vlaneseq
    %v4032 = vshrl.u32 %v4031, 7
    %v4033 = vsub.s32 4, %v4032
    %v4034 = vrot.slane %v4013, %v4033
    %v4035 = vlaneseq
    %v4036 = vshrl.u32 %v4035, 7
    %v4037 = vsub.s32 5, %v4036
    %v4038 = vrot.slane %v4013, %v4037
    %v4039 = vlaneseq
    %v4040 = vshrl.u32 %v4039, 7
    %v4041 = vsub.s32 6, %v4040
    %v4042 = vrot.slane %v4013, %v4041
    %v4562 = vunpack.c.l.b16 %v3501
    %v4563 = vunpack.c.h.b16 %v3501
    %v4564 = vunpack.c.l.b16 %v3502
    %v4565 = vunpack.c.h.b16 %v3502
    %v4566 = vunpack.c.l.b16 %v3503
    %v4567 = vunpack.c.h.b16 %v3503
    %v4568 = vunpack.c.l.b16 %v3504
    %v4569 = vunpack.c.l.b16 %v3505
    %v4570 = vunpack.c.h.b16 %v3505
    %v4571 = vunpack.c.l.b16 %v3506
    %v4572 = vunpack.c.h.b16 %v3506
    %v4573 = vunpack.c.l.b16 %v3507
    %v4574 = vunpack.c.h.b16 %v3507
    %v4575 = vunpack.c.l.b16 %v3508
    %v4576 = vunpack.c.l.b16 %v3509
    %v4577 = vunpack.c.h.b16 %v3509
    %v4578 = vunpack.c.l.b16 %v3510
    %v4579 = vunpack.c.h.b16 %v3510
    %v4580 = vunpack.c.l.b16 %v3511
    %v4581 = vunpack.c.h.b16 %v3511
    %v4582 = vunpack.c.l.b16 %v3512
    %v4583 = vunpack.c.l.b16 %v3513
    %v4584 = vunpack.c.h.b16 %v3513
    %v4585 = vunpack.c.l.b16 %v3514
    %v4586 = vunpack.c.h.b16 %v3514
    %v4587 = vunpack.c.l.b16 %v3515
    %v4588 = vunpack.c.h.b16 %v3515
    %v4589 = vunpack.c.l.b16 %v3516
    %v4590 = vunpack.c.l.b16 %v3517
    %v4591 = vunpack.c.h.b16 %v3517
    %v4592 = vunpack.c.l.b16 %v3518
    %v4593 = vunpack.c.h.b16 %v3518
    %v4594 = vunpack.c.l.b16 %v3519
    %v4595 = vunpack.c.h.b16 %v3519
    %v4596 = vunpack.c.l.b16 %v3520
    %v4597 = vunpack.c.l.b16 %v3521
    %v4598 = vunpack.c.h.b16 %v3521
    %v4599 = vunpack.c.l.b16 %v3522
    %v4600 = vunpack.c.h.b16 %v3522
    %v4601 = vunpack.c.l.b16 %v3523
    %v4602 = vunpack.c.h.b16 %v3523
    %v4603 = vunpack.c.l.b16 %v3524
    %v4604 = vunpack.c.l.b16 %v3525
    %v4605 = vunpack.c.h.b16 %v3525
    %v4606 = vunpack.c.l.b16 %v3526
    %v4607 = vunpack.c.h.b16 %v3526
    %v4608 = vunpack.c.l.b16 %v3527
    %v4609 = vunpack.c.h.b16 %v3527
    %v4610 = vunpack.c.l.b16 %v3528
    %v4611 = vunpack.c.l.b16 %v3529
    %v4612 = vunpack.c.h.b16 %v3529
    %v4613 = vunpack.c.l.b16 %v3530
    %v4614 = vunpack.c.h.b16 %v3530
    %v4615 = vunpack.c.l.b16 %v3531
    %v4616 = vunpack.c.h.b16 %v3531
    %v4617 = vunpack.c.l.b16 %v3532
    %v4618 = vunpack.c.l.b16 %v3533
    %v4619 = vunpack.c.h.b16 %v3533
    %v4620 = vunpack.c.l.b16 %v3534
    %v4621 = vunpack.c.h.b16 %v3534
    %v4622 = vunpack.c.l.b16 %v3535
    %v4623 = vunpack.c.h.b16 %v3535
    %v4624 = vunpack.c.l.b16 %v3536
    %v4625 = vunpack.c.l.b16 %v3537
    %v4626 = vunpack.c.h.b16 %v3537
    %v4627 = vunpack.c.l.b16 %v3538
    %v4628 = vunpack.c.h.b16 %v3538
    %v4629 = vunpack.c.l.b16 %v3539
    %v4630 = vunpack.c.h.b16 %v3539
    %v4631 = vunpack.c.l.b16 %v3540
    %v4632 = vunpack.c.l.b16 %v3541
    %v4633 = vunpack.c.h.b16 %v3541
    %v4634 = vunpack.c.l.b16 %v3542
    %v4635 = vunpack.c.h.b16 %v3542
    %v4636 = vunpack.c.l.b16 %v3543
    %v4637 = vunpack.c.h.b16 %v3543
    %v4638 = vunpack.c.l.b16 %v3544
    %v4639 = vunpack.c.l.b16 %v3545
    %v4640 = vunpack.c.h.b16 %v3545
    %v4641 = vunpack.c.l.b16 %v3546
    %v4642 = vunpack.c.h.b16 %v3546
    %v4643 = vunpack.c.l.b16 %v3547
    %v4644 = vunpack.c.h.b16 %v3547
    %v4645 = vunpack.c.l.b16 %v3548
    %v4646 = vunpack.c.l.b16 %v3549
    %v4647 = vunpack.c.h.b16 %v3549
    %v4648 = vunpack.c.l.b16 %v3550
    %v4649 = vunpack.c.h.b16 %v3550
    %v4650 = vunpack.c.l.b16 %v3551
    %v4651 = vunpack.c.h.b16 %v3551
    %v4652 = vunpack.c.l.b16 %v3552
    %v4653 = vunpack.c.l.b16 %v3553
    %v4654 = vunpack.c.h.b16 %v3553
    %v4655 = vunpack.c.l.b16 %v3554
    %v4656 = vunpack.c.h.b16 %v3554
    %v4657 = vunpack.c.l.b16 %v3555
    %v4658 = vunpack.c.h.b16 %v3555
    %v4659 = vunpack.c.l.b16 %v3556
    %v4660 = vunpack.c.l.b16 %v3557
    %v4661 = vunpack.c.h.b16 %v3557
    %v4662 = vunpack.c.l.b16 %v3558
    %v4663 = vunpack.c.h.b16 %v3558
    %v4664 = vunpack.c.l.b16 %v3559
    %v4665 = vunpack.c.h.b16 %v3559
    %v4666 = vunpack.c.l.b16 %v3560
    %v4667 = vunpack.c.l.b16 %v3561
    %v4668 = vunpack.c.h.b16 %v3561
    %v4669 = vunpack.c.l.b16 %v3562
    %v4670 = vunpack.c.h.b16 %v3562
    %v4671 = vunpack.c.l.b16 %v3563
    %v4672 = vunpack.c.h.b16 %v3563
    %v4673 = vunpack.c.l.b16 %v3564
    %v4674 = vunpack.c.l.b16 %v3565
    %v4675 = vunpack.c.h.b16 %v3565
    %v4676 = vunpack.c.l.b16 %v3566
    %v4677 = vunpack.c.h.b16 %v3566
    %v4678 = vunpack.c.l.b16 %v3567
    %v4679 = vunpack.c.h.b16 %v3567
    %v4680 = vunpack.c.l.b16 %v3568
    %v4681 = vunpack.c.l.b16 %v3569
    %v4682 = vunpack.c.h.b16 %v3569
    %v4683 = vunpack.c.l.b16 %v3570
    %v4684 = vunpack.c.h.b16 %v3570
    %v4685 = vunpack.c.l.b16 %v3571
    %v4686 = vunpack.c.h.b16 %v3571
    %v4687 = vunpack.c.l.b16 %v3572
    %v4688 = vunpack.c.l.b16 %v3573
    %v4689 = vunpack.c.h.b16 %v3573
    %v4690 = vunpack.c.l.b16 %v3574
    %v4691 = vunpack.c.h.b16 %v3574
    %v4692 = vunpack.c.l.b16 %v3575
    %v4693 = vunpack.c.h.b16 %v3575
    %v4694 = vunpack.c.l.b16 %v3576
    %v4695 = vunpack.c.l.b16 %v3577
    %v4696 = vunpack.c.h.b16 %v3577
    %v4697 = vunpack.c.l.b16 %v3578
    %v4698 = vunpack.c.h.b16 %v3578
    %v4699 = vunpack.c.l.b16 %v3579
    %v4700 = vunpack.c.h.b16 %v3579
    %v4701 = vunpack.c.l.b16 %v3580
    %v4702 = vunpack.c.l.b16 %v3581
    %v4703 = vunpack.c.h.b16 %v3581
    %v4704 = vunpack.c.l.b16 %v3582
    %v4705 = vunpack.c.h.b16 %v3582
    %v4706 = vunpack.c.l.b16 %v3583
    %v4707 = vunpack.c.h.b16 %v3583
    %v4708 = vunpack.c.l.b16 %v3584
    %v4709 = vunpack.c.l.b16 %v3585
    %v4710 = vunpack.c.h.b16 %v3585
    %v4711 = vunpack.c.l.b16 %v3586
    %v4712 = vunpack.c.h.b16 %v3586
    %v4713 = vunpack.c.l.b16 %v3587
    %v4714 = vunpack.c.h.b16 %v3587
    %v4715 = vunpack.c.l.b16 %v3588
    %v4716 = vunpack.c.l.b16 %v3589
    %v4717 = vunpack.c.h.b16 %v3589
    %v4718 = vunpack.c.l.b16 %v3590
    %v4719 = vunpack.c.h.b16 %v3590
    %v4720 = vunpack.c.l.b16 %v3591
    %v4721 = vunpack.c.h.b16 %v3591
    %v4722 = vunpack.c.l.b16 %v3592
    %v4723 = vunpack.c.l.b16 %v3593
    %v4724 = vunpack.c.h.b16 %v3593
    %v4725 = vunpack.c.l.b16 %v3594
    %v4726 = vunpack.c.h.b16 %v3594
    %v4727 = vunpack.c.l.b16 %v3595
    %v4728 = vunpack.c.h.b16 %v3595
    %v4729 = vunpack.c.l.b16 %v3596
    %v4730 = vunpack.c.l.b16 %v3597
    %v4731 = vunpack.c.h.b16 %v3597
    %v4732 = vunpack.c.l.b16 %v3598
    %v4733 = vunpack.c.h.b16 %v3598
    %v4734 = vunpack.c.l.b16 %v3599
    %v4735 = vunpack.c.h.b16 %v3599
    %v4736 = vunpack.c.l.b16 %v3600
    %v4737 = vunpack.c.l.b16 %v3601
    %v4738 = vunpack.c.h.b16 %v3601
    %v4739 = vunpack.c.l.b16 %v3602
    %v4740 = vunpack.c.h.b16 %v3602
    %v4741 = vunpack.c.l.b16 %v3603
    %v4742 = vunpack.c.h.b16 %v3603
    %v4743 = vunpack.c.l.b16 %v3604
    %v4744 = vunpack.c.l.b16 %v3605
    %v4745 = vunpack.c.h.b16 %v3605
    %v4746 = vunpack.c.l.b16 %v3606
    %v4747 = vunpack.c.h.b16 %v3606
    %v4748 = vunpack.c.l.b16 %v3607
    %v4749 = vunpack.c.h.b16 %v3607
    %v4750 = vunpack.c.l.b16 %v3608
    %v4751 = vunpack.c.l.b16 %v3609
    %v4752 = vunpack.c.h.b16 %v3609
    %v4753 = vunpack.c.l.b16 %v3610
    %v4754 = vunpack.c.h.b16 %v3610
    %v4755 = vunpack.c.l.b16 %v3611
    %v4756 = vunpack.c.h.b16 %v3611
    %v4757 = vunpack.c.l.b16 %v3612
    %v4758 = vunpack.c.l.b16 %v3613
    %v4759 = vunpack.c.h.b16 %v3613
    %v4760 = vunpack.c.l.b16 %v3614
    %v4761 = vunpack.c.h.b16 %v3614
    %v4762 = vunpack.c.l.b16 %v3615
    %v4763 = vunpack.c.h.b16 %v3615
    %v4764 = vunpack.c.l.b16 %v3616
    %v4765 = vunpack.c.l.b16 %v3617
    %v4766 = vunpack.c.h.b16 %v3617
    %v4767 = vunpack.c.l.b16 %v3618
    %v4768 = vunpack.c.h.b16 %v3618
    %v4769 = vunpack.c.l.b16 %v3619
    %v4770 = vunpack.c.h.b16 %v3619
    %v4771 = vunpack.c.l.b16 %v3620
    %v4772 = vunpack.c.l.b16 %v3621
    %v4773 = vunpack.c.h.b16 %v3621
    %v4774 = vunpack.c.l.b16 %v3622
    %v4775 = vunpack.c.h.b16 %v3622
    %v4776 = vunpack.c.l.b16 %v3623
    %v4777 = vunpack.c.h.b16 %v3623
    %v4778 = vunpack.c.l.b16 %v3624
    %v4779 = vunpack.c.l.b16 %v3625
    %v4780 = vunpack.c.h.b16 %v3625
    %v4781 = vunpack.c.l.b16 %v3626
    %v4782 = vunpack.c.h.b16 %v3626
    %v4783 = vunpack.c.l.b16 %v3627
    %v4784 = vunpack.c.h.b16 %v3627
    %v4785 = vunpack.c.l.b16 %v3628
    %v4786 = vunpack.c.l.b16 %v3629
    %v4787 = vunpack.c.h.b16 %v3629
    %v4788 = vunpack.c.l.b16 %v3630
    %v4789 = vunpack.c.h.b16 %v3630
    %v4790 = vunpack.c.l.b16 %v3631
    %v4791 = vunpack.c.h.b16 %v3631
    %v4792 = vunpack.c.l.b16 %v3632
    %v4793 = vunpack.c.l.b16 %v3633
    %v4794 = vunpack.c.h.b16 %v3633
    %v4795 = vunpack.c.l.b16 %v3634
    %v4796 = vunpack.c.h.b16 %v3634
    %v4797 = vunpack.c.l.b16 %v3635
    %v4798 = vunpack.c.h.b16 %v3635
    %v4799 = vunpack.c.l.b16 %v3636
    %v4800 = vunpack.c.l.b16 %v3637
    %v4801 = vunpack.c.h.b16 %v3637
    %v4802 = vunpack.c.l.b16 %v3638
    %v4803 = vunpack.c.h.b16 %v3638
    %v4804 = vunpack.c.l.b16 %v3639
    %v4805 = vunpack.c.h.b16 %v3639
    %v4806 = vunpack.c.l.b16 %v3640
    %v4807 = vunpack.c.l.b16 %v3641
    %v4808 = vunpack.c.h.b16 %v3641
    %v4809 = vunpack.c.l.b16 %v3642
    %v4810 = vunpack.c.h.b16 %v3642
    %v4811 = vunpack.c.l.b16 %v3643
    %v4812 = vunpack.c.h.b16 %v3643
    %v4813 = vunpack.c.l.b16 %v3644
    %v4814 = vunpack.c.l.b16 %v3645
    %v4815 = vunpack.c.h.b16 %v3645
    %v4816 = vunpack.c.l.b16 %v3646
    %v4817 = vunpack.c.h.b16 %v3646
    %v4818 = vunpack.c.l.b16 %v3647
    %v4819 = vunpack.c.h.b16 %v3647
    %v4820 = vunpack.c.l.b16 %v3648
    %v4821 = vunpack.c.l.b16 %v3649
    %v4822 = vunpack.c.h.b16 %v3649
    %v4823 = vunpack.c.l.b16 %v3650
    %v4824 = vunpack.c.h.b16 %v3650
    %v4825 = vunpack.c.l.b16 %v3651
    %v4826 = vunpack.c.h.b16 %v3651
    %v4827 = vunpack.c.l.b16 %v3652
    %v4828 = vunpack.c.l.b16 %v3653
    %v4829 = vunpack.c.h.b16 %v3653
    %v4830 = vunpack.c.l.b16 %v3654
    %v4831 = vunpack.c.h.b16 %v3654
    %v4832 = vunpack.c.l.b16 %v3655
    %v4833 = vunpack.c.h.b16 %v3655
    %v4834 = vunpack.c.l.b16 %v3656
    %v4835 = vunpack.c.l.b16 %v3657
    %v4836 = vunpack.c.h.b16 %v3657
    %v4837 = vunpack.c.l.b16 %v3658
    %v4838 = vunpack.c.h.b16 %v3658
    %v4839 = vunpack.c.l.b16 %v3659
    %v4840 = vunpack.c.h.b16 %v3659
    %v4841 = vunpack.c.l.b16 %v3660
    %v4842 = vunpack.c.l.b16 %v3661
    %v4843 = vunpack.c.h.b16 %v3661
    %v4844 = vunpack.c.l.b16 %v3662
    %v4845 = vunpack.c.h.b16 %v3662
    %v4846 = vunpack.c.l.b16 %v3663
    %v4847 = vunpack.c.h.b16 %v3663
    %v4848 = vunpack.c.l.b16 %v3664
    %v4849 = vunpack.c.l.b16 %v3665
    %v4850 = vunpack.c.h.b16 %v3665
    %v4851 = vunpack.c.l.b16 %v3666
    %v4852 = vunpack.c.h.b16 %v3666
    %v4853 = vunpack.c.l.b16 %v3667
    %v4854 = vunpack.c.h.b16 %v3667
    %v4855 = vunpack.c.l.b16 %v3668
    %v4856 = vunpack.c.l.b16 %v3669
    %v4857 = vunpack.c.h.b16 %v3669
    %v4858 = vunpack.c.l.b16 %v3670
    %v4859 = vunpack.c.h.b16 %v3670
    %v4860 = vunpack.c.l.b16 %v3671
    %v4861 = vunpack.c.h.b16 %v3671
    %v4862 = vunpack.c.l.b16 %v3672
    %v4863 = vunpack.c.l.b16 %v3673
    %v4864 = vunpack.c.h.b16 %v3673
    %v4865 = vunpack.c.l.b16 %v3674
    %v4866 = vunpack.c.h.b16 %v3674
    %v4867 = vunpack.c.l.b16 %v3675
    %v4868 = vunpack.c.h.b16 %v3675
    %v4869 = vunpack.c.l.b16 %v3676
    %v4870 = vunpack.c.l.b16 %v3677
    %v4871 = vunpack.c.h.b16 %v3677
    %v4872 = vunpack.c.l.b16 %v3678
    %v4873 = vunpack.c.h.b16 %v3678
    %v4874 = vunpack.c.l.b16 %v3679
    %v4875 = vunpack.c.h.b16 %v3679
    %v4876 = vunpack.c.l.b16 %v3680
    %v4877 = vunpack.c.l.b16 %v3681
    %v4878 = vunpack.c.h.b16 %v3681
    %v4879 = vunpack.c.l.b16 %v3682
    %v4880 = vunpack.c.h.b16 %v3682
    %v4881 = vunpack.c.l.b16 %v3683
    %v4882 = vunpack.c.h.b16 %v3683
    %v4883 = vunpack.c.l.b16 %v3684
    %v4884 = vunpack.c.l.b16 %v3685
    %v4885 = vunpack.c.h.b16 %v3685
    %v4886 = vunpack.c.l.b16 %v3686
    %v4887 = vunpack.c.h.b16 %v3686
    %v4888 = vunpack.c.l.b16 %v3687
    %v4889 = vunpack.c.h.b16 %v3687
    %v4890 = vunpack.c.l.b16 %v3688
    %v4891 = vunpack.c.l.b16 %v3689
    %v4892 = vunpack.c.h.b16 %v3689
    %v4893 = vunpack.c.l.b16 %v3690
    %v4894 = vunpack.c.h.b16 %v3690
    %v4895 = vunpack.c.l.b16 %v3691
    %v4896 = vunpack.c.h.b16 %v3691
    %v4897 = vunpack.c.l.b16 %v3692
    %v4898 = vunpack.c.l.b16 %v3693
    %v4899 = vunpack.c.h.b16 %v3693
    %v4900 = vunpack.c.l.b16 %v3694
    %v4901 = vunpack.c.h.b16 %v3694
    %v4902 = vunpack.c.l.b16 %v3695
    %v4903 = vunpack.c.h.b16 %v3695
    %v4904 = vunpack.c.l.b16 %v3696
    %v4905 = vunpack.c.l.b16 %v3697
    %v4906 = vunpack.c.h.b16 %v3697
    %v4907 = vunpack.c.l.b16 %v3698
    %v4908 = vunpack.c.h.b16 %v3698
    %v4909 = vunpack.c.l.b16 %v3699
    %v4910 = vunpack.c.h.b16 %v3699
    %v4911 = vunpack.c.l.b16 %v3700
    %v4912 = vunpack.c.l.b16 %v3701
    %v4913 = vunpack.c.h.b16 %v3701
    %v4914 = vunpack.c.l.b16 %v3702
    %v4915 = vunpack.c.h.b16 %v3702
    %v4916 = vunpack.c.l.b16 %v3703
    %v4917 = vunpack.c.h.b16 %v3703
    %v4918 = vunpack.c.l.b16 %v3704
    %v4919 = vunpack.c.l.b16 %v3705
    %v4920 = vunpack.c.h.b16 %v3705
    %v4921 = vunpack.c.l.b16 %v3706
    %v4922 = vunpack.c.h.b16 %v3706
    %v4923 = vunpack.c.l.b16 %v3707
    %v4924 = vunpack.c.h.b16 %v3707
    %v4925 = vunpack.c.l.b16 %v3708
    %v4926 = vunpack.c.l.b16 %v3709
    %v4927 = vunpack.c.h.b16 %v3709
    %v4928 = vunpack.c.l.b16 %v3710
    %v4929 = vunpack.c.h.b16 %v3710
    %v4930 = vunpack.c.l.b16 %v3711
    %v4931 = vunpack.c.h.b16 %v3711
    %v4932 = vunpack.c.l.b16 %v3712
    %v4933 = vunpack.c.l.b16 %v3713
    %v4934 = vunpack.c.h.b16 %v3713
    %v4935 = vunpack.c.l.b16 %v3714
    %v4936 = vunpack.c.h.b16 %v3714
    %v4937 = vunpack.c.l.b16 %v3715
    %v4938 = vunpack.c.h.b16 %v3715
    %v4939 = vunpack.c.l.b16 %v3716
    %v4940 = vunpack.c.l.b16 %v3717
    %v4941 = vunpack.c.h.b16 %v3717
    %v4942 = vunpack.c.l.b16 %v3718
    %v4943 = vunpack.c.h.b16 %v3718
    %v4944 = vunpack.c.l.b16 %v3719
    %v4945 = vunpack.c.h.b16 %v3719
    %v4946 = vunpack.c.l.b16 %v3720
    %v4947 = vunpack.c.l.b16 %v3721
    %v4948 = vunpack.c.h.b16 %v3721
    %v4949 = vunpack.c.l.b16 %v3722
    %v4950 = vunpack.c.h.b16 %v3722
    %v4951 = vunpack.c.l.b16 %v3723
    %v4952 = vunpack.c.h.b16 %v3723
    %v4953 = vunpack.c.l.b16 %v3724
    %v4954 = vunpack.c.l.b16 %v3725
    %v4955 = vunpack.c.h.b16 %v3725
    %v4956 = vunpack.c.l.b16 %v3726
    %v4957 = vunpack.c.h.b16 %v3726
    %v4958 = vunpack.c.l.b16 %v3727
    %v4959 = vunpack.c.h.b16 %v3727
    %v4960 = vunpack.c.l.b16 %v3728
    %v4961 = vunpack.c.l.b16 %v3729
    %v4962 = vunpack.c.h.b16 %v3729
    %v4963 = vunpack.c.l.b16 %v3730
    %v4964 = vunpack.c.h.b16 %v3730
    %v4965 = vunpack.c.l.b16 %v3731
    %v4966 = vunpack.c.h.b16 %v3731
    %v4967 = vunpack.c.l.b16 %v3732
    %v4968 = vunpack.c.l.b16 %v3733
    %v4969 = vunpack.c.h.b16 %v3733
    %v4970 = vunpack.c.l.b16 %v3734
    %v4971 = vunpack.c.h.b16 %v3734
    %v4972 = vunpack.c.l.b16 %v3735
    %v4973 = vunpack.c.h.b16 %v3735
    %v4974 = vunpack.c.l.b16 %v3736
    %v4975 = vunpack.c.l.b16 %v3737
    %v4976 = vunpack.c.h.b16 %v3737
    %v4977 = vunpack.c.l.b16 %v3738
    %v4978 = vunpack.c.h.b16 %v3738
    %v4979 = vunpack.c.l.b16 %v3739
    %v4980 = vunpack.c.h.b16 %v3739
    %v4981 = vunpack.c.l.b16 %v3740
    %v4982 = vunpack.c.l.b16 %v3741
    %v4983 = vunpack.c.h.b16 %v3741
    %v4984 = vunpack.c.l.b16 %v3742
    %v4985 = vunpack.c.h.b16 %v3742
    %v4986 = vunpack.c.l.b16 %v3743
    %v4987 = vunpack.c.h.b16 %v3743
    %v4988 = vunpack.c.l.b16 %v3744
    %v4989 = vunpack.c.l.b16 %v3745
    %v4990 = vunpack.c.h.b16 %v3745
    %v4991 = vunpack.c.l.b16 %v3746
    %v4992 = vunpack.c.h.b16 %v3746
    %v4993 = vunpack.c.l.b16 %v3747
    %v4994 = vunpack.c.h.b16 %v3747
    %v4995 = vunpack.c.l.b16 %v3748
    %v4996 = vunpack.c.l.b16 %v3749
    %v4997 = vunpack.c.h.b16 %v3749
    %v4998 = vunpack.c.l.b16 %v3750
    %v4999 = vunpack.c.h.b16 %v3750
    %v5000 = vunpack.c.l.b16 %v3751
    %v5001 = vunpack.c.h.b16 %v3751
    %v5002 = vunpack.c.l.b16 %v3752
    %v5003 = vunpack.c.l.b16 %v3753
    %v5004 = vunpack.c.h.b16 %v3753
    %v5005 = vunpack.c.l.b16 %v3754
    %v5006 = vunpack.c.h.b16 %v3754
    %v5007 = vunpack.c.l.b16 %v3755
    %v5008 = vunpack.c.h.b16 %v3755
    %v5009 = vunpack.c.l.b16 %v3756
    %v5010 = vunpack.c.l.b16 %v3757
    %v5011 = vunpack.c.h.b16 %v3757
    %v5012 = vunpack.c.l.b16 %v3758
    %v5013 = vunpack.c.h.b16 %v3758
    %v5014 = vunpack.c.l.b16 %v3759
    %v5015 = vunpack.c.h.b16 %v3759
    %v5016 = vunpack.c.l.b16 %v3760
    %v5017 = vunpack.c.l.b16 %v3761
    %v5018 = vunpack.c.h.b16 %v3761
    %v5019 = vunpack.c.l.b16 %v3762
    %v5020 = vunpack.c.h.b16 %v3762
    %v5021 = vunpack.c.l.b16 %v3763
    %v5022 = vunpack.c.h.b16 %v3763
    %v5023 = vunpack.c.l.b16 %v3764
    %v5024 = vunpack.c.l.b16 %v3765
    %v5025 = vunpack.c.h.b16 %v3765
    %v5026 = vunpack.c.l.b16 %v3766
    %v5027 = vunpack.c.h.b16 %v3766
    %v5028 = vunpack.c.l.b16 %v3767
    %v5029 = vunpack.c.h.b16 %v3767
    %v5030 = vunpack.c.l.b16 %v3768
    %v5031 = vunpack.c.l.b16 %v3769
    %v5032 = vunpack.c.h.b16 %v3769
    %v5033 = vunpack.c.l.b16 %v3770
    %v5034 = vunpack.c.h.b16 %v3770
    %v5035 = vunpack.c.l.b16 %v3771
    %v5036 = vunpack.c.h.b16 %v3771
    %v5037 = vunpack.c.l.b16 %v3772
    %v5038 = vunpack.c.l.b16 %v3773
    %v5039 = vunpack.c.h.b16 %v3773
    %v5040 = vunpack.c.l.b16 %v3774
    %v5041 = vunpack.c.h.b16 %v3774
    %v5042 = vunpack.c.l.b16 %v3775
    %v5043 = vunpack.c.h.b16 %v3775
    %v5044 = vunpack.c.l.b16 %v3776
    %v5045 = vunpack.c.l.b16 %v3777
    %v5046 = vunpack.c.h.b16 %v3777
    %v5047 = vunpack.c.l.b16 %v3778
    %v5048 = vunpack.c.h.b16 %v3778
    %v5049 = vunpack.c.l.b16 %v3779
    %v5050 = vunpack.c.h.b16 %v3779
    %v5051 = vunpack.c.l.b16 %v3780
    %v5052 = vunpack.c.l.b16 %v3781
    %v5053 = vunpack.c.h.b16 %v3781
    %v5054 = vunpack.c.l.b16 %v3782
    %v5055 = vunpack.c.h.b16 %v3782
    %v5056 = vunpack.c.l.b16 %v3783
    %v5057 = vunpack.c.h.b16 %v3783
    %v5058 = vunpack.c.l.b16 %v3784
    %v5059 = vunpack.c.l.b16 %v3785
    %v5060 = vunpack.c.h.b16 %v3785
    %v5061 = vunpack.c.l.b16 %v3786
    %v5062 = vunpack.c.h.b16 %v3786
    %v5063 = vunpack.c.l.b16 %v3787
    %v5064 = vunpack.c.h.b16 %v3787
    %v5065 = vunpack.c.l.b16 %v3788
    %v5066 = vunpack.c.l.b16 %v3789
    %v5067 = vunpack.c.h.b16 %v3789
    %v5068 = vunpack.c.l.b16 %v3790
    %v5069 = vunpack.c.h.b16 %v3790
    %v5070 = vunpack.c.l.b16 %v3791
    %v5071 = vunpack.c.h.b16 %v3791
    %v5072 = vunpack.c.l.b16 %v3792
    %v5073 = vunpack.c.l.b16 %v3793
    %v5074 = vunpack.c.h.b16 %v3793
    %v5075 = vunpack.c.l.b16 %v3794
    %v5076 = vunpack.c.h.b16 %v3794
    %v5077 = vunpack.c.l.b16 %v3795
    %v5078 = vunpack.c.h.b16 %v3795
    %v5079 = vunpack.c.l.b16 %v3796
    %v5080 = vunpack.c.l.b16 %v3797
    %v5081 = vunpack.c.h.b16 %v3797
    %v5082 = vunpack.c.l.b16 %v3798
    %v5083 = vunpack.c.h.b16 %v3798
    %v5084 = vunpack.c.l.b16 %v3799
    %v5085 = vunpack.c.h.b16 %v3799
    %v5086 = vunpack.c.l.b16 %v3800
    %v5087 = vunpack.c.l.b16 %v3801
    %v5088 = vunpack.c.h.b16 %v3801
    %v5089 = vunpack.c.l.b16 %v3802
    %v5090 = vunpack.c.h.b16 %v3802
    %v5091 = vunpack.c.l.b16 %v3803
    %v5092 = vunpack.c.h.b16 %v3803
    %v5093 = vunpack.c.l.b16 %v3804
    %v5094 = vunpack.c.l.b16 %v3805
    %v5095 = vunpack.c.h.b16 %v3805
    %v5096 = vunpack.c.l.b16 %v3806
    %v5097 = vunpack.c.h.b16 %v3806
    %v5098 = vunpack.c.l.b16 %v3807
    %v5099 = vunpack.c.h.b16 %v3807
    %v5100 = vunpack.c.l.b16 %v3808
    %v5101 = vunpack.c.l.b16 %v3809
    %v5102 = vunpack.c.h.b16 %v3809
    %v5103 = vunpack.c.l.b16 %v3810
    %v5104 = vunpack.c.h.b16 %v3810
    %v5105 = vunpack.c.l.b16 %v3811
    %v5106 = vunpack.c.h.b16 %v3811
    %v5107 = vunpack.c.l.b16 %v3812
    %v5108 = vunpack.c.l.b16 %v3813
    %v5109 = vunpack.c.h.b16 %v3813
    %v5110 = vunpack.c.l.b16 %v3814
    %v5111 = vunpack.c.h.b16 %v3814
    %v5112 = vunpack.c.l.b16 %v3815
    %v5113 = vunpack.c.h.b16 %v3815
    %v5114 = vunpack.c.l.b16 %v3816
    %v5115 = vunpack.c.l.b16 %v3817
    %v5116 = vunpack.c.h.b16 %v3817
    %v5117 = vunpack.c.l.b16 %v3818
    %v5118 = vunpack.c.h.b16 %v3818
    %v5119 = vunpack.c.l.b16 %v3819
    %v5120 = vunpack.c.h.b16 %v3819
    %v5121 = vunpack.c.l.b16 %v3820
    %v5122 = vunpack.c.l.b16 %v3821
    %v5123 = vunpack.c.h.b16 %v3821
    %v5124 = vunpack.c.l.b16 %v3822
    %v5125 = vunpack.c.h.b16 %v3822
    %v5126 = vunpack.c.l.b16 %v3823
    %v5127 = vunpack.c.h.b16 %v3823
    %v5128 = vunpack.c.l.b16 %v3824
    %v5129 = vunpack.c.l.b16 %v3825
    %v5130 = vunpack.c.h.b16 %v3825
    %v5131 = vunpack.c.l.b16 %v3826
    %v5132 = vunpack.c.h.b16 %v3826
    %v5133 = vunpack.c.l.b16 %v3827
    %v5134 = vunpack.c.h.b16 %v3827
    %v5135 = vunpack.c.l.b16 %v3828
    %v5136 = vunpack.c.l.b16 %v3829
    %v5137 = vunpack.c.h.b16 %v3829
    %v5138 = vunpack.c.l.b16 %v3830
    %v5139 = vunpack.c.h.b16 %v3830
    %v5140 = vunpack.c.l.b16 %v3831
    %v5141 = vunpack.c.h.b16 %v3831
    %v5142 = vunpack.c.l.b16 %v3832
    %v5143 = vunpack.c.l.b16 %v3833
    %v5144 = vunpack.c.h.b16 %v3833
    %v5145 = vunpack.c.l.b16 %v3834
    %v5146 = vunpack.c.h.b16 %v3834
    %v5147 = vunpack.c.l.b16 %v3835
    %v5148 = vunpack.c.h.b16 %v3835
    %v5149 = vunpack.c.l.b16 %v3836
    %v5150 = vunpack.c.l.b16 %v3837
    %v5151 = vunpack.c.h.b16 %v3837
    %v5152 = vunpack.c.l.b16 %v3838
    %v5153 = vunpack.c.h.b16 %v3838
    %v5154 = vunpack.c.l.b16 %v3839
    %v5155 = vunpack.c.h.b16 %v3839
    %v5156 = vunpack.c.l.b16 %v3840
    %v5157 = vunpack.c.l.b16 %v3841
    %v5158 = vunpack.c.h.b16 %v3841
    %v5159 = vunpack.c.l.b16 %v3842
    %v5160 = vunpack.c.h.b16 %v3842
    %v5161 = vunpack.c.l.b16 %v3843
    %v5162 = vunpack.c.h.b16 %v3843
    %v5163 = vunpack.c.l.b16 %v3844
    %v5164 = vunpack.c.l.b16 %v3845
    %v5165 = vunpack.c.h.b16 %v3845
    %v5166 = vunpack.c.l.b16 %v3846
    %v5167 = vunpack.c.h.b16 %v3846
    %v5168 = vunpack.c.l.b16 %v3847
    %v5169 = vunpack.c.h.b16 %v3847
    %v5170 = vunpack.c.l.b16 %v3848
    %v5171 = vunpack.c.l.b16 %v3849
    %v5172 = vunpack.c.h.b16 %v3849
    %v5173 = vunpack.c.l.b16 %v3850
    %v5174 = vunpack.c.h.b16 %v3850
    %v5175 = vunpack.c.l.b16 %v3851
    %v5176 = vunpack.c.h.b16 %v3851
    %v5177 = vunpack.c.l.b16 %v3852
    %v5178 = vunpack.c.l.b16 %v3853
    %v5179 = vunpack.c.h.b16 %v3853
    %v5180 = vunpack.c.l.b16 %v3854
    %v5181 = vunpack.c.h.b16 %v3854
    %v5182 = vunpack.c.l.b16 %v3855
    %v5183 = vunpack.c.h.b16 %v3855
    %v5184 = vunpack.c.l.b16 %v3856
    %v5185 = vunpack.c.l.b16 %v3857
    %v5186 = vunpack.c.h.b16 %v3857
    %v5187 = vunpack.c.l.b16 %v3858
    %v5188 = vunpack.c.h.b16 %v3858
    %v5189 = vunpack.c.l.b16 %v3859
    %v5190 = vunpack.c.h.b16 %v3859
    %v5191 = vunpack.c.l.b16 %v3860
    %v5192 = vunpack.c.l.b16 %v3861
    %v5193 = vunpack.c.h.b16 %v3861
    %v5194 = vunpack.c.l.b16 %v3862
    %v5195 = vunpack.c.h.b16 %v3862
    %v5196 = vunpack.c.l.b16 %v3863
    %v5197 = vunpack.c.h.b16 %v3863
    %v5198 = vunpack.c.l.b16 %v3864
    %v5199 = vunpack.c.l.b16 %v3865
    %v5200 = vunpack.c.h.b16 %v3865
    %v5201 = vunpack.c.l.b16 %v3866
    %v5202 = vunpack.c.h.b16 %v3866
    %v5203 = vunpack.c.l.b16 %v3867
    %v5204 = vunpack.c.h.b16 %v3867
    %v5205 = vunpack.c.l.b16 %v3868
    %v5206 = vunpack.c.l.b16 %v3869
    %v5207 = vunpack.c.h.b16 %v3869
    %v5208 = vunpack.c.l.b16 %v3870
    %v5209 = vunpack.c.h.b16 %v3870
    %v5210 = vunpack.c.l.b16 %v3871
    %v5211 = vunpack.c.h.b16 %v3871
    %v5212 = vunpack.c.l.b16 %v3872
    %v5213 = vunpack.c.l.b16 %v3873
    %v5214 = vunpack.c.h.b16 %v3873
    %v5215 = vunpack.c.l.b16 %v3874
    %v5216 = vunpack.c.h.b16 %v3874
    %v5217 = vunpack.c.l.b16 %v3875
    %v5218 = vunpack.c.h.b16 %v3875
    %v5219 = vunpack.c.l.b16 %v3876
    %v5220 = vunpack.c.l.b16 %v3877
    %v5221 = vunpack.c.h.b16 %v3877
    %v5222 = vunpack.c.l.b16 %v3878
    %v5223 = vunpack.c.h.b16 %v3878
    %v5224 = vunpack.c.l.b16 %v3879
    %v5225 = vunpack.c.h.b16 %v3879
    %v5226 = vunpack.c.l.b16 %v3880
    %v5227 = vunpack.c.l.b16 %v3881
    %v5228 = vunpack.c.h.b16 %v3881
    %v5229 = vunpack.c.l.b16 %v3882
    %v5230 = vunpack.c.h.b16 %v3882
    %v5231 = vunpack.c.l.b16 %v3883
    %v5232 = vunpack.c.h.b16 %v3883
    %v5233 = vunpack.c.l.b16 %v3884
    %v5234 = vunpack.c.l.b16 %v3885
    %v5235 = vunpack.c.h.b16 %v3885
    %v5236 = vunpack.c.l.b16 %v3886
    %v5237 = vunpack.c.h.b16 %v3886
    %v5238 = vunpack.c.l.b16 %v3887
    %v5239 = vunpack.c.h.b16 %v3887
    %v5240 = vunpack.c.l.b16 %v3888
    %v5241 = vunpack.c.l.b16 %v3889
    %v5242 = vunpack.c.h.b16 %v3889
    %v5243 = vunpack.c.l.b16 %v3890
    %v5244 = vunpack.c.h.b16 %v3890
    %v5245 = vunpack.c.l.b16 %v3891
    %v5246 = vunpack.c.h.b16 %v3891
    %v5247 = vunpack.c.l.b16 %v3892
    %v5248 = vunpack.c.l.b16 %v3893
    %v5249 = vunpack.c.h.b16 %v3893
    %v5250 = vunpack.c.l.b16 %v3894
    %v5251 = vunpack.c.h.b16 %v3894
    %v5252 = vunpack.c.l.b16 %v3895
    %v5253 = vunpack.c.h.b16 %v3895
    %v5254 = vunpack.c.l.b16 %v3896
    %v5255 = vunpack.c.l.b16 %v3897
    %v5256 = vunpack.c.h.b16 %v3897
    %v5257 = vunpack.c.l.b16 %v3898
    %v5258 = vunpack.c.h.b16 %v3898
    %v5259 = vunpack.c.l.b16 %v3899
    %v5260 = vunpack.c.h.b16 %v3899
    %v5261 = vunpack.c.l.b16 %v3900
    %v5262 = vunpack.c.l.b16 %v3901
    %v5263 = vunpack.c.h.b16 %v3901
    %v5264 = vunpack.c.l.b16 %v3902
    %v5265 = vunpack.c.h.b16 %v3902
    %v5266 = vunpack.c.l.b16 %v3903
    %v5267 = vunpack.c.h.b16 %v3903
    %v5268 = vunpack.c.l.b16 %v3904
    %v5269 = vunpack.c.l.b16 %v3905
    %v5270 = vunpack.c.h.b16 %v3905
    %v5271 = vunpack.c.l.b16 %v3906
    %v5272 = vunpack.c.h.b16 %v3906
    %v5273 = vunpack.c.l.b16 %v3907
    %v5274 = vunpack.c.h.b16 %v3907
    %v5275 = vunpack.c.l.b16 %v3908
    %v5276 = vunpack.c.l.b16 %v3909
    %v5277 = vunpack.c.h.b16 %v3909
    %v5278 = vunpack.c.l.b16 %v3910
    %v5279 = vunpack.c.h.b16 %v3910
    %v5280 = vunpack.c.l.b16 %v3911
    %v5281 = vunpack.c.h.b16 %v3911
    %v5282 = vunpack.c.l.b16 %v3912
    %v5283 = vunpack.c.l.b16 %v3913
    %v5284 = vunpack.c.h.b16 %v3913
    %v5285 = vunpack.c.l.b16 %v3914
    %v5286 = vunpack.c.h.b16 %v3914
    %v5287 = vunpack.c.l.b16 %v3915
    %v5288 = vunpack.c.h.b16 %v3915
    %v5289 = vunpack.c.l.b16 %v3916
    %v5290 = vunpack.c.l.b16 %v3917
    %v5291 = vunpack.c.h.b16 %v3917
    %v5292 = vunpack.c.l.b16 %v3918
    %v5293 = vunpack.c.h.b16 %v3918
    %v5294 = vunpack.c.l.b16 %v3919
    %v5295 = vunpack.c.h.b16 %v3919
    %v5296 = vunpack.c.l.b16 %v3920
    %v5297 = vunpack.c.l.b16 %v3921
    %v5298 = vunpack.c.h.b16 %v3921
    %v5299 = vunpack.c.l.b16 %v3922
    %v5300 = vunpack.c.h.b16 %v3922
    %v5301 = vunpack.c.l.b16 %v3923
    %v5302 = vunpack.c.h.b16 %v3923
    %v5303 = vunpack.c.l.b16 %v3924
    %v5304 = vunpack.c.l.b16 %v3925
    %v5305 = vunpack.c.h.b16 %v3925
    %v5306 = vunpack.c.l.b16 %v3926
    %v5307 = vunpack.c.h.b16 %v3926
    %v5308 = vunpack.c.l.b16 %v3927
    %v5309 = vunpack.c.h.b16 %v3927
    %v5310 = vunpack.c.l.b16 %v3928
    %v5311 = vunpack.c.l.b16 %v3929
    %v5312 = vunpack.c.h.b16 %v3929
    %v5313 = vunpack.c.l.b16 %v3930
    %v5314 = vunpack.c.h.b16 %v3930
    %v5315 = vunpack.c.l.b16 %v3931
    %v5316 = vunpack.c.h.b16 %v3931
    %v5317 = vunpack.c.l.b16 %v3932
    %v5318 = vunpack.c.l.b16 %v3933
    %v5319 = vunpack.c.h.b16 %v3933
    %v5320 = vunpack.c.l.b16 %v3934
    %v5321 = vunpack.c.h.b16 %v3934
    %v5322 = vunpack.c.l.b16 %v3935
    %v5323 = vunpack.c.h.b16 %v3935
    %v5324 = vunpack.c.l.b16 %v3936
    %v5325 = vunpack.c.l.b16 %v3937
    %v5326 = vunpack.c.h.b16 %v3937
    %v5327 = vunpack.c.l.b16 %v3938
    %v5328 = vunpack.c.h.b16 %v3938
    %v5329 = vunpack.c.l.b16 %v3939
    %v5330 = vunpack.c.h.b16 %v3939
    %v5331 = vunpack.c.l.b16 %v3940
    %v5332 = vunpack.c.l.b16 %v3941
    %v5333 = vunpack.c.h.b16 %v3941
    %v5334 = vunpack.c.l.b16 %v3942
    %v5335 = vunpack.c.h.b16 %v3942
    %v5336 = vunpack.c.l.b16 %v3943
    %v5337 = vunpack.c.h.b16 %v3943
    %v5338 = vunpack.c.l.b16 %v3944
    %v5339 = vunpack.c.l.b16 %v3945
    %v5340 = vunpack.c.h.b16 %v3945
    %v5341 = vunpack.c.l.b16 %v3946
    %v5342 = vunpack.c.h.b16 %v3946
    %v5343 = vunpack.c.l.b16 %v3947
    %v5344 = vunpack.c.h.b16 %v3947
    %v5345 = vunpack.c.l.b16 %v3948
    %v5346 = vunpack.c.l.b16 %v3949
    %v5347 = vunpack.c.h.b16 %v3949
    %v5348 = vunpack.c.l.b16 %v3950
    %v5349 = vunpack.c.h.b16 %v3950
    %v5350 = vunpack.c.l.b16 %v3951
    %v5351 = vunpack.c.h.b16 %v3951
    %v5352 = vunpack.c.l.b16 %v3952
    %v5353 = vunpack.c.l.b16 %v3953
    %v5354 = vunpack.c.h.b16 %v3953
    %v5355 = vunpack.c.l.b16 %v3954
    %v5356 = vunpack.c.h.b16 %v3954
    %v5357 = vunpack.c.l.b16 %v3955
    %v5358 = vunpack.c.h.b16 %v3955
    %v5359 = vunpack.c.l.b16 %v3956
    %v5360 = vunpack.c.l.b16 %v3957
    %v5361 = vunpack.c.h.b16 %v3957
    %v5362 = vunpack.c.l.b16 %v3958
    %v5363 = vunpack.c.h.b16 %v3958
    %v5364 = vunpack.c.l.b16 %v3959
    %v5365 = vunpack.c.h.b16 %v3959
    %v5366 = vunpack.c.l.b16 %v3960
    %v5367 = vunpack.c.l.b16 %v3961
    %v5368 = vunpack.c.h.b16 %v3961
    %v5369 = vunpack.c.l.b16 %v3962
    %v5370 = vunpack.c.h.b16 %v3962
    %v5371 = vunpack.c.l.b16 %v3963
    %v5372 = vunpack.c.h.b16 %v3963
    %v5373 = vunpack.c.l.b16 %v3964
    %v5374 = vunpack.c.l.b16 %v3965
    %v5375 = vunpack.c.h.b16 %v3965
    %v5376 = vunpack.c.l.b16 %v3966
    %v5377 = vunpack.c.h.b16 %v3966
    %v5378 = vunpack.c.l.b16 %v3967
    %v5379 = vunpack.c.h.b16 %v3967
    %v5380 = vunpack.c.l.b16 %v3968
    %v5381 = vunpack.c.l.b16 %v3969
    %v5382 = vunpack.c.h.b16 %v3969
    %v5383 = vunpack.c.l.b16 %v3970
    %v5384 = vunpack.c.h.b16 %v3970
    %v5385 = vunpack.c.l.b16 %v3971
    %v5386 = vunpack.c.h.b16 %v3971
    %v5387 = vunpack.c.l.b16 %v3972
    %v5388 = vunpack.c.l.b16 %v3973
    %v5389 = vunpack.c.h.b16 %v3973
    %v5390 = vunpack.c.l.b16 %v3974
    %v5391 = vunpack.c.h.b16 %v3974
    %v5392 = vunpack.c.l.b16 %v3975
    %v5393 = vunpack.c.h.b16 %v3975
    %v5394 = vunpack.c.l.b16 %v3976
    %v5395 = vunpack.c.l.b16 %v3977
    %v5396 = vunpack.c.h.b16 %v3977
    %v5397 = vunpack.c.l.b16 %v3978
    %v5398 = vunpack.c.h.b16 %v3978
    %v5399 = vunpack.c.l.b16 %v3979
    %v5400 = vunpack.c.h.b16 %v3979
    %v5401 = vunpack.c.l.b16 %v3980
    %v5402 = vunpack.c.l.b16 %v3981
    %v5403 = vunpack.c.h.b16 %v3981
    %v5404 = vunpack.c.l.b16 %v3982
    %v5405 = vunpack.c.h.b16 %v3982
    %v5406 = vunpack.c.l.b16 %v3983
    %v5407 = vunpack.c.h.b16 %v3983
    %v5408 = vunpack.c.l.b16 %v3984
    %v5409 = vunpack.c.l.b16 %v3985
    %v5410 = vunpack.c.h.b16 %v3985
    %v5411 = vunpack.c.l.b16 %v3986
    %v5412 = vunpack.c.h.b16 %v3986
    %v5413 = vunpack.c.l.b16 %v3987
    %v5414 = vunpack.c.h.b16 %v3987
    %v5415 = vunpack.c.l.b16 %v3988
    %v5416 = vunpack.c.l.b16 %v3989
    %v5417 = vunpack.c.h.b16 %v3989
    %v5418 = vunpack.c.l.b16 %v3990
    %v5419 = vunpack.c.h.b16 %v3990
    %v5420 = vunpack.c.l.b16 %v3991
    %v5421 = vunpack.c.h.b16 %v3991
    %v5422 = vunpack.c.l.b16 %v3992
    %v5423 = vunpack.c.l.b16 %v3993
    %v5424 = vunpack.c.h.b16 %v3993
    %v5425 = vunpack.c.l.b16 %v3994
    %v5426 = vunpack.c.h.b16 %v3994
    %v5427 = vunpack.c.l.b16 %v3995
    %v5428 = vunpack.c.h.b16 %v3995
    %v5429 = vunpack.c.l.b16 %v3996
    %v5430 = vunpack.c.l.b16 %v3997
    %v5431 = vunpack.c.h.b16 %v3997
    %v5432 = vunpack.c.l.b16 %v3998
    %v5433 = vunpack.c.h.b16 %v3998
    %v5434 = vunpack.c.l.b16 %v3999
    %v5435 = vunpack.c.h.b16 %v3999
    %v5436 = vunpack.c.l.b16 %v4000
    %v5437 = vunpack.c.l.b16 %v4001
    %v5438 = vunpack.c.h.b16 %v4001
    %v5439 = vunpack.c.l.b16 %v4002
    %v5440 = vunpack.c.h.b16 %v4002
    %v5441 = vunpack.c.l.b16 %v4003
    %v5442 = vunpack.c.h.b16 %v4003
    %v5443 = vunpack.c.l.b16 %v4004
    %v5444 = vunpack.c.l.b16 %v4005
    %v5445 = vunpack.c.h.b16 %v4005
    %v5446 = vunpack.c.l.b16 %v4006
    %v5447 = vunpack.c.h.b16 %v4006
    %v5448 = vunpack.c.l.b16 %v4007
    %v5449 = vunpack.c.h.b16 %v4007
    %v5450 = vunpack.c.l.b16 %v4008
    %v5451 = vunpack.c.l.b16 %v4009
    %v5452 = vunpack.c.h.b16 %v4009
    %v5453 = vunpack.c.l.b16 %v4010
    %v5454 = vunpack.c.h.b16 %v4010
    %v5455 = vunpack.c.l.b16 %v4011
    %v5456 = vunpack.c.h.b16 %v4011
    %v5457 = vunpack.c.l.b16 %v4012
    %v5458 = vpack.c.b16 %v4569, %v4562
    %v5459 = vpack.c.b16 %v4570, %v4563
    %v5460 = vpack.c.b16 %v4571, %v4564
    %v5461 = vpack.c.b16 %v4572, %v4565
    %v5462 = vpack.c.b16 %v4573, %v4566
    %v5463 = vpack.c.b16 %v4574, %v4567
    %v5464 = vpack.c.b16 %v4575, %v4568
    %v5465 = vpack.c.b16 %v4583, %v4576
    %v5466 = vpack.c.b16 %v4584, %v4577
    %v5467 = vpack.c.b16 %v4585, %v4578
    %v5468 = vpack.c.b16 %v4586, %v4579
    %v5469 = vpack.c.b16 %v4587, %v4580
    %v5470 = vpack.c.b16 %v4588, %v4581
    %v5471 = vpack.c.b16 %v4589, %v4582
    %v5472 = vpack.c.b16 %v4597, %v4590
    %v5473 = vpack.c.b16 %v4598, %v4591
    %v5474 = vpack.c.b16 %v4599, %v4592
    %v5475 = vpack.c.b16 %v4600, %v4593
    %v5476 = vpack.c.b16 %v4601, %v4594
    %v5477 = vpack.c.b16 %v4602, %v4595
    %v5478 = vpack.c.b16 %v4603, %v4596
    %v5479 = vpack.c.b16 %v4611, %v4604
    %v5480 = vpack.c.b16 %v4612, %v4605
    %v5481 = vpack.c.b16 %v4613, %v4606
    %v5482 = vpack.c.b16 %v4614, %v4607
    %v5483 = vpack.c.b16 %v4615, %v4608
    %v5484 = vpack.c.b16 %v4616, %v4609
    %v5485 = vpack.c.b16 %v4617, %v4610
    %v5486 = vpack.c.b16 %v4625, %v4618
    %v5487 = vpack.c.b16 %v4626, %v4619
    %v5488 = vpack.c.b16 %v4627, %v4620
    %v5489 = vpack.c.b16 %v4628, %v4621
    %v5490 = vpack.c.b16 %v4629, %v4622
    %v5491 = vpack.c.b16 %v4630, %v4623
    %v5492 = vpack.c.b16 %v4631, %v4624
    %v5493 = vpack.c.b16 %v4639, %v4632
    %v5494 = vpack.c.b16 %v4640, %v4633
    %v5495 = vpack.c.b16 %v4641, %v4634
    %v5496 = vpack.c.b16 %v4642, %v4635
    %v5497 = vpack.c.b16 %v4643, %v4636
    %v5498 = vpack.c.b16 %v4644, %v4637
    %v5499 = vpack.c.b16 %v4645, %v4638
    %v5500 = vpack.c.b16 %v4653, %v4646
    %v5501 = vpack.c.b16 %v4654, %v4647
    %v5502 = vpack.c.b16 %v4655, %v4648
    %v5503 = vpack.c.b16 %v4656, %v4649
    %v5504 = vpack.c.b16 %v4657, %v4650
    %v5505 = vpack.c.b16 %v4658, %v4651
    %v5506 = vpack.c.b16 %v4659, %v4652
    %v5507 = vpack.c.b16 %v4667, %v4660
    %v5508 = vpack.c.b16 %v4668, %v4661
    %v5509 = vpack.c.b16 %v4669, %v4662
    %v5510 = vpack.c.b16 %v4670, %v4663
    %v5511 = vpack.c.b16 %v4671, %v4664
    %v5512 = vpack.c.b16 %v4672, %v4665
    %v5513 = vpack.c.b16 %v4673, %v4666
    %v5514 = vpack.c.b16 %v4681, %v4674
    %v5515 = vpack.c.b16 %v4682, %v4675
    %v5516 = vpack.c.b16 %v4683, %v4676
    %v5517 = vpack.c.b16 %v4684, %v4677
    %v5518 = vpack.c.b16 %v4685, %v4678
    %v5519 = vpack.c.b16 %v4686, %v4679
    %v5520 = vpack.c.b16 %v4687, %v4680
    %v5521 = vpack.c.b16 %v4695, %v4688
    %v5522 = vpack.c.b16 %v4696, %v4689
    %v5523 = vpack.c.b16 %v4697, %v4690
    %v5524 = vpack.c.b16 %v4698, %v4691
    %v5525 = vpack.c.b16 %v4699, %v4692
    %v5526 = vpack.c.b16 %v4700, %v4693
    %v5527 = vpack.c.b16 %v4701, %v4694
    %v5528 = vpack.c.b16 %v4709, %v4702
    %v5529 = vpack.c.b16 %v4710, %v4703
    %v5530 = vpack.c.b16 %v4711, %v4704
    %v5531 = vpack.c.b16 %v4712, %v4705
    %v5532 = vpack.c.b16 %v4713, %v4706
    %v5533 = vpack.c.b16 %v4714, %v4707
    %v5534 = vpack.c.b16 %v4715, %v4708
    %v5535 = vpack.c.b16 %v4723, %v4716
    %v5536 = vpack.c.b16 %v4724, %v4717
    %v5537 = vpack.c.b16 %v4725, %v4718
    %v5538 = vpack.c.b16 %v4726, %v4719
    %v5539 = vpack.c.b16 %v4727, %v4720
    %v5540 = vpack.c.b16 %v4728, %v4721
    %v5541 = vpack.c.b16 %v4729, %v4722
    %v5542 = vpack.c.b16 %v4737, %v4730
    %v5543 = vpack.c.b16 %v4738, %v4731
    %v5544 = vpack.c.b16 %v4739, %v4732
    %v5545 = vpack.c.b16 %v4740, %v4733
    %v5546 = vpack.c.b16 %v4741, %v4734
    %v5547 = vpack.c.b16 %v4742, %v4735
    %v5548 = vpack.c.b16 %v4743, %v4736
    %v5549 = vpack.c.b16 %v4751, %v4744
    %v5550 = vpack.c.b16 %v4752, %v4745
    %v5551 = vpack.c.b16 %v4753, %v4746
    %v5552 = vpack.c.b16 %v4754, %v4747
    %v5553 = vpack.c.b16 %v4755, %v4748
    %v5554 = vpack.c.b16 %v4756, %v4749
    %v5555 = vpack.c.b16 %v4757, %v4750
    %v5556 = vpack.c.b16 %v4765, %v4758
    %v5557 = vpack.c.b16 %v4766, %v4759
    %v5558 = vpack.c.b16 %v4767, %v4760
    %v5559 = vpack.c.b16 %v4768, %v4761
    %v5560 = vpack.c.b16 %v4769, %v4762
    %v5561 = vpack.c.b16 %v4770, %v4763
    %v5562 = vpack.c.b16 %v4771, %v4764
    %v5563 = vpack.c.b16 %v4779, %v4772
    %v5564 = vpack.c.b16 %v4780, %v4773
    %v5565 = vpack.c.b16 %v4781, %v4774
    %v5566 = vpack.c.b16 %v4782, %v4775
    %v5567 = vpack.c.b16 %v4783, %v4776
    %v5568 = vpack.c.b16 %v4784, %v4777
    %v5569 = vpack.c.b16 %v4785, %v4778
    %v5570 = vpack.c.b16 %v4793, %v4786
    %v5571 = vpack.c.b16 %v4794, %v4787
    %v5572 = vpack.c.b16 %v4795, %v4788
    %v5573 = vpack.c.b16 %v4796, %v4789
    %v5574 = vpack.c.b16 %v4797, %v4790
    %v5575 = vpack.c.b16 %v4798, %v4791
    %v5576 = vpack.c.b16 %v4799, %v4792
    %v5577 = vpack.c.b16 %v4807, %v4800
    %v5578 = vpack.c.b16 %v4808, %v4801
    %v5579 = vpack.c.b16 %v4809, %v4802
    %v5580 = vpack.c.b16 %v4810, %v4803
    %v5581 = vpack.c.b16 %v4811, %v4804
    %v5582 = vpack.c.b16 %v4812, %v4805
    %v5583 = vpack.c.b16 %v4813, %v4806
    %v5584 = vpack.c.b16 %v4821, %v4814
    %v5585 = vpack.c.b16 %v4822, %v4815
    %v5586 = vpack.c.b16 %v4823, %v4816
    %v5587 = vpack.c.b16 %v4824, %v4817
    %v5588 = vpack.c.b16 %v4825, %v4818
    %v5589 = vpack.c.b16 %v4826, %v4819
    %v5590 = vpack.c.b16 %v4827, %v4820
    %v5591 = vpack.c.b16 %v4835, %v4828
    %v5592 = vpack.c.b16 %v4836, %v4829
    %v5593 = vpack.c.b16 %v4837, %v4830
    %v5594 = vpack.c.b16 %v4838, %v4831
    %v5595 = vpack.c.b16 %v4839, %v4832
    %v5596 = vpack.c.b16 %v4840, %v4833
    %v5597 = vpack.c.b16 %v4841, %v4834
    %v5598 = vpack.c.b16 %v4849, %v4842
    %v5599 = vpack.c.b16 %v4850, %v4843
    %v5600 = vpack.c.b16 %v4851, %v4844
    %v5601 = vpack.c.b16 %v4852, %v4845
    %v5602 = vpack.c.b16 %v4853, %v4846
    %v5603 = vpack.c.b16 %v4854, %v4847
    %v5604 = vpack.c.b16 %v4855, %v4848
    %v5605 = vpack.c.b16 %v4863, %v4856
    %v5606 = vpack.c.b16 %v4864, %v4857
    %v5607 = vpack.c.b16 %v4865, %v4858
    %v5608 = vpack.c.b16 %v4866, %v4859
    %v5609 = vpack.c.b16 %v4867, %v4860
    %v5610 = vpack.c.b16 %v4868, %v4861
    %v5611 = vpack.c.b16 %v4869, %v4862
    %v5612 = vpack.c.b16 %v4877, %v4870
    %v5613 = vpack.c.b16 %v4878, %v4871
    %v5614 = vpack.c.b16 %v4879, %v4872
    %v5615 = vpack.c.b16 %v4880, %v4873
    %v5616 = vpack.c.b16 %v4881, %v4874
    %v5617 = vpack.c.b16 %v4882, %v4875
    %v5618 = vpack.c.b16 %v4883, %v4876
    %v5619 = vpack.c.b16 %v4891, %v4884
    %v5620 = vpack.c.b16 %v4892, %v4885
    %v5621 = vpack.c.b16 %v4893, %v4886
    %v5622 = vpack.c.b16 %v4894, %v4887
    %v5623 = vpack.c.b16 %v4895, %v4888
    %v5624 = vpack.c.b16 %v4896, %v4889
    %v5625 = vpack.c.b16 %v4897, %v4890
    %v5626 = vpack.c.b16 %v4905, %v4898
    %v5627 = vpack.c.b16 %v4906, %v4899
    %v5628 = vpack.c.b16 %v4907, %v4900
    %v5629 = vpack.c.b16 %v4908, %v4901
    %v5630 = vpack.c.b16 %v4909, %v4902
    %v5631 = vpack.c.b16 %v4910, %v4903
    %v5632 = vpack.c.b16 %v4911, %v4904
    %v5633 = vpack.c.b16 %v4919, %v4912
    %v5634 = vpack.c.b16 %v4920, %v4913
    %v5635 = vpack.c.b16 %v4921, %v4914
    %v5636 = vpack.c.b16 %v4922, %v4915
    %v5637 = vpack.c.b16 %v4923, %v4916
    %v5638 = vpack.c.b16 %v4924, %v4917
    %v5639 = vpack.c.b16 %v4925, %v4918
    %v5640 = vpack.c.b16 %v4933, %v4926
    %v5641 = vpack.c.b16 %v4934, %v4927
    %v5642 = vpack.c.b16 %v4935, %v4928
    %v5643 = vpack.c.b16 %v4936, %v4929
    %v5644 = vpack.c.b16 %v4937, %v4930
    %v5645 = vpack.c.b16 %v4938, %v4931
    %v5646 = vpack.c.b16 %v4939, %v4932
    %v5647 = vpack.c.b16 %v4947, %v4940
    %v5648 = vpack.c.b16 %v4948, %v4941
    %v5649 = vpack.c.b16 %v4949, %v4942
    %v5650 = vpack.c.b16 %v4950, %v4943
    %v5651 = vpack.c.b16 %v4951, %v4944
    %v5652 = vpack.c.b16 %v4952, %v4945
    %v5653 = vpack.c.b16 %v4953, %v4946
    %v5654 = vpack.c.b16 %v4961, %v4954
    %v5655 = vpack.c.b16 %v4962, %v4955
    %v5656 = vpack.c.b16 %v4963, %v4956
    %v5657 = vpack.c.b16 %v4964, %v4957
    %v5658 = vpack.c.b16 %v4965, %v4958
    %v5659 = vpack.c.b16 %v4966, %v4959
    %v5660 = vpack.c.b16 %v4967, %v4960
    %v5661 = vpack.c.b16 %v4975, %v4968
    %v5662 = vpack.c.b16 %v4976, %v4969
    %v5663 = vpack.c.b16 %v4977, %v4970
    %v5664 = vpack.c.b16 %v4978, %v4971
    %v5665 = vpack.c.b16 %v4979, %v4972
    %v5666 = vpack.c.b16 %v4980, %v4973
    %v5667 = vpack.c.b16 %v4981, %v4974
    %v5668 = vpack.c.b16 %v4989, %v4982
    %v5669 = vpack.c.b16 %v4990, %v4983
    %v5670 = vpack.c.b16 %v4991, %v4984
    %v5671 = vpack.c.b16 %v4992, %v4985
    %v5672 = vpack.c.b16 %v4993, %v4986
    %v5673 = vpack.c.b16 %v4994, %v4987
    %v5674 = vpack.c.b16 %v4995, %v4988
    %v5675 = vpack.c.b16 %v5003, %v4996
    %v5676 = vpack.c.b16 %v5004, %v4997
    %v5677 = vpack.c.b16 %v5005, %v4998
    %v5678 = vpack.c.b16 %v5006, %v4999
    %v5679 = vpack.c.b16 %v5007, %v5000
    %v5680 = vpack.c.b16 %v5008, %v5001
    %v5681 = vpack.c.b16 %v5009, %v5002
    %v5682 = vpack.c.b16 %v5017, %v5010
    %v5683 = vpack.c.b16 %v5018, %v5011
    %v5684 = vpack.c.b16 %v5019, %v5012
    %v5685 = vpack.c.b16 %v5020, %v5013
    %v5686 = vpack.c.b16 %v5021, %v5014
    %v5687 = vpack.c.b16 %v5022, %v5015
    %v5688 = vpack.c.b16 %v5023, %v5016
    %v5689 = vpack.c.b16 %v5031, %v5024
    %v5690 = vpack.c.b16 %v5032, %v5025
    %v5691 = vpack.c.b16 %v5033, %v5026
    %v5692 = vpack.c.b16 %v5034, %v5027
    %v5693 = vpack.c.b16 %v5035, %v5028
    %v5694 = vpack.c.b16 %v5036, %v5029
    %v5695 = vpack.c.b16 %v5037, %v5030
    %v5696 = vpack.c.b16 %v5045, %v5038
    %v5697 = vpack.c.b16 %v5046, %v5039
    %v5698 = vpack.c.b16 %v5047, %v5040
    %v5699 = vpack.c.b16 %v5048, %v5041
    %v5700 = vpack.c.b16 %v5049, %v5042
    %v5701 = vpack.c.b16 %v5050, %v5043
    %v5702 = vpack.c.b16 %v5051, %v5044
    %v5703 = vpack.c.b16 %v5059, %v5052
    %v5704 = vpack.c.b16 %v5060, %v5053
    %v5705 = vpack.c.b16 %v5061, %v5054
    %v5706 = vpack.c.b16 %v5062, %v5055
    %v5707 = vpack.c.b16 %v5063, %v5056
    %v5708 = vpack.c.b16 %v5064, %v5057
    %v5709 = vpack.c.b16 %v5065, %v5058
    %v5710 = vpack.c.b16 %v5073, %v5066
    %v5711 = vpack.c.b16 %v5074, %v5067
    %v5712 = vpack.c.b16 %v5075, %v5068
    %v5713 = vpack.c.b16 %v5076, %v5069
    %v5714 = vpack.c.b16 %v5077, %v5070
    %v5715 = vpack.c.b16 %v5078, %v5071
    %v5716 = vpack.c.b16 %v5079, %v5072
    %v5717 = vpack.c.b16 %v5087, %v5080
    %v5718 = vpack.c.b16 %v5088, %v5081
    %v5719 = vpack.c.b16 %v5089, %v5082
    %v5720 = vpack.c.b16 %v5090, %v5083
    %v5721 = vpack.c.b16 %v5091, %v5084
    %v5722 = vpack.c.b16 %v5092, %v5085
    %v5723 = vpack.c.b16 %v5093, %v5086
    %v5724 = vpack.c.b16 %v5101, %v5094
    %v5725 = vpack.c.b16 %v5102, %v5095
    %v5726 = vpack.c.b16 %v5103, %v5096
    %v5727 = vpack.c.b16 %v5104, %v5097
    %v5728 = vpack.c.b16 %v5105, %v5098
    %v5729 = vpack.c.b16 %v5106, %v5099
    %v5730 = vpack.c.b16 %v5107, %v5100
    %v5731 = vpack.c.b16 %v5115, %v5108
    %v5732 = vpack.c.b16 %v5116, %v5109
    %v5733 = vpack.c.b16 %v5117, %v5110
    %v5734 = vpack.c.b16 %v5118, %v5111
    %v5735 = vpack.c.b16 %v5119, %v5112
    %v5736 = vpack.c.b16 %v5120, %v5113
    %v5737 = vpack.c.b16 %v5121, %v5114
    %v5738 = vpack.c.b16 %v5129, %v5122
    %v5739 = vpack.c.b16 %v5130, %v5123
    %v5740 = vpack.c.b16 %v5131, %v5124
    %v5741 = vpack.c.b16 %v5132, %v5125
    %v5742 = vpack.c.b16 %v5133, %v5126
    %v5743 = vpack.c.b16 %v5134, %v5127
    %v5744 = vpack.c.b16 %v5135, %v5128
    %v5745 = vpack.c.b16 %v5143, %v5136
    %v5746 = vpack.c.b16 %v5144, %v5137
    %v5747 = vpack.c.b16 %v5145, %v5138
    %v5748 = vpack.c.b16 %v5146, %v5139
    %v5749 = vpack.c.b16 %v5147, %v5140
    %v5750 = vpack.c.b16 %v5148, %v5141
    %v5751 = vpack.c.b16 %v5149, %v5142
    %v5752 = vpack.c.b16 %v5157, %v5150
    %v5753 = vpack.c.b16 %v5158, %v5151
    %v5754 = vpack.c.b16 %v5159, %v5152
    %v5755 = vpack.c.b16 %v5160, %v5153
    %v5756 = vpack.c.b16 %v5161, %v5154
    %v5757 = vpack.c.b16 %v5162, %v5155
    %v5758 = vpack.c.b16 %v5163, %v5156
    %v5759 = vpack.c.b16 %v5171, %v5164
    %v5760 = vpack.c.b16 %v5172, %v5165
    %v5761 = vpack.c.b16 %v5173, %v5166
    %v5762 = vpack.c.b16 %v5174, %v5167
    %v5763 = vpack.c.b16 %v5175, %v5168
    %v5764 = vpack.c.b16 %v5176, %v5169
    %v5765 = vpack.c.b16 %v5177, %v5170
    %v5766 = vpack.c.b16 %v5185, %v5178
    %v5767 = vpack.c.b16 %v5186, %v5179
    %v5768 = vpack.c.b16 %v5187, %v5180
    %v5769 = vpack.c.b16 %v5188, %v5181
    %v5770 = vpack.c.b16 %v5189, %v5182
    %v5771 = vpack.c.b16 %v5190, %v5183
    %v5772 = vpack.c.b16 %v5191, %v5184
    %v5773 = vpack.c.b16 %v5199, %v5192
    %v5774 = vpack.c.b16 %v5200, %v5193
    %v5775 = vpack.c.b16 %v5201, %v5194
    %v5776 = vpack.c.b16 %v5202, %v5195
    %v5777 = vpack.c.b16 %v5203, %v5196
    %v5778 = vpack.c.b16 %v5204, %v5197
    %v5779 = vpack.c.b16 %v5205, %v5198
    %v5780 = vpack.c.b16 %v5213, %v5206
    %v5781 = vpack.c.b16 %v5214, %v5207
    %v5782 = vpack.c.b16 %v5215, %v5208
    %v5783 = vpack.c.b16 %v5216, %v5209
    %v5784 = vpack.c.b16 %v5217, %v5210
    %v5785 = vpack.c.b16 %v5218, %v5211
    %v5786 = vpack.c.b16 %v5219, %v5212
    %v5787 = vpack.c.b16 %v5227, %v5220
    %v5788 = vpack.c.b16 %v5228, %v5221
    %v5789 = vpack.c.b16 %v5229, %v5222
    %v5790 = vpack.c.b16 %v5230, %v5223
    %v5791 = vpack.c.b16 %v5231, %v5224
    %v5792 = vpack.c.b16 %v5232, %v5225
    %v5793 = vpack.c.b16 %v5233, %v5226
    %v5794 = vpack.c.b16 %v5241, %v5234
    %v5795 = vpack.c.b16 %v5242, %v5235
    %v5796 = vpack.c.b16 %v5243, %v5236
    %v5797 = vpack.c.b16 %v5244, %v5237
    %v5798 = vpack.c.b16 %v5245, %v5238
    %v5799 = vpack.c.b16 %v5246, %v5239
    %v5800 = vpack.c.b16 %v5247, %v5240
    %v5801 = vpack.c.b16 %v5255, %v5248
    %v5802 = vpack.c.b16 %v5256, %v5249
    %v5803 = vpack.c.b16 %v5257, %v5250
    %v5804 = vpack.c.b16 %v5258, %v5251
    %v5805 = vpack.c.b16 %v5259, %v5252
    %v5806 = vpack.c.b16 %v5260, %v5253
    %v5807 = vpack.c.b16 %v5261, %v5254
    %v5808 = vpack.c.b16 %v5269, %v5262
    %v5809 = vpack.c.b16 %v5270, %v5263
    %v5810 = vpack.c.b16 %v5271, %v5264
    %v5811 = vpack.c.b16 %v5272, %v5265
    %v5812 = vpack.c.b16 %v5273, %v5266
    %v5813 = vpack.c.b16 %v5274, %v5267
    %v5814 = vpack.c.b16 %v5275, %v5268
    %v5815 = vpack.c.b16 %v5283, %v5276
    %v5816 = vpack.c.b16 %v5284, %v5277
    %v5817 = vpack.c.b16 %v5285, %v5278
    %v5818 = vpack.c.b16 %v5286, %v5279
    %v5819 = vpack.c.b16 %v5287, %v5280
    %v5820 = vpack.c.b16 %v5288, %v5281
    %v5821 = vpack.c.b16 %v5289, %v5282
    %v5822 = vpack.c.b16 %v5297, %v5290
    %v5823 = vpack.c.b16 %v5298, %v5291
    %v5824 = vpack.c.b16 %v5299, %v5292
    %v5825 = vpack.c.b16 %v5300, %v5293
    %v5826 = vpack.c.b16 %v5301, %v5294
    %v5827 = vpack.c.b16 %v5302, %v5295
    %v5828 = vpack.c.b16 %v5303, %v5296
    %v5829 = vpack.c.b16 %v5311, %v5304
    %v5830 = vpack.c.b16 %v5312, %v5305
    %v5831 = vpack.c.b16 %v5313, %v5306
    %v5832 = vpack.c.b16 %v5314, %v5307
    %v5833 = vpack.c.b16 %v5315, %v5308
    %v5834 = vpack.c.b16 %v5316, %v5309
    %v5835 = vpack.c.b16 %v5317, %v5310
    %v5836 = vpack.c.b16 %v5325, %v5318
    %v5837 = vpack.c.b16 %v5326, %v5319
    %v5838 = vpack.c.b16 %v5327, %v5320
    %v5839 = vpack.c.b16 %v5328, %v5321
    %v5840 = vpack.c.b16 %v5329, %v5322
    %v5841 = vpack.c.b16 %v5330, %v5323
    %v5842 = vpack.c.b16 %v5331, %v5324
    %v5843 = vpack.c.b16 %v5339, %v5332
    %v5844 = vpack.c.b16 %v5340, %v5333
    %v5845 = vpack.c.b16 %v5341, %v5334
    %v5846 = vpack.c.b16 %v5342, %v5335
    %v5847 = vpack.c.b16 %v5343, %v5336
    %v5848 = vpack.c.b16 %v5344, %v5337
    %v5849 = vpack.c.b16 %v5345, %v5338
    %v5850 = vpack.c.b16 %v5353, %v5346
    %v5851 = vpack.c.b16 %v5354, %v5347
    %v5852 = vpack.c.b16 %v5355, %v5348
    %v5853 = vpack.c.b16 %v5356, %v5349
    %v5854 = vpack.c.b16 %v5357, %v5350
    %v5855 = vpack.c.b16 %v5358, %v5351
    %v5856 = vpack.c.b16 %v5359, %v5352
    %v5857 = vpack.c.b16 %v5367, %v5360
    %v5858 = vpack.c.b16 %v5368, %v5361
    %v5859 = vpack.c.b16 %v5369, %v5362
    %v5860 = vpack.c.b16 %v5370, %v5363
    %v5861 = vpack.c.b16 %v5371, %v5364
    %v5862 = vpack.c.b16 %v5372, %v5365
    %v5863 = vpack.c.b16 %v5373, %v5366
    %v5864 = vpack.c.b16 %v5381, %v5374
    %v5865 = vpack.c.b16 %v5382, %v5375
    %v5866 = vpack.c.b16 %v5383, %v5376
    %v5867 = vpack.c.b16 %v5384, %v5377
    %v5868 = vpack.c.b16 %v5385, %v5378
    %v5869 = vpack.c.b16 %v5386, %v5379
    %v5870 = vpack.c.b16 %v5387, %v5380
    %v5871 = vpack.c.b16 %v5395, %v5388
    %v5872 = vpack.c.b16 %v5396, %v5389
    %v5873 = vpack.c.b16 %v5397, %v5390
    %v5874 = vpack.c.b16 %v5398, %v5391
    %v5875 = vpack.c.b16 %v5399, %v5392
    %v5876 = vpack.c.b16 %v5400, %v5393
    %v5877 = vpack.c.b16 %v5401, %v5394
    %v5878 = vpack.c.b16 %v5409, %v5402
    %v5879 = vpack.c.b16 %v5410, %v5403
    %v5880 = vpack.c.b16 %v5411, %v5404
    %v5881 = vpack.c.b16 %v5412, %v5405
    %v5882 = vpack.c.b16 %v5413, %v5406
    %v5883 = vpack.c.b16 %v5414, %v5407
    %v5884 = vpack.c.b16 %v5415, %v5408
    %v5885 = vpack.c.b16 %v5423, %v5416
    %v5886 = vpack.c.b16 %v5424, %v5417
    %v5887 = vpack.c.b16 %v5425, %v5418
    %v5888 = vpack.c.b16 %v5426, %v5419
    %v5889 = vpack.c.b16 %v5427, %v5420
    %v5890 = vpack.c.b16 %v5428, %v5421
    %v5891 = vpack.c.b16 %v5429, %v5422
    %v5892 = vpack.c.b16 %v5437, %v5430
    %v5893 = vpack.c.b16 %v5438, %v5431
    %v5894 = vpack.c.b16 %v5439, %v5432
    %v5895 = vpack.c.b16 %v5440, %v5433
    %v5896 = vpack.c.b16 %v5441, %v5434
    %v5897 = vpack.c.b16 %v5442, %v5435
    %v5898 = vpack.c.b16 %v5443, %v5436
    %v5899 = vpack.c.b16 %v5451, %v5444
    %v5900 = vpack.c.b16 %v5452, %v5445
    %v5901 = vpack.c.b16 %v5453, %v5446
    %v5902 = vpack.c.b16 %v5454, %v5447
    %v5903 = vpack.c.b16 %v5455, %v5448
    %v5904 = vpack.c.b16 %v5456, %v5449
    %v5905 = vpack.c.b16 %v5457, %v5450
    %6354 = vmatprep.subr.bf16.mxu0 %v5459
    %6355 = vmatpush1.bf16.msra.mxu0 %v5458
    %6356 = vmatprep.subr.bf16.mxu0 %v5466
    %6357 = vmatpush1.bf16.msra.mxu0 %v5465
    %6358 = vmatprep.subr.bf16.mxu0 %v5473
    %6359 = vmatpush1.bf16.msra.mxu0 %v5472
    %6360 = vmatprep.subr.bf16.mxu0 %v5480
    %6361 = vmatpush1.bf16.msra.mxu0 %v5479
    %6362 = vmatprep.subr.bf16.mxu0 %v5487
    %6363 = vmatpush1.bf16.msra.mxu0 %v5486
    %6364 = vmatprep.subr.bf16.mxu0 %v5494
    %6365 = vmatpush1.bf16.msra.mxu0 %v5493
    %6366 = vmatprep.subr.bf16.mxu0 %v5501
    %6367 = vmatpush1.bf16.msra.mxu0 %v5500
    %6368 = vmatprep.subr.bf16.mxu0 %v5508
    %6369 = vmatpush1.bf16.msra.mxu0 %v5507
    %6370 = vmatprep.subr.bf16.mxu0 %v5515
    %6371 = vmatpush1.bf16.msra.mxu0 %v5514
    %6372 = vmatprep.subr.bf16.mxu0 %v5522
    %6373 = vmatpush1.bf16.msra.mxu0 %v5521
    %6374 = vmatprep.subr.bf16.mxu0 %v5529
    %6375 = vmatpush1.bf16.msra.mxu0 %v5528
    %6376 = vmatprep.subr.bf16.mxu0 %v5536
    %6377 = vmatpush1.bf16.msra.mxu0 %v5535
    %6378 = vmatprep.subr.bf16.mxu0 %v5543
    %6379 = vmatpush1.bf16.msra.mxu0 %v5542
    %6380 = vmatprep.subr.bf16.mxu0 %v5550
    %6381 = vmatpush1.bf16.msra.mxu0 %v5549
    %6382 = vmatprep.subr.bf16.mxu0 %v5557
    %6383 = vmatpush1.bf16.msra.mxu0 %v5556
    %6384 = vmatprep.subr.bf16.mxu0 %v5564
    %6385 = vmatpush1.bf16.msra.mxu0 %v5563
    %6386 = vmatprep.mubr.bf16.mxu0 %v3494
    %6387 = vmatmul.mubr.bf16.gmra.mrb[0].mxu0 %v3493
    %v6388 = vpop.f32.mrb[0].mxu0
    %v6389 = vadd.f32 %v4018, %v6388
    %v6390 = vpop.f32.mrb[0].mxu0
    %v6391 = vadd.f32 %v4022, %v6390
    %v6392 = vpop.f32.mrb[0].mxu0
    %v6393 = vadd.f32 %v4018, %v6392
    %v6394 = vpop.f32.mrb[0].mxu0
    %v6395 = vadd.f32 %v4022, %v6394
    %6396 = vdwg.mxu0
    %6397 = vmatprep.subr.bf16.mxu0 %v5571
    %6398 = vmatpush1.bf16.msra.mxu0 %v5570
    %6399 = vmatprep.subr.bf16.mxu0 %v5578
    %6400 = vmatpush1.bf16.msra.mxu0 %v5577
    %6401 = vmatprep.subr.bf16.mxu0 %v5585
    %6402 = vmatpush1.bf16.msra.mxu0 %v5584
    %6403 = vmatprep.subr.bf16.mxu0 %v5592
    %6404 = vmatpush1.bf16.msra.mxu0 %v5591
    %6405 = vmatprep.subr.bf16.mxu0 %v5599
    %6406 = vmatpush1.bf16.msra.mxu0 %v5598
    %6407 = vmatprep.subr.bf16.mxu0 %v5606
    %6408 = vmatpush1.bf16.msra.mxu0 %v5605
    %6409 = vmatprep.subr.bf16.mxu0 %v5613
    %6410 = vmatpush1.bf16.msra.mxu0 %v5612
    %6411 = vmatprep.subr.bf16.mxu0 %v5620
    %6412 = vmatpush1.bf16.msra.mxu0 %v5619
    %6413 = vmatprep.subr.bf16.mxu0 %v5627
    %6414 = vmatpush1.bf16.msra.mxu0 %v5626
    %6415 = vmatprep.subr.bf16.mxu0 %v5634
    %6416 = vmatpush1.bf16.msra.mxu0 %v5633
    %6417 = vmatprep.subr.bf16.mxu0 %v5641
    %6418 = vmatpush1.bf16.msra.mxu0 %v5640
    %6419 = vmatprep.subr.bf16.mxu0 %v5648
    %6420 = vmatpush1.bf16.msra.mxu0 %v5647
    %6421 = vmatprep.subr.bf16.mxu0 %v5655
    %6422 = vmatpush1.bf16.msra.mxu0 %v5654
    %6423 = vmatprep.subr.bf16.mxu0 %v5662
    %6424 = vmatpush1.bf16.msra.mxu0 %v5661
    %6425 = vmatprep.subr.bf16.mxu0 %v5669
    %6426 = vmatpush1.bf16.msra.mxu0 %v5668
    %6427 = vmatprep.subr.bf16.mxu0 %v5676
    %6428 = vmatpush1.bf16.msra.mxu0 %v5675
    %6429 = vmatprep.mubr.bf16.mxu0 %v3496
    %6430 = vmatmul.mubr.bf16.gmra.mrb[0].mxu0 %v3495
    %v6431 = vpop.f32.mrb[0].mxu0
    %v6432 = vadd.f32 %v6389, %v6431
    %v6433 = vpop.f32.mrb[0].mxu0
    %v6434 = vadd.f32 %v6391, %v6433
    %v6435 = vpop.f32.mrb[0].mxu0
    %v6436 = vadd.f32 %v6393, %v6435
    %v6437 = vpop.f32.mrb[0].mxu0
    %v6438 = vadd.f32 %v6395, %v6437
    %6439 = vdwg.mxu0
    %6440 = vmatprep.subr.bf16.mxu0 %v5683
    %6441 = vmatpush1.bf16.msra.mxu0 %v5682
    %6442 = vmatprep.subr.bf16.mxu0 %v5690
    %6443 = vmatpush1.bf16.msra.mxu0 %v5689
    %6444 = vmatprep.subr.bf16.mxu0 %v5697
    %6445 = vmatpush1.bf16.msra.mxu0 %v5696
    %6446 = vmatprep.subr.bf16.mxu0 %v5704
    %6447 = vmatpush1.bf16.msra.mxu0 %v5703
    %6448 = vmatprep.subr.bf16.mxu0 %v5711
    %6449 = vmatpush1.bf16.msra.mxu0 %v5710
    %6450 = vmatprep.subr.bf16.mxu0 %v5718
    %6451 = vmatpush1.bf16.msra.mxu0 %v5717
    %6452 = vmatprep.subr.bf16.mxu0 %v5725
    %6453 = vmatpush1.bf16.msra.mxu0 %v5724
    %6454 = vmatprep.subr.bf16.mxu0 %v5732
    %6455 = vmatpush1.bf16.msra.mxu0 %v5731
    %6456 = vmatprep.subr.bf16.mxu0 %v5739
    %6457 = vmatpush1.bf16.msra.mxu0 %v5738
    %6458 = vmatprep.subr.bf16.mxu0 %v5746
    %6459 = vmatpush1.bf16.msra.mxu0 %v5745
    %6460 = vmatprep.subr.bf16.mxu0 %v5753
    %6461 = vmatpush1.bf16.msra.mxu0 %v5752
    %6462 = vmatprep.subr.bf16.mxu0 %v5760
    %6463 = vmatpush1.bf16.msra.mxu0 %v5759
    %6464 = vmatprep.subr.bf16.mxu0 %v5767
    %6465 = vmatpush1.bf16.msra.mxu0 %v5766
    %6466 = vmatprep.subr.bf16.mxu0 %v5774
    %6467 = vmatpush1.bf16.msra.mxu0 %v5773
    %6468 = vmatprep.subr.bf16.mxu0 %v5781
    %6469 = vmatpush1.bf16.msra.mxu0 %v5780
    %6470 = vmatprep.subr.bf16.mxu0 %v5788
    %6471 = vmatpush1.bf16.msra.mxu0 %v5787
    %6472 = vmatprep.mubr.bf16.mxu0 %v3498
    %6473 = vmatmul.mubr.bf16.gmra.mrb[0].mxu0 %v3497
    %v6474 = vpop.f32.mrb[0].mxu0
    %v6475 = vadd.f32 %v6432, %v6474
    %v6476 = vpop.f32.mrb[0].mxu0
    %v6477 = vadd.f32 %v6434, %v6476
    %v6478 = vpop.f32.mrb[0].mxu0
    %v6479 = vadd.f32 %v6436, %v6478
    %v6480 = vpop.f32.mrb[0].mxu0
    %v6481 = vadd.f32 %v6438, %v6480
    %6482 = vdwg.mxu0
    %6483 = vmatprep.subr.bf16.mxu0 %v5795
    %6484 = vmatpush1.bf16.msra.mxu0 %v5794
    %6485 = vmatprep.subr.bf16.mxu0 %v5802
    %6486 = vmatpush1.bf16.msra.mxu0 %v5801
    %6487 = vmatprep.subr.bf16.mxu0 %v5809
    %6488 = vmatpush1.bf16.msra.mxu0 %v5808
    %6489 = vmatprep.subr.bf16.mxu0 %v5816
    %6490 = vmatpush1.bf16.msra.mxu0 %v5815
    %6491 = vmatprep.subr.bf16.mxu0 %v5823
    %6492 = vmatpush1.bf16.msra.mxu0 %v5822
    %6493 = vmatprep.subr.bf16.mxu0 %v5830
    %6494 = vmatpush1.bf16.msra.mxu0 %v5829
    %6495 = vmatprep.subr.bf16.mxu0 %v5837
    %6496 = vmatpush1.bf16.msra.mxu0 %v5836
    %6497 = vmatprep.subr.bf16.mxu0 %v5844
    %6498 = vmatpush1.bf16.msra.mxu0 %v5843
    %6499 = vmatprep.subr.bf16.mxu0 %v5851
    %6500 = vmatpush1.bf16.msra.mxu0 %v5850
    %6501 = vmatprep.subr.bf16.mxu0 %v5858
    %6502 = vmatpush1.bf16.msra.mxu0 %v5857
    %6503 = vmatprep.subr.bf16.mxu0 %v5865
    %6504 = vmatpush1.bf16.msra.mxu0 %v5864
    %6505 = vmatprep.subr.bf16.mxu0 %v5872
    %6506 = vmatpush1.bf16.msra.mxu0 %v5871
    %6507 = vmatprep.subr.bf16.mxu0 %v5879
    %6508 = vmatpush1.bf16.msra.mxu0 %v5878
    %6509 = vmatprep.subr.bf16.mxu0 %v5886
    %6510 = vmatpush1.bf16.msra.mxu0 %v5885
    %6511 = vmatprep.subr.bf16.mxu0 %v5893
    %6512 = vmatpush1.bf16.msra.mxu0 %v5892
    %6513 = vmatprep.subr.bf16.mxu0 %v5900
    %6514 = vmatpush1.bf16.msra.mxu0 %v5899
    %6515 = vmatprep.mubr.bf16.mxu0 %v3500
    %6516 = vmatmul.mubr.bf16.gmra.mrb[0].mxu0 %v3499
    %v6517 = vpop.f32.mrb[0].mxu0
    %v6518 = vadd.f32 %v6475, %v6517
    %v6519 = vpop.f32.mrb[0].mxu0
    %v6520 = vadd.f32 %v6477, %v6519
    %v6521 = vpop.f32.mrb[0].mxu0
    %v6522 = vadd.f32 %v6479, %v6521
    %v6523 = vpop.f32.mrb[0].mxu0
    %v6524 = vadd.f32 %v6481, %v6523
    %6525 = vdwg.mxu0
    %6526 = vmatprep.subr.bf16.mxu0 %v5461
    %6527 = vmatpush1.bf16.msra.mxu0 %v5460
    %6528 = vmatprep.subr.bf16.mxu0 %v5468
    %6529 = vmatpush1.bf16.msra.mxu0 %v5467
    %6530 = vmatprep.subr.bf16.mxu0 %v5475
    %6531 = vmatpush1.bf16.msra.mxu0 %v5474
    %6532 = vmatprep.subr.bf16.mxu0 %v5482
    %6533 = vmatpush1.bf16.msra.mxu0 %v5481
    %6534 = vmatprep.subr.bf16.mxu0 %v5489
    %6535 = vmatpush1.bf16.msra.mxu0 %v5488
    %6536 = vmatprep.subr.bf16.mxu0 %v5496
    %6537 = vmatpush1.bf16.msra.mxu0 %v5495
    %6538 = vmatprep.subr.bf16.mxu0 %v5503
    %6539 = vmatpush1.bf16.msra.mxu0 %v5502
    %6540 = vmatprep.subr.bf16.mxu0 %v5510
    %6541 = vmatpush1.bf16.msra.mxu0 %v5509
    %6542 = vmatprep.subr.bf16.mxu0 %v5517
    %6543 = vmatpush1.bf16.msra.mxu0 %v5516
    %6544 = vmatprep.subr.bf16.mxu0 %v5524
    %6545 = vmatpush1.bf16.msra.mxu0 %v5523
    %6546 = vmatprep.subr.bf16.mxu0 %v5531
    %6547 = vmatpush1.bf16.msra.mxu0 %v5530
    %6548 = vmatprep.subr.bf16.mxu0 %v5538
    %6549 = vmatpush1.bf16.msra.mxu0 %v5537
    %6550 = vmatprep.subr.bf16.mxu0 %v5545
    %6551 = vmatpush1.bf16.msra.mxu0 %v5544
    %6552 = vmatprep.subr.bf16.mxu0 %v5552
    %6553 = vmatpush1.bf16.msra.mxu0 %v5551
    %6554 = vmatprep.subr.bf16.mxu0 %v5559
    %6555 = vmatpush1.bf16.msra.mxu0 %v5558
    %6556 = vmatprep.subr.bf16.mxu0 %v5566
    %6557 = vmatpush1.bf16.msra.mxu0 %v5565
    %6558 = vmatprep.mubr.bf16.mxu0 %v3494
    %6559 = vmatmul.mubr.bf16.gmra.mrb[0].mxu0 %v3493
    %v6560 = vpop.f32.mrb[0].mxu0
    %v6561 = vadd.f32 %v4026, %v6560
    %v6562 = vpop.f32.mrb[0].mxu0
    %v6563 = vadd.f32 %v4030, %v6562
    %v6564 = vpop.f32.mrb[0].mxu0
    %v6565 = vadd.f32 %v4026, %v6564
    %v6566 = vpop.f32.mrb[0].mxu0
    %v6567 = vadd.f32 %v4030, %v6566
    %6568 = vdwg.mxu0
    %6569 = vmatprep.subr.bf16.mxu0 %v5573
    %6570 = vmatpush1.bf16.msra.mxu0 %v5572
    %6571 = vmatprep.subr.bf16.mxu0 %v5580
    %6572 = vmatpush1.bf16.msra.mxu0 %v5579
    %6573 = vmatprep.subr.bf16.mxu0 %v5587
    %6574 = vmatpush1.bf16.msra.mxu0 %v5586
    %6575 = vmatprep.subr.bf16.mxu0 %v5594
    %6576 = vmatpush1.bf16.msra.mxu0 %v5593
    %6577 = vmatprep.subr.bf16.mxu0 %v5601
    %6578 = vmatpush1.bf16.msra.mxu0 %v5600
    %6579 = vmatprep.subr.bf16.mxu0 %v5608
    %6580 = vmatpush1.bf16.msra.mxu0 %v5607
    %6581 = vmatprep.subr.bf16.mxu0 %v5615
    %6582 = vmatpush1.bf16.msra.mxu0 %v5614
    %6583 = vmatprep.subr.bf16.mxu0 %v5622
    %6584 = vmatpush1.bf16.msra.mxu0 %v5621
    %6585 = vmatprep.subr.bf16.mxu0 %v5629
    %6586 = vmatpush1.bf16.msra.mxu0 %v5628
    %6587 = vmatprep.subr.bf16.mxu0 %v5636
    %6588 = vmatpush1.bf16.msra.mxu0 %v5635
    %6589 = vmatprep.subr.bf16.mxu0 %v5643
    %6590 = vmatpush1.bf16.msra.mxu0 %v5642
    %6591 = vmatprep.subr.bf16.mxu0 %v5650
    %6592 = vmatpush1.bf16.msra.mxu0 %v5649
    %6593 = vmatprep.subr.bf16.mxu0 %v5657
    %6594 = vmatpush1.bf16.msra.mxu0 %v5656
    %6595 = vmatprep.subr.bf16.mxu0 %v5664
    %6596 = vmatpush1.bf16.msra.mxu0 %v5663
    %6597 = vmatprep.subr.bf16.mxu0 %v5671
    %6598 = vmatpush1.bf16.msra.mxu0 %v5670
    %6599 = vmatprep.subr.bf16.mxu0 %v5678
    %6600 = vmatpush1.bf16.msra.mxu0 %v5677
    %6601 = vmatprep.mubr.bf16.mxu0 %v3496
    %6602 = vmatmul.mubr.bf16.gmra.mrb[0].mxu0 %v3495
    %v6603 = vpop.f32.mrb[0].mxu0
    %v6604 = vadd.f32 %v6561, %v6603
    %v6605 = vpop.f32.mrb[0].mxu0
    %v6606 = vadd.f32 %v6563, %v6605
    %v6607 = vpop.f32.mrb[0].mxu0
    %v6608 = vadd.f32 %v6565, %v6607
    %v6609 = vpop.f32.mrb[0].mxu0
    %v6610 = vadd.f32 %v6567, %v6609
    %6611 = vdwg.mxu0
    %6612 = vmatprep.subr.bf16.mxu0 %v5685
    %6613 = vmatpush1.bf16.msra.mxu0 %v5684
    %6614 = vmatprep.subr.bf16.mxu0 %v5692
    %6615 = vmatpush1.bf16.msra.mxu0 %v5691
    %6616 = vmatprep.subr.bf16.mxu0 %v5699
    %6617 = vmatpush1.bf16.msra.mxu0 %v5698
    %6618 = vmatprep.subr.bf16.mxu0 %v5706
    %6619 = vmatpush1.bf16.msra.mxu0 %v5705
    %6620 = vmatprep.subr.bf16.mxu0 %v5713
    %6621 = vmatpush1.bf16.msra.mxu0 %v5712
    %6622 = vmatprep.subr.bf16.mxu0 %v5720
    %6623 = vmatpush1.bf16.msra.mxu0 %v5719
    %6624 = vmatprep.subr.bf16.mxu0 %v5727
    %6625 = vmatpush1.bf16.msra.mxu0 %v5726
    %6626 = vmatprep.subr.bf16.mxu0 %v5734
    %6627 = vmatpush1.bf16.msra.mxu0 %v5733
    %6628 = vmatprep.subr.bf16.mxu0 %v5741
    %6629 = vmatpush1.bf16.msra.mxu0 %v5740
    %6630 = vmatprep.subr.bf16.mxu0 %v5748
    %6631 = vmatpush1.bf16.msra.mxu0 %v5747
    %6632 = vmatprep.subr.bf16.mxu0 %v5755
    %6633 = vmatpush1.bf16.msra.mxu0 %v5754
    %6634 = vmatprep.subr.bf16.mxu0 %v5762
    %6635 = vmatpush1.bf16.msra.mxu0 %v5761
    %6636 = vmatprep.subr.bf16.mxu0 %v5769
    %6637 = vmatpush1.bf16.msra.mxu0 %v5768
    %6638 = vmatprep.subr.bf16.mxu0 %v5776
    %6639 = vmatpush1.bf16.msra.mxu0 %v5775
    %6640 = vmatprep.subr.bf16.mxu0 %v5783
    %6641 = vmatpush1.bf16.msra.mxu0 %v5782
    %6642 = vmatprep.subr.bf16.mxu0 %v5790
    %6643 = vmatpush1.bf16.msra.mxu0 %v5789
    %6644 = vmatprep.mubr.bf16.mxu0 %v3498
    %6645 = vmatmul.mubr.bf16.gmra.mrb[0].mxu0 %v3497
    %v6646 = vpop.f32.mrb[0].mxu0
    %v6647 = vadd.f32 %v6604, %v6646
    %v6648 = vpop.f32.mrb[0].mxu0
    %v6649 = vadd.f32 %v6606, %v6648
    %v6650 = vpop.f32.mrb[0].mxu0
    %v6651 = vadd.f32 %v6608, %v6650
    %v6652 = vpop.f32.mrb[0].mxu0
    %v6653 = vadd.f32 %v6610, %v6652
    %6654 = vdwg.mxu0
    %6655 = vmatprep.subr.bf16.mxu0 %v5797
    %6656 = vmatpush1.bf16.msra.mxu0 %v5796
    %6657 = vmatprep.subr.bf16.mxu0 %v5804
    %6658 = vmatpush1.bf16.msra.mxu0 %v5803
    %6659 = vmatprep.subr.bf16.mxu0 %v5811
    %6660 = vmatpush1.bf16.msra.mxu0 %v5810
    %6661 = vmatprep.subr.bf16.mxu0 %v5818
    %6662 = vmatpush1.bf16.msra.mxu0 %v5817
    %6663 = vmatprep.subr.bf16.mxu0 %v5825
    %6664 = vmatpush1.bf16.msra.mxu0 %v5824
    %6665 = vmatprep.subr.bf16.mxu0 %v5832
    %6666 = vmatpush1.bf16.msra.mxu0 %v5831
    %6667 = vmatprep.subr.bf16.mxu0 %v5839
    %6668 = vmatpush1.bf16.msra.mxu0 %v5838
    %6669 = vmatprep.subr.bf16.mxu0 %v5846
    %6670 = vmatpush1.bf16.msra.mxu0 %v5845
    %6671 = vmatprep.subr.bf16.mxu0 %v5853
    %6672 = vmatpush1.bf16.msra.mxu0 %v5852
    %6673 = vmatprep.subr.bf16.mxu0 %v5860
    %6674 = vmatpush1.bf16.msra.mxu0 %v5859
    %6675 = vmatprep.subr.bf16.mxu0 %v5867
    %6676 = vmatpush1.bf16.msra.mxu0 %v5866
    %6677 = vmatprep.subr.bf16.mxu0 %v5874
    %6678 = vmatpush1.bf16.msra.mxu0 %v5873
    %6679 = vmatprep.subr.bf16.mxu0 %v5881
    %6680 = vmatpush1.bf16.msra.mxu0 %v5880
    %6681 = vmatprep.subr.bf16.mxu0 %v5888
    %6682 = vmatpush1.bf16.msra.mxu0 %v5887
    %6683 = vmatprep.subr.bf16.mxu0 %v5895
    %6684 = vmatpush1.bf16.msra.mxu0 %v5894
    %6685 = vmatprep.subr.bf16.mxu0 %v5902
    %6686 = vmatpush1.bf16.msra.mxu0 %v5901
    %6687 = vmatprep.mubr.bf16.mxu0 %v3500
    %6688 = vmatmul.mubr.bf16.gmra.mrb[0].mxu0 %v3499
    %v6689 = vpop.f32.mrb[0].mxu0
    %v6690 = vadd.f32 %v6647, %v6689
    %v6691 = vpop.f32.mrb[0].mxu0
    %v6692 = vadd.f32 %v6649, %v6691
    %v6693 = vpop.f32.mrb[0].mxu0
    %v6694 = vadd.f32 %v6651, %v6693
    %v6695 = vpop.f32.mrb[0].mxu0
    %v6696 = vadd.f32 %v6653, %v6695
    %6697 = vdwg.mxu0
    %6698 = vmatprep.subr.bf16.mxu0 %v5463
    %6699 = vmatpush1.bf16.msra.mxu0 %v5462
    %6700 = vmatprep.subr.bf16.mxu0 %v5470
    %6701 = vmatpush1.bf16.msra.mxu0 %v5469
    %6702 = vmatprep.subr.bf16.mxu0 %v5477
    %6703 = vmatpush1.bf16.msra.mxu0 %v5476
    %6704 = vmatprep.subr.bf16.mxu0 %v5484
    %6705 = vmatpush1.bf16.msra.mxu0 %v5483
    %6706 = vmatprep.subr.bf16.mxu0 %v5491
    %6707 = vmatpush1.bf16.msra.mxu0 %v5490
    %6708 = vmatprep.subr.bf16.mxu0 %v5498
    %6709 = vmatpush1.bf16.msra.mxu0 %v5497
    %6710 = vmatprep.subr.bf16.mxu0 %v5505
    %6711 = vmatpush1.bf16.msra.mxu0 %v5504
    %6712 = vmatprep.subr.bf16.mxu0 %v5512
    %6713 = vmatpush1.bf16.msra.mxu0 %v5511
    %6714 = vmatprep.subr.bf16.mxu0 %v5519
    %6715 = vmatpush1.bf16.msra.mxu0 %v5518
    %6716 = vmatprep.subr.bf16.mxu0 %v5526
    %6717 = vmatpush1.bf16.msra.mxu0 %v5525
    %6718 = vmatprep.subr.bf16.mxu0 %v5533
    %6719 = vmatpush1.bf16.msra.mxu0 %v5532
    %6720 = vmatprep.subr.bf16.mxu0 %v5540
    %6721 = vmatpush1.bf16.msra.mxu0 %v5539
    %6722 = vmatprep.subr.bf16.mxu0 %v5547
    %6723 = vmatpush1.bf16.msra.mxu0 %v5546
    %6724 = vmatprep.subr.bf16.mxu0 %v5554
    %6725 = vmatpush1.bf16.msra.mxu0 %v5553
    %6726 = vmatprep.subr.bf16.mxu0 %v5561
    %6727 = vmatpush1.bf16.msra.mxu0 %v5560
    %6728 = vmatprep.subr.bf16.mxu0 %v5568
    %6729 = vmatpush1.bf16.msra.mxu0 %v5567
    %6730 = vmatprep.mubr.bf16.mxu0 %v3494
    %6731 = vmatmul.mubr.bf16.gmra.mrb[0].mxu0 %v3493
    %v6732 = vpop.f32.mrb[0].mxu0
    %v6733 = vadd.f32 %v4034, %v6732
    %v6734 = vpop.f32.mrb[0].mxu0
    %v6735 = vadd.f32 %v4038, %v6734
    %v6736 = vpop.f32.mrb[0].mxu0
    %v6737 = vadd.f32 %v4034, %v6736
    %v6738 = vpop.f32.mrb[0].mxu0
    %v6739 = vadd.f32 %v4038, %v6738
    %6740 = vdwg.mxu0
    %6741 = vmatprep.subr.bf16.mxu0 %v5575
    %6742 = vmatpush1.bf16.msra.mxu0 %v5574
    %6743 = vmatprep.subr.bf16.mxu0 %v5582
    %6744 = vmatpush1.bf16.msra.mxu0 %v5581
    %6745 = vmatprep.subr.bf16.mxu0 %v5589
    %6746 = vmatpush1.bf16.msra.mxu0 %v5588
    %6747 = vmatprep.subr.bf16.mxu0 %v5596
    %6748 = vmatpush1.bf16.msra.mxu0 %v5595
    %6749 = vmatprep.subr.bf16.mxu0 %v5603
    %6750 = vmatpush1.bf16.msra.mxu0 %v5602
    %6751 = vmatprep.subr.bf16.mxu0 %v5610
    %6752 = vmatpush1.bf16.msra.mxu0 %v5609
    %6753 = vmatprep.subr.bf16.mxu0 %v5617
    %6754 = vmatpush1.bf16.msra.mxu0 %v5616
    %6755 = vmatprep.subr.bf16.mxu0 %v5624
    %6756 = vmatpush1.bf16.msra.mxu0 %v5623
    %6757 = vmatprep.subr.bf16.mxu0 %v5631
    %6758 = vmatpush1.bf16.msra.mxu0 %v5630
    %6759 = vmatprep.subr.bf16.mxu0 %v5638
    %6760 = vmatpush1.bf16.msra.mxu0 %v5637
    %6761 = vmatprep.subr.bf16.mxu0 %v5645
    %6762 = vmatpush1.bf16.msra.mxu0 %v5644
    %6763 = vmatprep.subr.bf16.mxu0 %v5652
    %6764 = vmatpush1.bf16.msra.mxu0 %v5651
    %6765 = vmatprep.subr.bf16.mxu0 %v5659
    %6766 = vmatpush1.bf16.msra.mxu0 %v5658
    %6767 = vmatprep.subr.bf16.mxu0 %v5666
    %6768 = vmatpush1.bf16.msra.mxu0 %v5665
    %6769 = vmatprep.subr.bf16.mxu0 %v5673
    %6770 = vmatpush1.bf16.msra.mxu0 %v5672
    %6771 = vmatprep.subr.bf16.mxu0 %v5680
    %6772 = vmatpush1.bf16.msra.mxu0 %v5679
    %6773 = vmatprep.mubr.bf16.mxu0 %v3496
    %6774 = vmatmul.mubr.bf16.gmra.mrb[0].mxu0 %v3495
    %v6775 = vpop.f32.mrb[0].mxu0
    %v6776 = vadd.f32 %v6733, %v6775
    %v6777 = vpop.f32.mrb[0].mxu0
    %v6778 = vadd.f32 %v6735, %v6777
    %v6779 = vpop.f32.mrb[0].mxu0
    %v6780 = vadd.f32 %v6737, %v6779
    %v6781 = vpop.f32.mrb[0].mxu0
    %v6782 = vadd.f32 %v6739, %v6781
    %6783 = vdwg.mxu0
    %6784 = vmatprep.subr.bf16.mxu0 %v5687
    %6785 = vmatpush1.bf16.msra.mxu0 %v5686
    %6786 = vmatprep.subr.bf16.mxu0 %v5694
    %6787 = vmatpush1.bf16.msra.mxu0 %v5693
    %6788 = vmatprep.subr.bf16.mxu0 %v5701
    %6789 = vmatpush1.bf16.msra.mxu0 %v5700
    %6790 = vmatprep.subr.bf16.mxu0 %v5708
    %6791 = vmatpush1.bf16.msra.mxu0 %v5707
    %6792 = vmatprep.subr.bf16.mxu0 %v5715
    %6793 = vmatpush1.bf16.msra.mxu0 %v5714
    %6794 = vmatprep.subr.bf16.mxu0 %v5722
    %6795 = vmatpush1.bf16.msra.mxu0 %v5721
    %6796 = vmatprep.subr.bf16.mxu0 %v5729
    %6797 = vmatpush1.bf16.msra.mxu0 %v5728
    %6798 = vmatprep.subr.bf16.mxu0 %v5736
    %6799 = vmatpush1.bf16.msra.mxu0 %v5735
    %6800 = vmatprep.subr.bf16.mxu0 %v5743
    %6801 = vmatpush1.bf16.msra.mxu0 %v5742
    %6802 = vmatprep.subr.bf16.mxu0 %v5750
    %6803 = vmatpush1.bf16.msra.mxu0 %v5749
    %6804 = vmatprep.subr.bf16.mxu0 %v5757
    %6805 = vmatpush1.bf16.msra.mxu0 %v5756
    %6806 = vmatprep.subr.bf16.mxu0 %v5764
    %6807 = vmatpush1.bf16.msra.mxu0 %v5763
    %6808 = vmatprep.subr.bf16.mxu0 %v5771
    %6809 = vmatpush1.bf16.msra.mxu0 %v5770
    %6810 = vmatprep.subr.bf16.mxu0 %v5778
    %6811 = vmatpush1.bf16.msra.mxu0 %v5777
    %6812 = vmatprep.subr.bf16.mxu0 %v5785
    %6813 = vmatpush1.bf16.msra.mxu0 %v5784
    %6814 = vmatprep.subr.bf16.mxu0 %v5792
    %6815 = vmatpush1.bf16.msra.mxu0 %v5791
    %6816 = vmatprep.mubr.bf16.mxu0 %v3498
    %6817 = vmatmul.mubr.bf16.gmra.mrb[0].mxu0 %v3497
    %v6818 = vpop.f32.mrb[0].mxu0
    %v6819 = vadd.f32 %v6776, %v6818
    %v6820 = vpop.f32.mrb[0].mxu0
    %v6821 = vadd.f32 %v6778, %v6820
    %v6822 = vpop.f32.mrb[0].mxu0
    %v6823 = vadd.f32 %v6780, %v6822
    %v6824 = vpop.f32.mrb[0].mxu0
    %v6825 = vadd.f32 %v6782, %v6824
    %6826 = vdwg.mxu0
    %6827 = vmatprep.subr.bf16.mxu0 %v5799
    %6828 = vmatpush1.bf16.msra.mxu0 %v5798
    %6829 = vmatprep.subr.bf16.mxu0 %v5806
    %6830 = vmatpush1.bf16.msra.mxu0 %v5805
    %6831 = vmatprep.subr.bf16.mxu0 %v5813
    %6832 = vmatpush1.bf16.msra.mxu0 %v5812
    %6833 = vmatprep.subr.bf16.mxu0 %v5820
    %6834 = vmatpush1.bf16.msra.mxu0 %v5819
    %6835 = vmatprep.subr.bf16.mxu0 %v5827
    %6836 = vmatpush1.bf16.msra.mxu0 %v5826
    %6837 = vmatprep.subr.bf16.mxu0 %v5834
    %6838 = vmatpush1.bf16.msra.mxu0 %v5833
    %6839 = vmatprep.subr.bf16.mxu0 %v5841
    %6840 = vmatpush1.bf16.msra.mxu0 %v5840
    %6841 = vmatprep.subr.bf16.mxu0 %v5848
    %6842 = vmatpush1.bf16.msra.mxu0 %v5847
    %6843 = vmatprep.subr.bf16.mxu0 %v5855
    %6844 = vmatpush1.bf16.msra.mxu0 %v5854
    %6845 = vmatprep.subr.bf16.mxu0 %v5862
    %6846 = vmatpush1.bf16.msra.mxu0 %v5861
    %6847 = vmatprep.subr.bf16.mxu0 %v5869
    %6848 = vmatpush1.bf16.msra.mxu0 %v5868
    %6849 = vmatprep.subr.bf16.mxu0 %v5876
    %6850 = vmatpush1.bf16.msra.mxu0 %v5875
    %6851 = vmatprep.subr.bf16.mxu0 %v5883
    %6852 = vmatpush1.bf16.msra.mxu0 %v5882
    %6853 = vmatprep.subr.bf16.mxu0 %v5890
    %6854 = vmatpush1.bf16.msra.mxu0 %v5889
    %6855 = vmatprep.subr.bf16.mxu0 %v5897
    %6856 = vmatpush1.bf16.msra.mxu0 %v5896
    %6857 = vmatprep.subr.bf16.mxu0 %v5904
    %6858 = vmatpush1.bf16.msra.mxu0 %v5903
    %6859 = vmatprep.mubr.bf16.mxu0 %v3500
    %6860 = vmatmul.mubr.bf16.gmra.mrb[0].mxu0 %v3499
    %v6861 = vpop.f32.mrb[0].mxu0
    %v6862 = vadd.f32 %v6819, %v6861
    %v6863 = vpop.f32.mrb[0].mxu0
    %v6864 = vadd.f32 %v6821, %v6863
    %v6865 = vpop.f32.mrb[0].mxu0
    %v6866 = vadd.f32 %v6823, %v6865
    %v6867 = vpop.f32.mrb[0].mxu0
    %v6868 = vadd.f32 %v6825, %v6867
    %6869 = vdwg.mxu0
    %6870 = vmatprep.subr.bf16.mxu0 0
    %6871 = vmatpush1.bf16.msra.mxu0 %v5464
    %6872 = vmatprep.subr.bf16.mxu0 0
    %6873 = vmatpush1.bf16.msra.mxu0 %v5471
    %6874 = vmatprep.subr.bf16.mxu0 0
    %6875 = vmatpush1.bf16.msra.mxu0 %v5478
    %6876 = vmatprep.subr.bf16.mxu0 0
    %6877 = vmatpush1.bf16.msra.mxu0 %v5485
    %6878 = vmatprep.subr.bf16.mxu0 0
    %6879 = vmatpush1.bf16.msra.mxu0 %v5492
    %6880 = vmatprep.subr.bf16.mxu0 0
    %6881 = vmatpush1.bf16.msra.mxu0 %v5499
    %6882 = vmatprep.subr.bf16.mxu0 0
    %6883 = vmatpush1.bf16.msra.mxu0 %v5506
    %6884 = vmatprep.subr.bf16.mxu0 0
    %6885 = vmatpush1.bf16.msra.mxu0 %v5513
    %6886 = vmatprep.subr.bf16.mxu0 0
    %6887 = vmatpush1.bf16.msra.mxu0 %v5520
    %6888 = vmatprep.subr.bf16.mxu0 0
    %6889 = vmatpush1.bf16.msra.mxu0 %v5527
    %6890 = vmatprep.subr.bf16.mxu0 0
    %6891 = vmatpush1.bf16.msra.mxu0 %v5534
    %6892 = vmatprep.subr.bf16.mxu0 0
    %6893 = vmatpush1.bf16.msra.mxu0 %v5541
    %6894 = vmatprep.subr.bf16.mxu0 0
    %6895 = vmatpush1.bf16.msra.mxu0 %v5548
    %6896 = vmatprep.subr.bf16.mxu0 0
    %6897 = vmatpush1.bf16.msra.mxu0 %v5555
    %6898 = vmatprep.subr.bf16.mxu0 0
    %6899 = vmatpush1.bf16.msra.mxu0 %v5562
    %6900 = vmatprep.subr.bf16.mxu0 0
    %6901 = vmatpush1.bf16.msra.mxu0 %v5569
    %6902 = vmatprep.mubr.bf16.mxu0 %v3494
    %6903 = vmatmul.mubr.bf16.gmra.mrb[0].mxu0 %v3493
    %v6904 = vpop.f32.mrb[0].mxu0
    %v6905 = vadd.f32 %v4042, %v6904
    %v6906 = vpop.f32.mrb[0].mxu0
    %v6907 = vpop.f32.mrb[0].mxu0
    %v6908 = vadd.f32 %v4042, %v6907
    %v6909 = vpop.f32.mrb[0].mxu0
    %6910 = vdwg.mxu0
    %6911 = vmatprep.subr.bf16.mxu0 0
    %6912 = vmatpush1.bf16.msra.mxu0 %v5576
    %6913 = vmatprep.subr.bf16.mxu0 0
    %6914 = vmatpush1.bf16.msra.mxu0 %v5583
    %6915 = vmatprep.subr.bf16.mxu0 0
    %6916 = vmatpush1.bf16.msra.mxu0 %v5590
    %6917 = vmatprep.subr.bf16.mxu0 0
    %6918 = vmatpush1.bf16.msra.mxu0 %v5597
    %6919 = vmatprep.subr.bf16.mxu0 0
    %6920 = vmatpush1.bf16.msra.mxu0 %v5604
    %6921 = vmatprep.subr.bf16.mxu0 0
    %6922 = vmatpush1.bf16.msra.mxu0 %v5611
    %6923 = vmatprep.subr.bf16.mxu0 0
    %6924 = vmatpush1.bf16.msra.mxu0 %v5618
    %6925 = vmatprep.subr.bf16.mxu0 0
    %6926 = vmatpush1.bf16.msra.mxu0 %v5625
    %6927 = vmatprep.subr.bf16.mxu0 0
    %6928 = vmatpush1.bf16.msra.mxu0 %v5632
    %6929 = vmatprep.subr.bf16.mxu0 0
    %6930 = vmatpush1.bf16.msra.mxu0 %v5639
    %6931 = vmatprep.subr.bf16.mxu0 0
    %6932 = vmatpush1.bf16.msra.mxu0 %v5646
    %6933 = vmatprep.subr.bf16.mxu0 0
    %6934 = vmatpush1.bf16.msra.mxu0 %v5653
    %6935 = vmatprep.subr.bf16.mxu0 0
    %6936 = vmatpush1.bf16.msra.mxu0 %v5660
    %6937 = vmatprep.subr.bf16.mxu0 0
    %6938 = vmatpush1.bf16.msra.mxu0 %v5667
    %6939 = vmatprep.subr.bf16.mxu0 0
    %6940 = vmatpush1.bf16.msra.mxu0 %v5674
    %6941 = vmatprep.subr.bf16.mxu0 0
    %6942 = vmatpush1.bf16.msra.mxu0 %v5681
    %6943 = vmatprep.mubr.bf16.mxu0 %v3496
    %6944 = vmatmul.mubr.bf16.gmra.mrb[0].mxu0 %v3495
    %v6945 = vpop.f32.mrb[0].mxu0
    %v6946 = vadd.f32 %v6905, %v6945
    %v6947 = vpop.f32.mrb[0].mxu0
    %v6948 = vpop.f32.mrb[0].mxu0
    %v6949 = vadd.f32 %v6908, %v6948
    %v6950 = vpop.f32.mrb[0].mxu0
    %6951 = vdwg.mxu0
    %6952 = vmatprep.subr.bf16.mxu0 0
    %6953 = vmatpush1.bf16.msra.mxu0 %v5688
    %6954 = vmatprep.subr.bf16.mxu0 0
    %6955 = vmatpush1.bf16.msra.mxu0 %v5695
    %6956 = vmatprep.subr.bf16.mxu0 0
    %6957 = vmatpush1.bf16.msra.mxu0 %v5702
    %6958 = vmatprep.subr.bf16.mxu0 0
    %6959 = vmatpush1.bf16.msra.mxu0 %v5709
    %6960 = vmatprep.subr.bf16.mxu0 0
    %6961 = vmatpush1.bf16.msra.mxu0 %v5716
    %6962 = vmatprep.subr.bf16.mxu0 0
    %6963 = vmatpush1.bf16.msra.mxu0 %v5723
    %6964 = vmatprep.subr.bf16.mxu0 0
    %6965 = vmatpush1.bf16.msra.mxu0 %v5730
    %6966 = vmatprep.subr.bf16.mxu0 0
    %6967 = vmatpush1.bf16.msra.mxu0 %v5737
    %6968 = vmatprep.subr.bf16.mxu0 0
    %6969 = vmatpush1.bf16.msra.mxu0 %v5744
    %6970 = vmatprep.subr.bf16.mxu0 0
    %6971 = vmatpush1.bf16.msra.mxu0 %v5751
    %6972 = vmatprep.subr.bf16.mxu0 0
    %6973 = vmatpush1.bf16.msra.mxu0 %v5758
    %6974 = vmatprep.subr.bf16.mxu0 0
    %6975 = vmatpush1.bf16.msra.mxu0 %v5765
    %6976 = vmatprep.subr.bf16.mxu0 0
    %6977 = vmatpush1.bf16.msra.mxu0 %v5772
    %6978 = vmatprep.subr.bf16.mxu0 0
    %6979 = vmatpush1.bf16.msra.mxu0 %v5779
    %6980 = vmatprep.subr.bf16.mxu0 0
    %6981 = vmatpush1.bf16.msra.mxu0 %v5786
    %6982 = vmatprep.subr.bf16.mxu0 0
    %6983 = vmatpush1.bf16.msra.mxu0 %v5793
    %6984 = vmatprep.mubr.bf16.mxu0 %v3498
    %6985 = vmatmul.mubr.bf16.gmra.mrb[0].mxu0 %v3497
    %v6986 = vpop.f32.mrb[0].mxu0
    %v6987 = vadd.f32 %v6946, %v6986
    %v6988 = vpop.f32.mrb[0].mxu0
    %v6989 = vpop.f32.mrb[0].mxu0
    %v6990 = vadd.f32 %v6949, %v6989
    %v6991 = vpop.f32.mrb[0].mxu0
    %6992 = vdwg.mxu0
    %6993 = vmatprep.subr.bf16.mxu0 0
    %6994 = vmatpush1.bf16.msra.mxu0 %v5800
    %6995 = vmatprep.subr.bf16.mxu0 0
    %6996 = vmatpush1.bf16.msra.mxu0 %v5807
    %6997 = vmatprep.subr.bf16.mxu0 0
    %6998 = vmatpush1.bf16.msra.mxu0 %v5814
    %6999 = vmatprep.subr.bf16.mxu0 0
    %7000 = vmatpush1.bf16.msra.mxu0 %v5821
    %7001 = vmatprep.subr.bf16.mxu0 0
    %7002 = vmatpush1.bf16.msra.mxu0 %v5828
    %7003 = vmatprep.subr.bf16.mxu0 0
    %7004 = vmatpush1.bf16.msra.mxu0 %v5835
    %7005 = vmatprep.subr.bf16.mxu0 0
    %7006 = vmatpush1.bf16.msra.mxu0 %v5842
    %7007 = vmatprep.subr.bf16.mxu0 0
    %7008 = vmatpush1.bf16.msra.mxu0 %v5849
    %7009 = vmatprep.subr.bf16.mxu0 0
    %7010 = vmatpush1.bf16.msra.mxu0 %v5856
    %7011 = vmatprep.subr.bf16.mxu0 0
    %7012 = vmatpush1.bf16.msra.mxu0 %v5863
    %7013 = vmatprep.subr.bf16.mxu0 0
    %7014 = vmatpush1.bf16.msra.mxu0 %v5870
    %7015 = vmatprep.subr.bf16.mxu0 0
    %7016 = vmatpush1.bf16.msra.mxu0 %v5877
    %7017 = vmatprep.subr.bf16.mxu0 0
    %7018 = vmatpush1.bf16.msra.mxu0 %v5884
    %7019 = vmatprep.subr.bf16.mxu0 0
    %7020 = vmatpush1.bf16.msra.mxu0 %v5891
    %7021 = vmatprep.subr.bf16.mxu0 0
    %7022 = vmatpush1.bf16.msra.mxu0 %v5898
    %7023 = vmatprep.subr.bf16.mxu0 0
    %7024 = vmatpush1.bf16.msra.mxu0 %v5905
    %7025 = vmatprep.mubr.bf16.mxu0 %v3500
    %7026 = vmatmul.mubr.bf16.gmra.mrb[0].mxu0 %v3499
    %v7027 = vpop.f32.mrb[0].mxu0
    %v7028 = vadd.f32 %v6987, %v7027
    %v7029 = vpop.f32.mrb[0].mxu0
    %v7030 = vpop.f32.mrb[0].mxu0
    %v7031 = vadd.f32 %v6990, %v7030
    %v7032 = vpop.f32.mrb[0].mxu0
    %7033 = vdwg.mxu0
    %v7034 = vtanh.pop %v6518
    %v7035 = vtanh.pop %v6520
    %v7036 = vtanh.pop %v6690
    %v7037 = vtanh.pop %v6692
    %v7038 = vtanh.pop %v6862
    %v7039 = vtanh.pop %v6864
    %v7040 = vtanh.pop %v7028
    %v7041 = vtanh.pop %v6522
    %v7042 = vtanh.pop %v6524
    %v7043 = vtanh.pop %v6694
    %v7044 = vtanh.pop %v6696
    %v7045 = vtanh.pop %v6866
    %v7046 = vtanh.pop %v6868
    %v7047 = vtanh.pop %v7031
    %7048 = vst [vmem:[#allocation16] sm:$0xff] %v7034
    %7049 = vst [vmem:[#allocation16 + $0x8] sm:$0xff] %v7035
    %7050 = vst [vmem:[#allocation16 + $0x10] sm:$0xff] %v7036
    %7051 = vst [vmem:[#allocation16 + $0x18] sm:$0xff] %v7037
    %7052 = vst [vmem:[#allocation16 + $0x20] sm:$0xff] %v7038
    %7053 = vst [vmem:[#allocation16 + $0x28] sm:$0xff] %v7039
    %7054 = vst [vmem:[#allocation16 + $0x30] sm:$0xff] %v7040
    %7055 = vst [vmem:[#allocation16 + $0x38] sm:$0xff] %v7041
    %7056 = vst [vmem:[#allocation16 + $0x40] sm:$0xff] %v7042
    %7057 = vst [vmem:[#allocation16 + $0x48] sm:$0xff] %v7043
    %7058 = vst [vmem:[#allocation16 + $0x50] sm:$0xff] %v7044
    %7059 = vst [vmem:[#allocation16 + $0x58] sm:$0xff] %v7045
    %7060 = vst [vmem:[#allocation16 + $0x60] sm:$0xff] %v7046
    %7061 = vst [vmem:[#allocation16 + $0x68] sm:$0xff] %v7047
    // Predicated region
    $region70: #{generator_forward.1} parent=1 // pred_check
      _
    $region71: #{generator_forward.1} parent=1 // pred_check_branch
      %7063 = sbr.rel (0) target = $region73
    $region72: #{generator_forward.1} parent=1 // pred_region
      %s7065 = ssub.s32 1792, 1792
      %7066 = vsyncadd [#allocation4], %s7065
      %s7067 = sshll.u32 [#allocation16], 4
      %s7068 = int_to_ptr.vmem [resolvable:$true] %s7067
      %7073 = dma.vmem_to_hbm [thread:$0]  %s7068, 1792, %s9, [#allocation4], 896, 896, 56
    $region73: #{generator_forward.1} parent=1 // pred_fallthru
      _
    // Predicated region
    $region74: #{generator_forward.1} parent=1 // pred_check
      _
    $region75: #{generator_forward.1} parent=1 // pred_check_branch
      %7075 = sbr.rel (0) target = $region77
    $region76: #{generator_forward.1} parent=1 // pred_region
      %7076 = dma.done [#allocation4], 1792
    $region77: #{generator_forward.1} parent=1 // pred_fallthru
      _
    %7077 = vsyncpa [#allocation3], 1
    %7078 = vsyncpa [#allocation6], 1
    %7079 = vsyncpa [#allocation9], 1
    %7080 = vsyncpa [#allocation12], 1
    %7081 = vsyncpa [#allocation15], 1
    %7082 = vsyncpa [#allocation4], 1

</llo_original>
